<compile_context>
chip_gen: v5e
topology: v5e:2x2
jax: 0.10.0
libtpu: 0.0.40
codegen_flags: <defaults>
</compile_context>

<pallas_src>
import functools

import numpy as np
import jax
import jax.numpy as jnp
from jax.experimental import pallas as pl
from jax.experimental.pallas import tpu as pltpu


def _round_up(n, m):
    return ((n + m - 1) // m) * m


def _autoencoder_kernel(x_ref,
                        w1_ref, b1_ref,
                        w2_ref, b2_ref,
                        w3_ref, b3_ref,
                        w4_ref, b4_ref,
                        o_ref,
                        *, act_dtype, precision):
    """One batch tile: four dense layers with ReLU/ReLU/ReLU/Sigmoid."""

    def dense(a, w_ref, b_ref):
        # MXU matmul, f32 accumulation.  The activation is cast to the weight
        # dtype (no-op when it already lives in that dtype); bias-add is f32.
        return (jnp.dot(a.astype(w_ref.dtype), w_ref[...],
                        preferred_element_type=jnp.float32,
                        precision=precision)
                + b_ref[...])

    x = x_ref[...]
    # ----- encoder -----
    h = jnp.maximum(dense(x, w1_ref, b1_ref), 0.0).astype(act_dtype)
    z = jnp.maximum(dense(h, w2_ref, b2_ref), 0.0).astype(act_dtype)
    # ----- decoder -----
    d = jnp.maximum(dense(z, w3_ref, b3_ref), 0.0).astype(act_dtype)
    y = jax.nn.sigmoid(dense(d, w4_ref, b4_ref))          # final path in f32
    o_ref[...] = y.astype(o_ref.dtype)


def _bf16_valu_available():
    """v6e / v7x VALUs handle bf16; v5e does not -> keep f32 elementwise there."""
    try:
        kind = jax.devices()[0].device_kind.lower()
    except Exception:
        return False
    return ("v6" in kind) or ("v7" in kind) or ("tpu7" in kind)


def autoencoder_forward(x, params, *, tile_b=2048, use_bf16_matmul=True,
                        pad_features=None, out_dtype=jnp.float32):
    """x: (B, input_dim) f32; params: dict of (in, out) weights, (1, out) biases."""
    B, input_dim = x.shape
    w1, b1 = params["w1"], params["b1"]
    w2, b2 = params["w2"], params["b2"]
    w3, b3 = params["w3"], params["b3"]
    w4, b4 = params["w4"], params["b4"]
    hidden_dim = w1.shape[1]
    k_dim = w2.shape[1]

    # ---- optional lane-dense feature padding (multiple of 128 lanes) ------
    d_io = _round_up(input_dim, 128)
    if pad_features is None:
        # Auto: pad only when the extra streamed bytes are modest (<= 25%),
        # e.g. 784 -> 896.  Do NOT auto-pad 64 -> 128: that would double HBM
        # traffic on an HBM-bound kernel.
        pad_features = (d_io != input_dim) and (4 * (d_io - input_dim) <= input_dim)
    if pad_features and d_io != input_dim:
        fp = d_io - input_dim
        x = jnp.pad(x, ((0, 0), (0, fp)))
        w1 = jnp.pad(w1, ((0, fp), (0, 0)))
        w4 = jnp.pad(w4, ((0, 0), (0, fp)))
        b4 = jnp.pad(b4, ((0, 0), (0, fp)))
    else:
        d_io = input_dim

    # ---- matmul / activation dtypes ---------------------------------------
    if use_bf16_matmul:
        matmul_dtype = jnp.bfloat16
        precision = None
        act_dtype = jnp.bfloat16 if _bf16_valu_available() else jnp.float32
    else:
        # Strict correctness path (slow on v5e: f32 matmul is multi-pass).
        matmul_dtype = jnp.float32
        precision = jax.lax.Precision.HIGHEST
        act_dtype = jnp.float32

    # Pre-cast weights ONCE in the wrapper; biases stay f32 (f32 bias-add).
    w1, w2, w3, w4 = tuple(w.astype(matmul_dtype) for w in (w1, w2, w3, w4))
    resident = (w1, b1, w2, b2, w3, b3, w4, b4)

    # ---- batch tiling ------------------------------------------------------
    b8 = _round_up(B, 8)
    tile_b = max(8, min(_round_up(int(tile_b), 8), b8))
    # v7x megacore: ensure moderate batches produce >= 2 grid tiles so the
    # "parallel" batch axis can be sharded across both TensorCores.
    if b8 > 8 and tile_b >= b8:
        tile_b = _round_up(pl.cdiv(b8, 2), 8)
    B_pad = _round_up(B, tile_b)
    if B_pad != x.shape[0]:
        x = jnp.pad(x, ((0, B_pad - x.shape[0]), (0, 0)))
    num_tiles = B_pad // tile_b

    # ---- explicit VMEM budget (scoped defaults differ per generation) -----
    out_itemsize = np.dtype(out_dtype).itemsize
    stream_tile = tile_b * d_io * (x.dtype.itemsize + out_itemsize)
    weight_bytes = sum(int(a.size) * a.dtype.itemsize for a in resident)
    act_bytes = tile_b * (2 * hidden_dim + k_dim + d_io) * 4
    vmem_limit = int(min(64 * 1024 * 1024,
                         2 * (2 * stream_tile + 2 * weight_bytes + act_bytes)
                         + 8 * 1024 * 1024))

    cost = pl.CostEstimate(
        flops=2 * B_pad * (d_io * hidden_dim + hidden_dim * k_dim
                           + k_dim * hidden_dim + hidden_dim * d_io),
        transcendentals=B_pad * d_io,            # sigmoid
        bytes_accessed=B_pad * d_io * (x.dtype.itemsize + out_itemsize) + weight_bytes,
    )

    kernel = functools.partial(_autoencoder_kernel,
                               act_dtype=act_dtype, precision=precision)

    def _resident_spec(shape, single_buffer):
        if single_buffer:
            # Constant index_map: the operand never changes across the grid,
            # so a single VMEM buffer is enough (default double-buffering
            # would just waste resident VMEM).
            return pl.BlockSpec(shape, lambda i: (0, 0),
                                pipeline_mode=pl.Buffered(1))
        return pl.BlockSpec(shape, lambda i: (0, 0))

    def _run(single_buffer_weights):
        in_specs = [pl.BlockSpec((tile_b, d_io), lambda i: (i, 0))]
        in_specs += [_resident_spec(a.shape, single_buffer_weights)
                     for a in resident]
        return pl.pallas_call(
            kernel,
            out_shape=jax.ShapeDtypeStruct((B_pad, d_io), out_dtype),
            grid=(num_tiles,),
            in_specs=in_specs,
            out_specs=pl.BlockSpec((tile_b, d_io), lambda i: (i, 0)),
            compiler_params=pltpu.CompilerParams(
                dimension_semantics=("parallel",),   # shard batch tiles over TCs
                vmem_limit_bytes=vmem_limit,
            ),
            cost_estimate=cost,
        )(x, *resident)

    try:
        out = _run(single_buffer_weights=True)
    except Exception:
        # pl.Buffered(1) unsupported in this jax version -> fall back to the
        # default double-buffered resident operands (identical results).
        out = _run(single_buffer_weights=False)

    return out[:B, :input_dim]


def init_params(key, input_dim, hidden_dim, k):
    """torch.nn.Linear-style init: U(-1/sqrt(fan_in), 1/sqrt(fan_in)).
    Weights stored as (in, out) so the kernel computes y = x @ W + b."""
    def linear(key, fan_in, fan_out):
        kw, kb = jax.random.split(key)
        bound = float(1.0 / np.sqrt(fan_in))
        w = jax.random.uniform(kw, (fan_in, fan_out), jnp.float32, -bound, bound)
        b = jax.random.uniform(kb, (1, fan_out), jnp.float32, -bound, bound)
        return w, b

    k1, k2, k3, k4 = jax.random.split(key, 4)
    w1, b1 = linear(k1, input_dim, hidden_dim)   # encoder.0
    w2, b2 = linear(k2, hidden_dim, k)           # encoder.2
    w3, b3 = linear(k3, k, hidden_dim)           # decoder.0
    w4, b4 = linear(k4, hidden_dim, input_dim)   # decoder.2
    return dict(w1=w1, b1=b1, w2=w2, b2=b2, w3=w3, b3=b3, w4=w4, b4=b4)


def reference_forward(x, p):
    """Pure-JAX f32 reference matching the PyTorch forward semantics."""
    hi = jax.lax.Precision.HIGHEST
    h = jnp.maximum(jnp.dot(x, p["w1"], precision=hi) + p["b1"], 0.0)
    z = jnp.maximum(jnp.dot(h, p["w2"], precision=hi) + p["b2"], 0.0)
    d = jnp.maximum(jnp.dot(z, p["w3"], precision=hi) + p["b3"], 0.0)
    return jax.nn.sigmoid(jnp.dot(d, p["w4"], precision=hi) + p["b4"])


if __name__ == "__main__":
    # Small shapes consistent with the module: Autoencoder(input_dim=64, hidden_dim=32, k=256)
    B, INPUT_DIM, HIDDEN_DIM, K = 16, 64, 32, 256

    key = jax.random.PRNGKey(0)
    kx, kp = jax.random.split(key)
    x = jax.random.uniform(kx, (B, INPUT_DIM), jnp.float32)
    params = init_params(kp, INPUT_DIM, HIDDEN_DIM, K)

    ref = reference_forward(x, params)

    # 1) exact-precision correctness path (f32 matmul, HIGHEST precision).
    out_f32 = jax.block_until_ready(
        autoencoder_forward(x, params, use_bf16_matmul=False))
    assert out_f32.shape == (B, INPUT_DIM)
    assert jnp.allclose(out_f32, ref, atol=1e-5, rtol=1e-5), "f32 mismatch vs reference"

    # 2) performance path (bf16 weights/matmuls, f32 accumulation).
    out_bf16 = jax.block_until_ready(autoencoder_forward(x, params))
    assert out_bf16.shape == (B, INPUT_DIM)
    assert jnp.allclose(out_bf16, ref, atol=3e-2, rtol=3e-2), "bf16 mismatch vs reference"

    # 3) lane-dense feature-padded path (forced, to exercise the padding code).
    out_pad = jax.block_until_ready(
        autoencoder_forward(x, params, pad_features=True))
    assert out_pad.shape == (B, INPUT_DIM)
    assert jnp.allclose(out_pad, ref, atol=3e-2, rtol=3e-2), "padded-path mismatch"

    print("KERNEL_OK")
</pallas_src>

<mosaic_0001>
module attributes {stable_mosaic.version = 11 : i64} {
  func.func @_autoencoder_kernel(%arg0: i32, %arg1: memref<8x64xf32, #tpu.memory_space<vmem>>, %arg2: memref<64x32xf32, #tpu.memory_space<vmem>>, %arg3: memref<1x32xf32, #tpu.memory_space<vmem>>, %arg4: memref<32x256xf32, #tpu.memory_space<vmem>>, %arg5: memref<1x256xf32, #tpu.memory_space<vmem>>, %arg6: memref<256x32xf32, #tpu.memory_space<vmem>>, %arg7: memref<1x32xf32, #tpu.memory_space<vmem>>, %arg8: memref<32x64xf32, #tpu.memory_space<vmem>>, %arg9: memref<1x64xf32, #tpu.memory_space<vmem>>, %arg10: memref<8x64xf32, #tpu.memory_space<vmem>>) attributes {dimension_semantics = [#tpu.dimension_semantics<parallel>], iteration_bounds = array<i64: 2>, scalar_prefetch = 0 : i64, scratch_operands = 0 : i64, tpu.core_type = #tpu.core_type<tc>, window_params = [{transform_indices = @transform_0, window_bounds = array<i64: 8, 64>}, {pipeline_mode = #tpu.pipeline_mode<synchronous>, transform_indices = @transform_1, window_bounds = array<i64: 64, 32>}, {pipeline_mode = #tpu.pipeline_mode<synchronous>, transform_indices = @transform_2, window_bounds = array<i64: 1, 32>}, {pipeline_mode = #tpu.pipeline_mode<synchronous>, transform_indices = @transform_3, window_bounds = array<i64: 32, 256>}, {pipeline_mode = #tpu.pipeline_mode<synchronous>, transform_indices = @transform_4, window_bounds = array<i64: 1, 256>}, {pipeline_mode = #tpu.pipeline_mode<synchronous>, transform_indices = @transform_5, window_bounds = array<i64: 256, 32>}, {pipeline_mode = #tpu.pipeline_mode<synchronous>, transform_indices = @transform_6, window_bounds = array<i64: 1, 32>}, {pipeline_mode = #tpu.pipeline_mode<synchronous>, transform_indices = @transform_7, window_bounds = array<i64: 32, 64>}, {pipeline_mode = #tpu.pipeline_mode<synchronous>, transform_indices = @transform_8, window_bounds = array<i64: 1, 64>}, {transform_indices = @transform_9, window_bounds = array<i64: 8, 64>}]} {
    %c0 = arith.constant 0 : index
    %c0_0 = arith.constant 0 : index
    %0 = vector.load %arg1[%c0, %c0_0] : memref<8x64xf32, #tpu.memory_space<vmem>>, vector<8x64xf32>
    %c0_1 = arith.constant 0 : index
    %c0_2 = arith.constant 0 : index
    %1 = vector.load %arg2[%c0_1, %c0_2] : memref<64x32xf32, #tpu.memory_space<vmem>>, vector<64x32xf32>
    %cst = arith.constant dense<0.000000e+00> : vector<8x32xf32>
    %2 = tpu.matmul %0, %1, %cst {dimension_numbers = #tpu.dot_dimension_numbers<[1], [0], [0], [1], [0, 0, 1, 1], [], []>, precision = #tpu.contract_precision<fp32>} : vector<8x64xf32>, vector<64x32xf32>, vector<8x32xf32> -> vector<8x32xf32>
    %c0_3 = arith.constant 0 : index
    %c0_4 = arith.constant 0 : index
    %3 = vector.load %arg3[%c0_3, %c0_4] : memref<1x32xf32, #tpu.memory_space<vmem>>, vector<1x32xf32>
    %4 = vector.broadcast %3 : vector<1x32xf32> to vector<8x32xf32>
    %5 = arith.addf %2, %4 : vector<8x32xf32>
    %cst_5 = arith.constant 0.000000e+00 : f32
    %6 = vector.broadcast %cst_5 : f32 to vector<8x32xf32>
    %7 = arith.maximumf %5, %6 : vector<8x32xf32>
    %c0_6 = arith.constant 0 : index
    %c0_7 = arith.constant 0 : index
    %8 = vector.load %arg4[%c0_6, %c0_7] : memref<32x256xf32, #tpu.memory_space<vmem>>, vector<32x256xf32>
    %cst_8 = arith.constant dense<0.000000e+00> : vector<8x256xf32>
    %9 = tpu.matmul %7, %8, %cst_8 {dimension_numbers = #tpu.dot_dimension_numbers<[1], [0], [0], [1], [0, 0, 1, 1], [], []>, precision = #tpu.contract_precision<fp32>} : vector<8x32xf32>, vector<32x256xf32>, vector<8x256xf32> -> vector<8x256xf32>
    %c0_9 = arith.constant 0 : index
    %c0_10 = arith.constant 0 : index
    %10 = vector.load %arg5[%c0_9, %c0_10] : memref<1x256xf32, #tpu.memory_space<vmem>>, vector<1x256xf32>
    %11 = vector.broadcast %10 : vector<1x256xf32> to vector<8x256xf32>
    %12 = arith.addf %9, %11 : vector<8x256xf32>
    %cst_11 = arith.constant 0.000000e+00 : f32
    %13 = vector.broadcast %cst_11 : f32 to vector<8x256xf32>
    %14 = arith.maximumf %12, %13 : vector<8x256xf32>
    %c0_12 = arith.constant 0 : index
    %c0_13 = arith.constant 0 : index
    %15 = vector.load %arg6[%c0_12, %c0_13] : memref<256x32xf32, #tpu.memory_space<vmem>>, vector<256x32xf32>
    %cst_14 = arith.constant dense<0.000000e+00> : vector<8x32xf32>
    %16 = tpu.matmul %14, %15, %cst_14 {dimension_numbers = #tpu.dot_dimension_numbers<[1], [0], [0], [1], [0, 0, 1, 1], [], []>, precision = #tpu.contract_precision<fp32>} : vector<8x256xf32>, vector<256x32xf32>, vector<8x32xf32> -> vector<8x32xf32>
    %c0_15 = arith.constant 0 : index
    %c0_16 = arith.constant 0 : index
    %17 = vector.load %arg7[%c0_15, %c0_16] : memref<1x32xf32, #tpu.memory_space<vmem>>, vector<1x32xf32>
    %18 = vector.broadcast %17 : vector<1x32xf32> to vector<8x32xf32>
    %19 = arith.addf %16, %18 : vector<8x32xf32>
    %cst_17 = arith.constant 0.000000e+00 : f32
    %20 = vector.broadcast %cst_17 : f32 to vector<8x32xf32>
    %21 = arith.maximumf %19, %20 : vector<8x32xf32>
    %c0_18 = arith.constant 0 : index
    %c0_19 = arith.constant 0 : index
    %22 = vector.load %arg8[%c0_18, %c0_19] : memref<32x64xf32, #tpu.memory_space<vmem>>, vector<32x64xf32>
    %cst_20 = arith.constant dense<0.000000e+00> : vector<8x64xf32>
    %23 = tpu.matmul %21, %22, %cst_20 {dimension_numbers = #tpu.dot_dimension_numbers<[1], [0], [0], [1], [0, 0, 1, 1], [], []>, precision = #tpu.contract_precision<fp32>} : vector<8x32xf32>, vector<32x64xf32>, vector<8x64xf32> -> vector<8x64xf32>
    %c0_21 = arith.constant 0 : index
    %c0_22 = arith.constant 0 : index
    %24 = vector.load %arg9[%c0_21, %c0_22] : memref<1x64xf32, #tpu.memory_space<vmem>>, vector<1x64xf32>
    %25 = vector.broadcast %24 : vector<1x64xf32> to vector<8x64xf32>
    %26 = arith.addf %23, %25 : vector<8x64xf32>
    %27 = arith.negf %26 : vector<8x64xf32>
    %28 = math.exp %27 : vector<8x64xf32>
    %cst_23 = arith.constant 1.000000e+00 : f32
    %29 = vector.broadcast %cst_23 : f32 to vector<8x64xf32>
    %30 = arith.addf %29, %28 : vector<8x64xf32>
    %31 = arith.divf %29, %30 : vector<8x64xf32>
    %c0_24 = arith.constant 0 : index
    %c0_25 = arith.constant 0 : index
    %32 = vector.load %arg10[%c0_24, %c0_25] : memref<8x64xf32, #tpu.memory_space<vmem>>, vector<8x64xf32>
    tpu.vector_store %arg10[%c0_24, %c0_25], %31 {strides = array<i32>} : memref<8x64xf32, #tpu.memory_space<vmem>>, vector<8x64xf32>,
    return
  }
  func.func @transform_0(%arg0: i32) -> (i32, i32) {
    %c0_i32 = arith.constant 0 : i32
    %c0_i32_0 = arith.constant 0 : i32
    return %arg0, %c0_i32 : i32, i32
  }
  func.func @transform_1(%arg0: i32) -> (i32, i32) {
    %c0_i32 = arith.constant 0 : i32
    %c0_i32_0 = arith.constant 0 : i32
    %c0_i32_1 = arith.constant 0 : i32
    return %c0_i32, %c0_i32_0 : i32, i32
  }
  func.func @transform_2(%arg0: i32) -> (i32, i32) {
    %c0_i32 = arith.constant 0 : i32
    %c0_i32_0 = arith.constant 0 : i32
    %c0_i32_1 = arith.constant 0 : i32
    return %c0_i32, %c0_i32_0 : i32, i32
  }
  func.func @transform_3(%arg0: i32) -> (i32, i32) {
    %c0_i32 = arith.constant 0 : i32
    %c0_i32_0 = arith.constant 0 : i32
    %c0_i32_1 = arith.constant 0 : i32
    return %c0_i32, %c0_i32_0 : i32, i32
  }
  func.func @transform_4(%arg0: i32) -> (i32, i32) {
    %c0_i32 = arith.constant 0 : i32
    %c0_i32_0 = arith.constant 0 : i32
    %c0_i32_1 = arith.constant 0 : i32
    return %c0_i32, %c0_i32_0 : i32, i32
  }
  func.func @transform_5(%arg0: i32) -> (i32, i32) {
    %c0_i32 = arith.constant 0 : i32
    %c0_i32_0 = arith.constant 0 : i32
    %c0_i32_1 = arith.constant 0 : i32
    return %c0_i32, %c0_i32_0 : i32, i32
  }
  func.func @transform_6(%arg0: i32) -> (i32, i32) {
    %c0_i32 = arith.constant 0 : i32
    %c0_i32_0 = arith.constant 0 : i32
    %c0_i32_1 = arith.constant 0 : i32
    return %c0_i32, %c0_i32_0 : i32, i32
  }
  func.func @transform_7(%arg0: i32) -> (i32, i32) {
    %c0_i32 = arith.constant 0 : i32
    %c0_i32_0 = arith.constant 0 : i32
    %c0_i32_1 = arith.constant 0 : i32
    return %c0_i32, %c0_i32_0 : i32, i32
  }
  func.func @transform_8(%arg0: i32) -> (i32, i32) {
    %c0_i32 = arith.constant 0 : i32
    %c0_i32_0 = arith.constant 0 : i32
    %c0_i32_1 = arith.constant 0 : i32
    return %c0_i32, %c0_i32_0 : i32, i32
  }
  func.func @transform_9(%arg0: i32) -> (i32, i32) {
    %c0_i32 = arith.constant 0 : i32
    %c0_i32_0 = arith.constant 0 : i32
    return %arg0, %c0_i32 : i32, i32
  }
}

module attributes {stable_mosaic.version = 11 : i64} {
  func.func @_autoencoder_kernel(%arg0: i32, %arg1: memref<8x64xf32, #tpu.memory_space<vmem>>, %arg2: memref<64x32xf32, #tpu.memory_space<vmem>>, %arg3: memref<1x32xf32, #tpu.memory_space<vmem>>, %arg4: memref<32x256xf32, #tpu.memory_space<vmem>>, %arg5: memref<1x256xf32, #tpu.memory_space<vmem>>, %arg6: memref<256x32xf32, #tpu.memory_space<vmem>>, %arg7: memref<1x32xf32, #tpu.memory_space<vmem>>, %arg8: memref<32x64xf32, #tpu.memory_space<vmem>>, %arg9: memref<1x64xf32, #tpu.memory_space<vmem>>, %arg10: memref<8x64xf32, #tpu.memory_space<vmem>>) attributes {dimension_semantics = [#tpu.dimension_semantics<parallel>], iteration_bounds = array<i64: 2>, scalar_prefetch = 0 : i64, scratch_operands = 0 : i64, tpu.core_type = #tpu.core_type<tc>, window_params = [{transform_indices = @transform_0, window_bounds = array<i64: 8, 64>}, {pipeline_mode = #tpu.pipeline_mode<synchronous>, transform_indices = @transform_1, window_bounds = array<i64: 64, 32>}, {pipeline_mode = #tpu.pipeline_mode<synchronous>, transform_indices = @transform_2, window_bounds = array<i64: 1, 32>}, {pipeline_mode = #tpu.pipeline_mode<synchronous>, transform_indices = @transform_3, window_bounds = array<i64: 32, 256>}, {pipeline_mode = #tpu.pipeline_mode<synchronous>, transform_indices = @transform_4, window_bounds = array<i64: 1, 256>}, {pipeline_mode = #tpu.pipeline_mode<synchronous>, transform_indices = @transform_5, window_bounds = array<i64: 256, 32>}, {pipeline_mode = #tpu.pipeline_mode<synchronous>, transform_indices = @transform_6, window_bounds = array<i64: 1, 32>}, {pipeline_mode = #tpu.pipeline_mode<synchronous>, transform_indices = @transform_7, window_bounds = array<i64: 32, 64>}, {pipeline_mode = #tpu.pipeline_mode<synchronous>, transform_indices = @transform_8, window_bounds = array<i64: 1, 64>}, {transform_indices = @transform_9, window_bounds = array<i64: 8, 64>}]} {
    %c0 = arith.constant 0 : index
    %c0_0 = arith.constant 0 : index
    %0 = vector.load %arg1[%c0, %c0_0] : memref<8x64xf32, #tpu.memory_space<vmem>>, vector<8x64xf32>
    %c0_1 = arith.constant 0 : index
    %c0_2 = arith.constant 0 : index
    %1 = vector.load %arg2[%c0_1, %c0_2] : memref<64x32xf32, #tpu.memory_space<vmem>>, vector<64x32xf32>
    %cst = arith.constant dense<0.000000e+00> : vector<8x32xf32>
    %2 = tpu.matmul %0, %1, %cst {dimension_numbers = #tpu.dot_dimension_numbers<[1], [0], [0], [1], [0, 0, 1, 1], [], []>, precision = #tpu.contract_precision<fp32>} : vector<8x64xf32>, vector<64x32xf32>, vector<8x32xf32> -> vector<8x32xf32>
    %c0_3 = arith.constant 0 : index
    %c0_4 = arith.constant 0 : index
    %3 = vector.load %arg3[%c0_3, %c0_4] : memref<1x32xf32, #tpu.memory_space<vmem>>, vector<1x32xf32>
    %4 = vector.broadcast %3 : vector<1x32xf32> to vector<8x32xf32>
    %5 = arith.addf %2, %4 : vector<8x32xf32>
    %cst_5 = arith.constant 0.000000e+00 : f32
    %6 = vector.broadcast %cst_5 : f32 to vector<8x32xf32>
    %7 = arith.maximumf %5, %6 : vector<8x32xf32>
    %c0_6 = arith.constant 0 : index
    %c0_7 = arith.constant 0 : index
    %8 = vector.load %arg4[%c0_6, %c0_7] : memref<32x256xf32, #tpu.memory_space<vmem>>, vector<32x256xf32>
    %cst_8 = arith.constant dense<0.000000e+00> : vector<8x256xf32>
    %9 = tpu.matmul %7, %8, %cst_8 {dimension_numbers = #tpu.dot_dimension_numbers<[1], [0], [0], [1], [0, 0, 1, 1], [], []>, precision = #tpu.contract_precision<fp32>} : vector<8x32xf32>, vector<32x256xf32>, vector<8x256xf32> -> vector<8x256xf32>
    %c0_9 = arith.constant 0 : index
    %c0_10 = arith.constant 0 : index
    %10 = vector.load %arg5[%c0_9, %c0_10] : memref<1x256xf32, #tpu.memory_space<vmem>>, vector<1x256xf32>
    %11 = vector.broadcast %10 : vector<1x256xf32> to vector<8x256xf32>
    %12 = arith.addf %9, %11 : vector<8x256xf32>
    %cst_11 = arith.constant 0.000000e+00 : f32
    %13 = vector.broadcast %cst_11 : f32 to vector<8x256xf32>
    %14 = arith.maximumf %12, %13 : vector<8x256xf32>
    %c0_12 = arith.constant 0 : index
    %c0_13 = arith.constant 0 : index
    %15 = vector.load %arg6[%c0_12, %c0_13] : memref<256x32xf32, #tpu.memory_space<vmem>>, vector<256x32xf32>
    %cst_14 = arith.constant dense<0.000000e+00> : vector<8x32xf32>
    %16 = tpu.matmul %14, %15, %cst_14 {dimension_numbers = #tpu.dot_dimension_numbers<[1], [0], [0], [1], [0, 0, 1, 1], [], []>, precision = #tpu.contract_precision<fp32>} : vector<8x256xf32>, vector<256x32xf32>, vector<8x32xf32> -> vector<8x32xf32>
    %c0_15 = arith.constant 0 : index
    %c0_16 = arith.constant 0 : index
    %17 = vector.load %arg7[%c0_15, %c0_16] : memref<1x32xf32, #tpu.memory_space<vmem>>, vector<1x32xf32>
    %18 = vector.broadcast %17 : vector<1x32xf32> to vector<8x32xf32>
    %19 = arith.addf %16, %18 : vector<8x32xf32>
    %cst_17 = arith.constant 0.000000e+00 : f32
    %20 = vector.broadcast %cst_17 : f32 to vector<8x32xf32>
    %21 = arith.maximumf %19, %20 : vector<8x32xf32>
    %c0_18 = arith.constant 0 : index
    %c0_19 = arith.constant 0 : index
    %22 = vector.load %arg8[%c0_18, %c0_19] : memref<32x64xf32, #tpu.memory_space<vmem>>, vector<32x64xf32>
    %cst_20 = arith.constant dense<0.000000e+00> : vector<8x64xf32>
    %23 = tpu.matmul %21, %22, %cst_20 {dimension_numbers = #tpu.dot_dimension_numbers<[1], [0], [0], [1], [0, 0, 1, 1], [], []>, precision = #tpu.contract_precision<fp32>} : vector<8x32xf32>, vector<32x64xf32>, vector<8x64xf32> -> vector<8x64xf32>
    %c0_21 = arith.constant 0 : index
    %c0_22 = arith.constant 0 : index
    %24 = vector.load %arg9[%c0_21, %c0_22] : memref<1x64xf32, #tpu.memory_space<vmem>>, vector<1x64xf32>
    %25 = vector.broadcast %24 : vector<1x64xf32> to vector<8x64xf32>
    %26 = arith.addf %23, %25 : vector<8x64xf32>
    %27 = arith.negf %26 : vector<8x64xf32>
    %28 = math.exp %27 : vector<8x64xf32>
    %cst_23 = arith.constant 1.000000e+00 : f32
    %29 = vector.broadcast %cst_23 : f32 to vector<8x64xf32>
    %30 = arith.addf %29, %28 : vector<8x64xf32>
    %31 = arith.divf %29, %30 : vector<8x64xf32>
    %c0_24 = arith.constant 0 : index
    %c0_25 = arith.constant 0 : index
    %32 = vector.load %arg10[%c0_24, %c0_25] : memref<8x64xf32, #tpu.memory_space<vmem>>, vector<8x64xf32>
    tpu.vector_store %arg10[%c0_24, %c0_25], %31 {strides = array<i32>} : memref<8x64xf32, #tpu.memory_space<vmem>>, vector<8x64xf32>,
    return
  }
  func.func @transform_0(%arg0: i32) -> (i32, i32) {
    %c0_i32 = arith.constant 0 : i32
    %c0_i32_0 = arith.constant 0 : i32
    return %arg0, %c0_i32 : i32, i32
  }
  func.func @transform_1(%arg0: i32) -> (i32, i32) {
    %c0_i32 = arith.constant 0 : i32
    %c0_i32_0 = arith.constant 0 : i32
    %c0_i32_1 = arith.constant 0 : i32
    return %c0_i32, %c0_i32_0 : i32, i32
  }
  func.func @transform_2(%arg0: i32) -> (i32, i32) {
    %c0_i32 = arith.constant 0 : i32
    %c0_i32_0 = arith.constant 0 : i32
    %c0_i32_1 = arith.constant 0 : i32
    return %c0_i32, %c0_i32_0 : i32, i32
  }
  func.func @transform_3(%arg0: i32) -> (i32, i32) {
    %c0_i32 = arith.constant 0 : i32
    %c0_i32_0 = arith.constant 0 : i32
    %c0_i32_1 = arith.constant 0 : i32
    return %c0_i32, %c0_i32_0 : i32, i32
  }
  func.func @transform_4(%arg0: i32) -> (i32, i32) {
    %c0_i32 = arith.constant 0 : i32
    %c0_i32_0 = arith.constant 0 : i32
    %c0_i32_1 = arith.constant 0 : i32
    return %c0_i32, %c0_i32_0 : i32, i32
  }
  func.func @transform_5(%arg0: i32) -> (i32, i32) {
    %c0_i32 = arith.constant 0 : i32
    %c0_i32_0 = arith.constant 0 : i32
    %c0_i32_1 = arith.constant 0 : i32
    return %c0_i32, %c0_i32_0 : i32, i32
  }
  func.func @transform_6(%arg0: i32) -> (i32, i32) {
    %c0_i32 = arith.constant 0 : i32
    %c0_i32_0 = arith.constant 0 : i32
    %c0_i32_1 = arith.constant 0 : i32
    return %c0_i32, %c0_i32_0 : i32, i32
  }
  func.func @transform_7(%arg0: i32) -> (i32, i32) {
    %c0_i32 = arith.constant 0 : i32
    %c0_i32_0 = arith.constant 0 : i32
    %c0_i32_1 = arith.constant 0 : i32
    return %c0_i32, %c0_i32_0 : i32, i32
  }
  func.func @transform_8(%arg0: i32) -> (i32, i32) {
    %c0_i32 = arith.constant 0 : i32
    %c0_i32_0 = arith.constant 0 : i32
    %c0_i32_1 = arith.constant 0 : i32
    return %c0_i32, %c0_i32_0 : i32, i32
  }
  func.func @transform_9(%arg0: i32) -> (i32, i32) {
    %c0_i32 = arith.constant 0 : i32
    %c0_i32_0 = arith.constant 0 : i32
    return %arg0, %c0_i32 : i32, i32
  }
}

</mosaic_0001>

<llo_original>
// kernel: tpu_custom_call.1
$region0: #{tpu_custom_call.1}
  #allocation0 [shape = 'u32[]', space=smem, size = 0x4, offset = 0x4, fixed_abs, tag = 'smem constant byte address 0x4 - core index']
  #allocation1 [shape = 'u32[72,128]{1,0:T(1,128)}', space=vmem, size = 0x9000, scoped, tag = 'internal scratch']
  %s0 = inlined_call_operand.vmem [shape: f32[16,64], index: 0, kind: input, shape index: {}]
  %s1 = inlined_call_operand.vmem [shape: f32[64,32], index: 1, kind: input, shape index: {}]
  %s2 = inlined_call_operand.vmem [shape: f32[1,32], index: 2, kind: input, shape index: {}]
  %s3 = inlined_call_operand.vmem [shape: f32[32,256], index: 3, kind: input, shape index: {}]
  %s4 = inlined_call_operand.vmem [shape: f32[1,256], index: 4, kind: input, shape index: {}]
  %s5 = inlined_call_operand.vmem [shape: f32[256,32], index: 5, kind: input, shape index: {}]
  %s6 = inlined_call_operand.vmem [shape: f32[1,32], index: 6, kind: input, shape index: {}]
  %s7 = inlined_call_operand.vmem [shape: f32[32,64], index: 7, kind: input, shape index: {}]
  %s8 = inlined_call_operand.vmem [shape: f32[1,64], index: 8, kind: input, shape index: {}]
  %s9 = inlined_call_operand.hbm [shape: f32[16,64], index: 9, kind: output, shape index: {}]
  %s10 = sld [smem:[#allocation0]]
  $region69: #{tpu_custom_call.1} parent=0
    _
  %s12 = ssub.s32 1, %s10
  %s13 = scalar_select 0, %s12, %s10
  $region1: #{tpu_custom_call.1} parent=0
    #allocation2 [shape = 'u8[8192]{0}', space=vmem, size = 0x2000, scoped, tag = 'output window, operand 0']
    #allocation3 [shape = 's32[2]{0}', space=sflag, size = 0x8, scoped, tag = 'scoped memory for tpu_custom_call.1']
    %14 = vsyncpa [#allocation3], 0
    %s15 = scalar_lea.sflag [#allocation3], 1
    %16 = vsyncpa %s15, 0
    loop: start=0, step=1, limit=4
    $region2: #{tpu_custom_call.1} parent=1 // loop_pre_header
      _
    $region3: #{tpu_custom_call.1} parent=1 // loop_header
      %s18 = sphi 0, %s22
      %p19 = scmp.ge.s32.totalorder %s18, 4
      %s28 = sphi 0, %s30
      %s31 = sphi 0, %s28
      %s32 = sphi 0, %s31
      %s48 = sphi 0, %s32
      %s52 = sphi 0, %s52
      %s54 = sphi 0, %s52
      %s55 = sphi 0, %s54
      %s69 = sphi 0, %s55
      %s73 = sphi 0, %s73
      %s75 = sphi 0, %s73
      %s76 = sphi 0, %s75
      %s90 = sphi 0, %s76
      %s94 = sphi 0, %s94
      %s96 = sphi 0, %s94
      %s97 = sphi 0, %s96
      %s111 = sphi 0, %s97
      %s115 = sphi 0, %s115
      %s117 = sphi 0, %s115
      %s118 = sphi 0, %s117
      %s132 = sphi 0, %s118
      %s136 = sphi 0, %s136
      %s138 = sphi 0, %s136
      %s139 = sphi 0, %s138
      %s153 = sphi 0, %s139
      %s157 = sphi 0, %s157
      %s159 = sphi 0, %s157
      %s160 = sphi 0, %s159
      %s174 = sphi 0, %s160
      %s178 = sphi 0, %s178
      %s180 = sphi 0, %s178
      %s181 = sphi 0, %s180
      %s195 = sphi 0, %s181
      %s199 = sphi 0, %s199
      %s201 = sphi 0, %s199
      %s202 = sphi 0, %s201
      %s216 = sphi 0, %s202
      %s222 = sphi 0, %s224
      %s225 = sphi 0, %s222
      %s226 = sphi 0, %s225
      %s242 = sphi 0, %s226
    $region4: #{tpu_custom_call.1} parent=1 // loop_header_branch
      %21 = sbr.rel (%p19) target = $region8
    $region5: #{tpu_custom_call.1} parent=1 // loop_body
      %s23 = ssub.s32 %s18, 1
      %s24 = ssub.s32 %s18, 2
      %s25 = sadd.s32 %s18, 1
      %s26 = ssub.s32 %s18, %s25
      %p27 = scmp.eq.s32.totalorder %s26, 0
      %s29 = sadd.s32 %s28, 1
      %s30 = scalar_select %p27, %s28, %s29
      %p33 = pneg %p27
      %p34 = scmp.eq.s32.totalorder %s18, 1
      %p35 = por %p33, %p34
      %p36 = scmp.ne.s32.totalorder %s28, %s31
      %p37 = scmp.eq.s32.totalorder %s18, 0
      %p38 = por %p36, %p37
      %p39 = scmp.ne.s32.totalorder %s28, %s31
      %p40 = scmp.eq.s32.totalorder %s23, 1
      %p41 = por %p39, %p40
      %p42 = scmp.ne.s32.totalorder %s31, %s32
      %p43 = scmp.eq.s32.totalorder %s23, 0
      %p44 = por %p42, %p43
      %p45 = scmp.ne.s32.totalorder %s31, %s32
      %p46 = scmp.eq.s32.totalorder %s24, 1
      %p47 = por %p45, %p46
      %p49 = scmp.ne.s32.totalorder %s32, %s48
      %p50 = scmp.eq.s32.totalorder %s24, 0
      %p51 = por %p49, %p50
      %s53 = sadd.s32 %s52, 1
      %p56 = scmp.eq.s32.totalorder %s18, 1
      %p57 = scmp.ne.s32.totalorder %s52, %s54
      %p58 = scmp.eq.s32.totalorder %s18, 0
      %p59 = por %p57, %p58
      %p60 = scmp.ne.s32.totalorder %s52, %s54
      %p61 = scmp.eq.s32.totalorder %s23, 1
      %p62 = por %p60, %p61
      %p63 = scmp.ne.s32.totalorder %s54, %s55
      %p64 = scmp.eq.s32.totalorder %s23, 0
      %p65 = por %p63, %p64
      %p66 = scmp.ne.s32.totalorder %s54, %s55
      %p67 = scmp.eq.s32.totalorder %s24, 1
      %p68 = por %p66, %p67
      %p70 = scmp.ne.s32.totalorder %s55, %s69
      %p71 = scmp.eq.s32.totalorder %s24, 0
      %p72 = por %p70, %p71
      %s74 = sadd.s32 %s73, 1
      %p77 = scmp.eq.s32.totalorder %s18, 1
      %p78 = scmp.ne.s32.totalorder %s73, %s75
      %p79 = scmp.eq.s32.totalorder %s18, 0
      %p80 = por %p78, %p79
      %p81 = scmp.ne.s32.totalorder %s73, %s75
      %p82 = scmp.eq.s32.totalorder %s23, 1
      %p83 = por %p81, %p82
      %p84 = scmp.ne.s32.totalorder %s75, %s76
      %p85 = scmp.eq.s32.totalorder %s23, 0
      %p86 = por %p84, %p85
      %p87 = scmp.ne.s32.totalorder %s75, %s76
      %p88 = scmp.eq.s32.totalorder %s24, 1
      %p89 = por %p87, %p88
      %p91 = scmp.ne.s32.totalorder %s76, %s90
      %p92 = scmp.eq.s32.totalorder %s24, 0
      %p93 = por %p91, %p92
      %s95 = sadd.s32 %s94, 1
      %p98 = scmp.eq.s32.totalorder %s18, 1
      %p99 = scmp.ne.s32.totalorder %s94, %s96
      %p100 = scmp.eq.s32.totalorder %s18, 0
      %p101 = por %p99, %p100
      %p102 = scmp.ne.s32.totalorder %s94, %s96
      %p103 = scmp.eq.s32.totalorder %s23, 1
      %p104 = por %p102, %p103
      %p105 = scmp.ne.s32.totalorder %s96, %s97
      %p106 = scmp.eq.s32.totalorder %s23, 0
      %p107 = por %p105, %p106
      %p108 = scmp.ne.s32.totalorder %s96, %s97
      %p109 = scmp.eq.s32.totalorder %s24, 1
      %p110 = por %p108, %p109
      %p112 = scmp.ne.s32.totalorder %s97, %s111
      %p113 = scmp.eq.s32.totalorder %s24, 0
      %p114 = por %p112, %p113
      %s116 = sadd.s32 %s115, 1
      %p119 = scmp.eq.s32.totalorder %s18, 1
      %p120 = scmp.ne.s32.totalorder %s115, %s117
      %p121 = scmp.eq.s32.totalorder %s18, 0
      %p122 = por %p120, %p121
      %p123 = scmp.ne.s32.totalorder %s115, %s117
      %p124 = scmp.eq.s32.totalorder %s23, 1
      %p125 = por %p123, %p124
      %p126 = scmp.ne.s32.totalorder %s117, %s118
      %p127 = scmp.eq.s32.totalorder %s23, 0
      %p128 = por %p126, %p127
      %p129 = scmp.ne.s32.totalorder %s117, %s118
      %p130 = scmp.eq.s32.totalorder %s24, 1
      %p131 = por %p129, %p130
      %p133 = scmp.ne.s32.totalorder %s118, %s132
      %p134 = scmp.eq.s32.totalorder %s24, 0
      %p135 = por %p133, %p134
      %s137 = sadd.s32 %s136, 1
      %p140 = scmp.eq.s32.totalorder %s18, 1
      %p141 = scmp.ne.s32.totalorder %s136, %s138
      %p142 = scmp.eq.s32.totalorder %s18, 0
      %p143 = por %p141, %p142
      %p144 = scmp.ne.s32.totalorder %s136, %s138
      %p145 = scmp.eq.s32.totalorder %s23, 1
      %p146 = por %p144, %p145
      %p147 = scmp.ne.s32.totalorder %s138, %s139
      %p148 = scmp.eq.s32.totalorder %s23, 0
      %p149 = por %p147, %p148
      %p150 = scmp.ne.s32.totalorder %s138, %s139
      %p151 = scmp.eq.s32.totalorder %s24, 1
      %p152 = por %p150, %p151
      %p154 = scmp.ne.s32.totalorder %s139, %s153
      %p155 = scmp.eq.s32.totalorder %s24, 0
      %p156 = por %p154, %p155
      %s158 = sadd.s32 %s157, 1
      %p161 = scmp.eq.s32.totalorder %s18, 1
      %p162 = scmp.ne.s32.totalorder %s157, %s159
      %p163 = scmp.eq.s32.totalorder %s18, 0
      %p164 = por %p162, %p163
      %p165 = scmp.ne.s32.totalorder %s157, %s159
      %p166 = scmp.eq.s32.totalorder %s23, 1
      %p167 = por %p165, %p166
      %p168 = scmp.ne.s32.totalorder %s159, %s160
      %p169 = scmp.eq.s32.totalorder %s23, 0
      %p170 = por %p168, %p169
      %p171 = scmp.ne.s32.totalorder %s159, %s160
      %p172 = scmp.eq.s32.totalorder %s24, 1
      %p173 = por %p171, %p172
      %p175 = scmp.ne.s32.totalorder %s160, %s174
      %p176 = scmp.eq.s32.totalorder %s24, 0
      %p177 = por %p175, %p176
      %s179 = sadd.s32 %s178, 1
      %p182 = scmp.eq.s32.totalorder %s18, 1
      %p183 = scmp.ne.s32.totalorder %s178, %s180
      %p184 = scmp.eq.s32.totalorder %s18, 0
      %p185 = por %p183, %p184
      %p186 = scmp.ne.s32.totalorder %s178, %s180
      %p187 = scmp.eq.s32.totalorder %s23, 1
      %p188 = por %p186, %p187
      %p189 = scmp.ne.s32.totalorder %s180, %s181
      %p190 = scmp.eq.s32.totalorder %s23, 0
      %p191 = por %p189, %p190
      %p192 = scmp.ne.s32.totalorder %s180, %s181
      %p193 = scmp.eq.s32.totalorder %s24, 1
      %p194 = por %p192, %p193
      %p196 = scmp.ne.s32.totalorder %s181, %s195
      %p197 = scmp.eq.s32.totalorder %s24, 0
      %p198 = por %p196, %p197
      %s200 = sadd.s32 %s199, 1
      %p203 = scmp.eq.s32.totalorder %s18, 1
      %p204 = scmp.ne.s32.totalorder %s199, %s201
      %p205 = scmp.eq.s32.totalorder %s18, 0
      %p206 = por %p204, %p205
      %p207 = scmp.ne.s32.totalorder %s199, %s201
      %p208 = scmp.eq.s32.totalorder %s23, 1
      %p209 = por %p207, %p208
      %p210 = scmp.ne.s32.totalorder %s201, %s202
      %p211 = scmp.eq.s32.totalorder %s23, 0
      %p212 = por %p210, %p211
      %p213 = scmp.ne.s32.totalorder %s201, %s202
      %p214 = scmp.eq.s32.totalorder %s24, 1
      %p215 = por %p213, %p214
      %p217 = scmp.ne.s32.totalorder %s202, %s216
      %p218 = scmp.eq.s32.totalorder %s24, 0
      %p219 = por %p217, %p218
      %s220 = ssub.s32 %s18, %s25
      %p221 = scmp.eq.s32.totalorder %s220, 0
      %s223 = sadd.s32 %s222, 1
      %s224 = scalar_select %p221, %s222, %s223
      %p227 = pneg %p221
      %p228 = scmp.eq.s32.totalorder %s18, 1
      %p229 = por %p227, %p228
      %p230 = scmp.ne.s32.totalorder %s222, %s225
      %p231 = scmp.eq.s32.totalorder %s18, 0
      %p232 = por %p230, %p231
      %p233 = scmp.ne.s32.totalorder %s222, %s225
      %p234 = scmp.eq.s32.totalorder %s23, 1
      %p235 = por %p233, %p234
      %p236 = scmp.ne.s32.totalorder %s225, %s226
      %p237 = scmp.eq.s32.totalorder %s23, 0
      %p238 = por %p236, %p237
      %p239 = scmp.ne.s32.totalorder %s225, %s226
      %p240 = scmp.eq.s32.totalorder %s24, 1
      %p241 = por %p239, %p240
      %p243 = scmp.ne.s32.totalorder %s226, %s242
      %p244 = scmp.eq.s32.totalorder %s24, 0
      %p245 = por %p243, %p244
      %p246 = scmp.le.s32.totalorder 1, %s18
      %p247 = scmp.lt.s32.totalorder %s18, 3
      %p248 = pnand %p246, %p247
      %p249 = pneg %p248
      // Predicated region
      $region9: #{tpu_custom_call.1} parent=5 // pred_check
        _
      $region10: #{tpu_custom_call.1} parent=5 // pred_check_branch
        %251 = sbr.rel (%p248) target = $region12
      $region11: #{tpu_custom_call.1} parent=5 // pred_region
        %s252 = ssub.s32 %s18, 1
        // Predicated region
        $region13: #{tpu_custom_call.1} parent=11 // pred_check
          %p253 = pneg %p65
        $region14: #{tpu_custom_call.1} parent=11 // pred_check_branch
          %255 = sbr.rel (%p253) target = $region16
        $region15: #{tpu_custom_call.1} parent=11 // pred_region
          _
        $region16: #{tpu_custom_call.1} parent=11 // pred_fallthru
          _
        // Predicated region
        $region17: #{tpu_custom_call.1} parent=11 // pred_check
          %p256 = pneg %p86
        $region18: #{tpu_custom_call.1} parent=11 // pred_check_branch
          %258 = sbr.rel (%p256) target = $region20
        $region19: #{tpu_custom_call.1} parent=11 // pred_region
          _
        $region20: #{tpu_custom_call.1} parent=11 // pred_fallthru
          _
        // Predicated region
        $region21: #{tpu_custom_call.1} parent=11 // pred_check
          %p259 = pneg %p107
        $region22: #{tpu_custom_call.1} parent=11 // pred_check_branch
          %261 = sbr.rel (%p259) target = $region24
        $region23: #{tpu_custom_call.1} parent=11 // pred_region
          _
        $region24: #{tpu_custom_call.1} parent=11 // pred_fallthru
          _
        // Predicated region
        $region25: #{tpu_custom_call.1} parent=11 // pred_check
          %p262 = pneg %p128
        $region26: #{tpu_custom_call.1} parent=11 // pred_check_branch
          %264 = sbr.rel (%p262) target = $region28
        $region27: #{tpu_custom_call.1} parent=11 // pred_region
          _
        $region28: #{tpu_custom_call.1} parent=11 // pred_fallthru
          _
        // Predicated region
        $region29: #{tpu_custom_call.1} parent=11 // pred_check
          %p265 = pneg %p149
        $region30: #{tpu_custom_call.1} parent=11 // pred_check_branch
          %267 = sbr.rel (%p265) target = $region32
        $region31: #{tpu_custom_call.1} parent=11 // pred_region
          _
        $region32: #{tpu_custom_call.1} parent=11 // pred_fallthru
          _
        // Predicated region
        $region33: #{tpu_custom_call.1} parent=11 // pred_check
          %p268 = pneg %p170
        $region34: #{tpu_custom_call.1} parent=11 // pred_check_branch
          %270 = sbr.rel (%p268) target = $region36
        $region35: #{tpu_custom_call.1} parent=11 // pred_region
          _
        $region36: #{tpu_custom_call.1} parent=11 // pred_fallthru
          _
        // Predicated region
        $region37: #{tpu_custom_call.1} parent=11 // pred_check
          %p271 = pneg %p191
        $region38: #{tpu_custom_call.1} parent=11 // pred_check_branch
          %273 = sbr.rel (%p271) target = $region40
        $region39: #{tpu_custom_call.1} parent=11 // pred_region
          _
        $region40: #{tpu_custom_call.1} parent=11 // pred_fallthru
          _
        // Predicated region
        $region41: #{tpu_custom_call.1} parent=11 // pred_check
          %p274 = pneg %p212
        $region42: #{tpu_custom_call.1} parent=11 // pred_check_branch
          %276 = sbr.rel (%p274) target = $region44
        $region43: #{tpu_custom_call.1} parent=11 // pred_region
          _
        $region44: #{tpu_custom_call.1} parent=11 // pred_fallthru
          _
      $region12: #{tpu_custom_call.1} parent=5 // pred_fallthru
        _
      %p277 = scmp.lt.s32.totalorder %s18, 2
      // Predicated region
      $region45: #{tpu_custom_call.1} parent=5 // pred_check
        %p278 = pneg %p277
      $region46: #{tpu_custom_call.1} parent=5 // pred_check_branch
        %280 = sbr.rel (%p278) target = $region48
      $region47: #{tpu_custom_call.1} parent=5 // pred_region
        // Predicated region
        $region49: #{tpu_custom_call.1} parent=47 // pred_check
          %p281 = pneg %p38
        $region50: #{tpu_custom_call.1} parent=47 // pred_check_branch
          %283 = sbr.rel (%p281) target = $region52
        $region51: #{tpu_custom_call.1} parent=47 // pred_region
          %p284 = scmp.lt.s32.totalorder %s18, 1
          %s285 = scalar_select %p284, %s18, 1
          %s286 = smul.addr %s285, 8
          %s287 = scalar_lea.vmem %s0, %s286
        $region52: #{tpu_custom_call.1} parent=47 // pred_fallthru
          _
      $region48: #{tpu_custom_call.1} parent=5 // pred_fallthru
        _
      %p288 = scmp.le.s32.totalorder 1, %s18
      %p289 = scmp.lt.s32.totalorder %s18, 3
      %p290 = pnand %p288, %p289
      %p291 = pneg %p290
      // Predicated region
      $region53: #{tpu_custom_call.1} parent=5 // pred_check
        _
      $region54: #{tpu_custom_call.1} parent=5 // pred_check_branch
        %293 = sbr.rel (%p290) target = $region56
      $region55: #{tpu_custom_call.1} parent=5 // pred_region
        %s294 = ssub.s32 %s18, 1
        %p295 = scmp.lt.s32.totalorder %s23, 1
        %s296 = scalar_select %p295, %s23, 1
        %s297 = smul.addr %s296, 8
        %s298 = scalar_lea.vmem %s0, %s297
        %p299 = pneg %p44
        %p300 = pneg %p41
        %p301 = pneg %p65
        %p302 = pneg %p62
        %p303 = pneg %p86
        %p304 = pneg %p83
        %p305 = pneg %p107
        %p306 = pneg %p104
        %p307 = pneg %p128
        %p308 = pneg %p125
        %p309 = pneg %p149
        %p310 = pneg %p146
        %p311 = pneg %p170
        %p312 = pneg %p167
        %p313 = pneg %p191
        %p314 = pneg %p188
        %p315 = pneg %p212
        %p316 = pneg %p209
        %p317 = pneg %p238
        %p318 = pneg %p235
        %s319 = sand.u32 %s225, 1
        %s320 = scalar_lea.sflag [#allocation3], %s319
        %s321 = sand.u32 %s225, 1
        %s322 = smul.addr %s321, 8
        %s323 = scalar_lea.vmem [#allocation2], %s322
        %p324 = scmp.lt.s32.totalorder %s23, 1
        %s325 = scalar_select %p324, %s23, 1
        %s326 = smul.addr %s325, 8
        %s327 = scalar_lea.vmem %s0, %s326
        %v328 = vld [vmem:[%s327] sm:$0xff]
        %v329 = vld [vmem:[%s1] sm:$0xff]
        %v330 = vld [vmem:[%s1 + $0x8] sm:$0xff]
        %v331 = vld [vmem:[%s1 + $0x10] sm:$0xff]
        %v332 = vld [vmem:[%s1 + $0x18] sm:$0xff]
        %v333 = vld [vmem:[%s1 + $0x20] sm:$0xff]
        %v334 = vld [vmem:[%s1 + $0x28] sm:$0xff]
        %v335 = vld [vmem:[%s1 + $0x30] sm:$0xff]
        %v336 = vld [vmem:[%s1 + $0x38] sm:$0xff]
        %v337 = vld [vmem:[%s2] sm:$0x1]
        %v339 = vperm.slane %v337, 0
        %vm341 = vcmask 523264
        %v343 = vsel %vm341, %v328, 0
        %345 = vmatpush.msra.mxu0 0.0
        %346 = vmatpush.msra.mxu0 0.0
        %347 = vmatpush.msra.mxu0 0.0
        %348 = vmatpush.msra.mxu0 0.0
        %349 = vmatpush.msra.mxu0 0.0
        %350 = vmatpush.msra.mxu0 0.0
        %351 = vmatpush.msra.mxu0 0.0
        %352 = vmatpush.msra.mxu0 0.0
        %v353 = vand.u32 %v336, 4294901760
        %354 = vmatpush.msra.mxu0 %v353
        %v355 = vand.u32 %v335, 4294901760
        %356 = vmatpush.msra.mxu0 %v355
        %v357 = vand.u32 %v334, 4294901760
        %358 = vmatpush.msra.mxu0 %v357
        %v359 = vand.u32 %v333, 4294901760
        %360 = vmatpush.msra.mxu0 %v359
        %v361 = vand.u32 %v332, 4294901760
        %362 = vmatpush.msra.mxu0 %v361
        %v363 = vand.u32 %v331, 4294901760
        %364 = vmatpush.msra.mxu0 %v363
        %v365 = vand.u32 %v330, 4294901760
        %366 = vmatpush.msra.mxu0 %v365
        %v367 = vand.u32 %v329, 4294901760
        %368 = vmatpush.msra.mxu0 %v367
        %v369 = vand.u32 %v343, 4294901760
        %v370 = vsub.f32 %v343, %v369
        %v371 = vand.u32 %v370, 4294901760
        %v372 = vsub.f32 %v370, %v371
        %v373 = vand.u32 %v372, 4294901760
        %374 = vmatmul.f32.gmra.mxu0 %v373
        %v375 = vpop.f32.mrf.mxu0
        %v376 = vadd.f32 %v339, %v375
        %377 = vdwg.mxu0
        %378 = vmatpush.msra.mxu0 0.0
        %379 = vmatpush.msra.mxu0 0.0
        %380 = vmatpush.msra.mxu0 0.0
        %381 = vmatpush.msra.mxu0 0.0
        %382 = vmatpush.msra.mxu0 0.0
        %383 = vmatpush.msra.mxu0 0.0
        %384 = vmatpush.msra.mxu0 0.0
        %385 = vmatpush.msra.mxu0 0.0
        %v386 = vand.u32 %v336, 4294901760
        %v387 = vsub.f32 %v336, %v386
        %v388 = vand.u32 %v387, 4294901760
        %v389 = vsub.f32 %v387, %v388
        %v390 = vand.u32 %v389, 4294901760
        %391 = vmatpush.msra.mxu0 %v390
        %v392 = vand.u32 %v335, 4294901760
        %v393 = vsub.f32 %v335, %v392
        %v394 = vand.u32 %v393, 4294901760
        %v395 = vsub.f32 %v393, %v394
        %v396 = vand.u32 %v395, 4294901760
        %397 = vmatpush.msra.mxu0 %v396
        %v398 = vand.u32 %v334, 4294901760
        %v399 = vsub.f32 %v334, %v398
        %v400 = vand.u32 %v399, 4294901760
        %v401 = vsub.f32 %v399, %v400
        %v402 = vand.u32 %v401, 4294901760
        %403 = vmatpush.msra.mxu0 %v402
        %v404 = vand.u32 %v333, 4294901760
        %v405 = vsub.f32 %v333, %v404
        %v406 = vand.u32 %v405, 4294901760
        %v407 = vsub.f32 %v405, %v406
        %v408 = vand.u32 %v407, 4294901760
        %409 = vmatpush.msra.mxu0 %v408
        %v410 = vand.u32 %v332, 4294901760
        %v411 = vsub.f32 %v332, %v410
        %v412 = vand.u32 %v411, 4294901760
        %v413 = vsub.f32 %v411, %v412
        %v414 = vand.u32 %v413, 4294901760
        %415 = vmatpush.msra.mxu0 %v414
        %v416 = vand.u32 %v331, 4294901760
        %v417 = vsub.f32 %v331, %v416
        %v418 = vand.u32 %v417, 4294901760
        %v419 = vsub.f32 %v417, %v418
        %v420 = vand.u32 %v419, 4294901760
        %421 = vmatpush.msra.mxu0 %v420
        %v422 = vand.u32 %v330, 4294901760
        %v423 = vsub.f32 %v330, %v422
        %v424 = vand.u32 %v423, 4294901760
        %v425 = vsub.f32 %v423, %v424
        %v426 = vand.u32 %v425, 4294901760
        %427 = vmatpush.msra.mxu0 %v426
        %v428 = vand.u32 %v329, 4294901760
        %v429 = vsub.f32 %v329, %v428
        %v430 = vand.u32 %v429, 4294901760
        %v431 = vsub.f32 %v429, %v430
        %v432 = vand.u32 %v431, 4294901760
        %433 = vmatpush.msra.mxu0 %v432
        %v434 = vand.u32 %v343, 4294901760
        %435 = vmatmul.f32.gmra.mxu0 %v434
        %v436 = vpop.f32.mrf.mxu0
        %v437 = vadd.f32 %v376, %v436
        %438 = vdwg.mxu0
        %439 = vmatpush.msra.mxu0 0.0
        %440 = vmatpush.msra.mxu0 0.0
        %441 = vmatpush.msra.mxu0 0.0
        %442 = vmatpush.msra.mxu0 0.0
        %443 = vmatpush.msra.mxu0 0.0
        %444 = vmatpush.msra.mxu0 0.0
        %445 = vmatpush.msra.mxu0 0.0
        %446 = vmatpush.msra.mxu0 0.0
        %v447 = vand.u32 %v336, 4294901760
        %v448 = vsub.f32 %v336, %v447
        %449 = vmatpush.msra.mxu0 %v448
        %v450 = vand.u32 %v335, 4294901760
        %v451 = vsub.f32 %v335, %v450
        %452 = vmatpush.msra.mxu0 %v451
        %v453 = vand.u32 %v334, 4294901760
        %v454 = vsub.f32 %v334, %v453
        %455 = vmatpush.msra.mxu0 %v454
        %v456 = vand.u32 %v333, 4294901760
        %v457 = vsub.f32 %v333, %v456
        %458 = vmatpush.msra.mxu0 %v457
        %v459 = vand.u32 %v332, 4294901760
        %v460 = vsub.f32 %v332, %v459
        %461 = vmatpush.msra.mxu0 %v460
        %v462 = vand.u32 %v331, 4294901760
        %v463 = vsub.f32 %v331, %v462
        %464 = vmatpush.msra.mxu0 %v463
        %v465 = vand.u32 %v330, 4294901760
        %v466 = vsub.f32 %v330, %v465
        %467 = vmatpush.msra.mxu0 %v466
        %v468 = vand.u32 %v329, 4294901760
        %v469 = vsub.f32 %v329, %v468
        %470 = vmatpush.msra.mxu0 %v469
        %v471 = vand.u32 %v343, 4294901760
        %v472 = vsub.f32 %v343, %v471
        %473 = vmatmul.f32.gmra.mxu0 %v472
        %v474 = vpop.f32.mrf.mxu0
        %v475 = vadd.f32 %v437, %v474
        %476 = vdwg.mxu0
        %477 = vmatpush.msra.mxu0 0.0
        %478 = vmatpush.msra.mxu0 0.0
        %479 = vmatpush.msra.mxu0 0.0
        %480 = vmatpush.msra.mxu0 0.0
        %481 = vmatpush.msra.mxu0 0.0
        %482 = vmatpush.msra.mxu0 0.0
        %483 = vmatpush.msra.mxu0 0.0
        %484 = vmatpush.msra.mxu0 0.0
        %v485 = vand.u32 %v336, 4294901760
        %486 = vmatpush.msra.mxu0 %v485
        %v487 = vand.u32 %v335, 4294901760
        %488 = vmatpush.msra.mxu0 %v487
        %v489 = vand.u32 %v334, 4294901760
        %490 = vmatpush.msra.mxu0 %v489
        %v491 = vand.u32 %v333, 4294901760
        %492 = vmatpush.msra.mxu0 %v491
        %v493 = vand.u32 %v332, 4294901760
        %494 = vmatpush.msra.mxu0 %v493
        %v495 = vand.u32 %v331, 4294901760
        %496 = vmatpush.msra.mxu0 %v495
        %v497 = vand.u32 %v330, 4294901760
        %498 = vmatpush.msra.mxu0 %v497
        %v499 = vand.u32 %v329, 4294901760
        %500 = vmatpush.msra.mxu0 %v499
        %v501 = vand.u32 %v343, 4294901760
        %v502 = vsub.f32 %v343, %v501
        %v503 = vand.u32 %v502, 4294901760
        %504 = vmatmul.f32.gmra.mxu0 %v503
        %v505 = vpop.f32.mrf.mxu0
        %v506 = vadd.f32 %v475, %v505
        %507 = vdwg.mxu0
        %508 = vmatpush.msra.mxu0 0.0
        %509 = vmatpush.msra.mxu0 0.0
        %510 = vmatpush.msra.mxu0 0.0
        %511 = vmatpush.msra.mxu0 0.0
        %512 = vmatpush.msra.mxu0 0.0
        %513 = vmatpush.msra.mxu0 0.0
        %514 = vmatpush.msra.mxu0 0.0
        %515 = vmatpush.msra.mxu0 0.0
        %v516 = vand.u32 %v336, 4294901760
        %v517 = vsub.f32 %v336, %v516
        %v518 = vand.u32 %v517, 4294901760
        %519 = vmatpush.msra.mxu0 %v518
        %v520 = vand.u32 %v335, 4294901760
        %v521 = vsub.f32 %v335, %v520
        %v522 = vand.u32 %v521, 4294901760
        %523 = vmatpush.msra.mxu0 %v522
        %v524 = vand.u32 %v334, 4294901760
        %v525 = vsub.f32 %v334, %v524
        %v526 = vand.u32 %v525, 4294901760
        %527 = vmatpush.msra.mxu0 %v526
        %v528 = vand.u32 %v333, 4294901760
        %v529 = vsub.f32 %v333, %v528
        %v530 = vand.u32 %v529, 4294901760
        %531 = vmatpush.msra.mxu0 %v530
        %v532 = vand.u32 %v332, 4294901760
        %v533 = vsub.f32 %v332, %v532
        %v534 = vand.u32 %v533, 4294901760
        %535 = vmatpush.msra.mxu0 %v534
        %v536 = vand.u32 %v331, 4294901760
        %v537 = vsub.f32 %v331, %v536
        %v538 = vand.u32 %v537, 4294901760
        %539 = vmatpush.msra.mxu0 %v538
        %v540 = vand.u32 %v330, 4294901760
        %v541 = vsub.f32 %v330, %v540
        %v542 = vand.u32 %v541, 4294901760
        %543 = vmatpush.msra.mxu0 %v542
        %v544 = vand.u32 %v329, 4294901760
        %v545 = vsub.f32 %v329, %v544
        %v546 = vand.u32 %v545, 4294901760
        %547 = vmatpush.msra.mxu0 %v546
        %v548 = vand.u32 %v343, 4294901760
        %549 = vmatmul.f32.gmra.mxu0 %v548
        %v550 = vpop.f32.mrf.mxu0
        %v551 = vadd.f32 %v506, %v550
        %552 = vdwg.mxu0
        %553 = vmatpush.msra.mxu0 0.0
        %554 = vmatpush.msra.mxu0 0.0
        %555 = vmatpush.msra.mxu0 0.0
        %556 = vmatpush.msra.mxu0 0.0
        %557 = vmatpush.msra.mxu0 0.0
        %558 = vmatpush.msra.mxu0 0.0
        %559 = vmatpush.msra.mxu0 0.0
        %560 = vmatpush.msra.mxu0 0.0
        %v561 = vand.u32 %v336, 4294901760
        %562 = vmatpush.msra.mxu0 %v561
        %v563 = vand.u32 %v335, 4294901760
        %564 = vmatpush.msra.mxu0 %v563
        %v565 = vand.u32 %v334, 4294901760
        %566 = vmatpush.msra.mxu0 %v565
        %v567 = vand.u32 %v333, 4294901760
        %568 = vmatpush.msra.mxu0 %v567
        %v569 = vand.u32 %v332, 4294901760
        %570 = vmatpush.msra.mxu0 %v569
        %v571 = vand.u32 %v331, 4294901760
        %572 = vmatpush.msra.mxu0 %v571
        %v573 = vand.u32 %v330, 4294901760
        %574 = vmatpush.msra.mxu0 %v573
        %v575 = vand.u32 %v329, 4294901760
        %576 = vmatpush.msra.mxu0 %v575
        %v577 = vand.u32 %v343, 4294901760
        %578 = vmatmul.f32.gmra.mxu0 %v577
        %v579 = vpop.f32.mrf.mxu0
        %v580 = vadd.f32 %v551, %v579
        %581 = vdwg.mxu0
        %v582 = vmax.f32 %v580, 0.0
        %v583 = vld [vmem:[%s3] sm:$0xff]
        %v584 = vld [vmem:[%s3 + $0x8] sm:$0xff]
        %v585 = vld [vmem:[%s3 + $0x10] sm:$0xff]
        %v586 = vld [vmem:[%s3 + $0x18] sm:$0xff]
        %v587 = vld [vmem:[%s3 + $0x20] sm:$0xff]
        %v588 = vld [vmem:[%s3 + $0x28] sm:$0xff]
        %v589 = vld [vmem:[%s3 + $0x30] sm:$0xff]
        %v590 = vld [vmem:[%s3 + $0x38] sm:$0xff]
        %v591 = vld [vmem:[%s4] sm:$0x3]
        %v593 = vperm.slane %v591, 0
        %v594 = vperm.slane %v591, 1
        %vm597 = vcmask 261120
        %v599 = vsel %vm597, %v582, 0
        %601 = vmatpush.msra.mxu0 0.0
        %602 = vmatpush.msra.mxu0 0.0
        %603 = vmatpush.msra.mxu0 0.0
        %604 = vmatpush.msra.mxu0 0.0
        %605 = vmatpush.msra.mxu0 0.0
        %606 = vmatpush.msra.mxu0 0.0
        %607 = vmatpush.msra.mxu0 0.0
        %608 = vmatpush.msra.mxu0 0.0
        %609 = vmatpush.msra.mxu0 0.0
        %610 = vmatpush.msra.mxu0 0.0
        %611 = vmatpush.msra.mxu0 0.0
        %612 = vmatpush.msra.mxu0 0.0
        %v613 = vand.u32 %v589, 4294901760
        %614 = vmatpush.msra.mxu0 %v613
        %v615 = vand.u32 %v587, 4294901760
        %616 = vmatpush.msra.mxu0 %v615
        %v617 = vand.u32 %v585, 4294901760
        %618 = vmatpush.msra.mxu0 %v617
        %v619 = vand.u32 %v583, 4294901760
        %620 = vmatpush.msra.mxu0 %v619
        %v621 = vand.u32 %v599, 4294901760
        %v622 = vsub.f32 %v599, %v621
        %v623 = vand.u32 %v622, 4294901760
        %v624 = vsub.f32 %v622, %v623
        %v625 = vand.u32 %v624, 4294901760
        %626 = vmatmul.f32.gmra.mxu0 %v625
        %v627 = vpop.f32.mrf.mxu0
        %v628 = vadd.f32 %v593, %v627
        %629 = vdwg.mxu0
        %630 = vmatpush.msra.mxu0 0.0
        %631 = vmatpush.msra.mxu0 0.0
        %632 = vmatpush.msra.mxu0 0.0
        %633 = vmatpush.msra.mxu0 0.0
        %634 = vmatpush.msra.mxu0 0.0
        %635 = vmatpush.msra.mxu0 0.0
        %636 = vmatpush.msra.mxu0 0.0
        %637 = vmatpush.msra.mxu0 0.0
        %638 = vmatpush.msra.mxu0 0.0
        %639 = vmatpush.msra.mxu0 0.0
        %640 = vmatpush.msra.mxu0 0.0
        %641 = vmatpush.msra.mxu0 0.0
        %v642 = vand.u32 %v589, 4294901760
        %v643 = vsub.f32 %v589, %v642
        %v644 = vand.u32 %v643, 4294901760
        %v645 = vsub.f32 %v643, %v644
        %v646 = vand.u32 %v645, 4294901760
        %647 = vmatpush.msra.mxu0 %v646
        %v648 = vand.u32 %v587, 4294901760
        %v649 = vsub.f32 %v587, %v648
        %v650 = vand.u32 %v649, 4294901760
        %v651 = vsub.f32 %v649, %v650
        %v652 = vand.u32 %v651, 4294901760
        %653 = vmatpush.msra.mxu0 %v652
        %v654 = vand.u32 %v585, 4294901760
        %v655 = vsub.f32 %v585, %v654
        %v656 = vand.u32 %v655, 4294901760
        %v657 = vsub.f32 %v655, %v656
        %v658 = vand.u32 %v657, 4294901760
        %659 = vmatpush.msra.mxu0 %v658
        %v660 = vand.u32 %v583, 4294901760
        %v661 = vsub.f32 %v583, %v660
        %v662 = vand.u32 %v661, 4294901760
        %v663 = vsub.f32 %v661, %v662
        %v664 = vand.u32 %v663, 4294901760
        %665 = vmatpush.msra.mxu0 %v664
        %v666 = vand.u32 %v599, 4294901760
        %667 = vmatmul.f32.gmra.mxu0 %v666
        %v668 = vpop.f32.mrf.mxu0
        %v669 = vadd.f32 %v628, %v668
        %670 = vdwg.mxu0
        %671 = vmatpush.msra.mxu0 0.0
        %672 = vmatpush.msra.mxu0 0.0
        %673 = vmatpush.msra.mxu0 0.0
        %674 = vmatpush.msra.mxu0 0.0
        %675 = vmatpush.msra.mxu0 0.0
        %676 = vmatpush.msra.mxu0 0.0
        %677 = vmatpush.msra.mxu0 0.0
        %678 = vmatpush.msra.mxu0 0.0
        %679 = vmatpush.msra.mxu0 0.0
        %680 = vmatpush.msra.mxu0 0.0
        %681 = vmatpush.msra.mxu0 0.0
        %682 = vmatpush.msra.mxu0 0.0
        %v683 = vand.u32 %v589, 4294901760
        %v684 = vsub.f32 %v589, %v683
        %685 = vmatpush.msra.mxu0 %v684
        %v686 = vand.u32 %v587, 4294901760
        %v687 = vsub.f32 %v587, %v686
        %688 = vmatpush.msra.mxu0 %v687
        %v689 = vand.u32 %v585, 4294901760
        %v690 = vsub.f32 %v585, %v689
        %691 = vmatpush.msra.mxu0 %v690
        %v692 = vand.u32 %v583, 4294901760
        %v693 = vsub.f32 %v583, %v692
        %694 = vmatpush.msra.mxu0 %v693
        %v695 = vand.u32 %v599, 4294901760
        %v696 = vsub.f32 %v599, %v695
        %697 = vmatmul.f32.gmra.mxu0 %v696
        %v698 = vpop.f32.mrf.mxu0
        %v699 = vadd.f32 %v669, %v698
        %700 = vdwg.mxu0
        %701 = vmatpush.msra.mxu0 0.0
        %702 = vmatpush.msra.mxu0 0.0
        %703 = vmatpush.msra.mxu0 0.0
        %704 = vmatpush.msra.mxu0 0.0
        %705 = vmatpush.msra.mxu0 0.0
        %706 = vmatpush.msra.mxu0 0.0
        %707 = vmatpush.msra.mxu0 0.0
        %708 = vmatpush.msra.mxu0 0.0
        %709 = vmatpush.msra.mxu0 0.0
        %710 = vmatpush.msra.mxu0 0.0
        %711 = vmatpush.msra.mxu0 0.0
        %712 = vmatpush.msra.mxu0 0.0
        %v713 = vand.u32 %v589, 4294901760
        %714 = vmatpush.msra.mxu0 %v713
        %v715 = vand.u32 %v587, 4294901760
        %716 = vmatpush.msra.mxu0 %v715
        %v717 = vand.u32 %v585, 4294901760
        %718 = vmatpush.msra.mxu0 %v717
        %v719 = vand.u32 %v583, 4294901760
        %720 = vmatpush.msra.mxu0 %v719
        %v721 = vand.u32 %v599, 4294901760
        %v722 = vsub.f32 %v599, %v721
        %v723 = vand.u32 %v722, 4294901760
        %724 = vmatmul.f32.gmra.mxu0 %v723
        %v725 = vpop.f32.mrf.mxu0
        %v726 = vadd.f32 %v699, %v725
        %727 = vdwg.mxu0
        %728 = vmatpush.msra.mxu0 0.0
        %729 = vmatpush.msra.mxu0 0.0
        %730 = vmatpush.msra.mxu0 0.0
        %731 = vmatpush.msra.mxu0 0.0
        %732 = vmatpush.msra.mxu0 0.0
        %733 = vmatpush.msra.mxu0 0.0
        %734 = vmatpush.msra.mxu0 0.0
        %735 = vmatpush.msra.mxu0 0.0
        %736 = vmatpush.msra.mxu0 0.0
        %737 = vmatpush.msra.mxu0 0.0
        %738 = vmatpush.msra.mxu0 0.0
        %739 = vmatpush.msra.mxu0 0.0
        %v740 = vand.u32 %v589, 4294901760
        %v741 = vsub.f32 %v589, %v740
        %v742 = vand.u32 %v741, 4294901760
        %743 = vmatpush.msra.mxu0 %v742
        %v744 = vand.u32 %v587, 4294901760
        %v745 = vsub.f32 %v587, %v744
        %v746 = vand.u32 %v745, 4294901760
        %747 = vmatpush.msra.mxu0 %v746
        %v748 = vand.u32 %v585, 4294901760
        %v749 = vsub.f32 %v585, %v748
        %v750 = vand.u32 %v749, 4294901760
        %751 = vmatpush.msra.mxu0 %v750
        %v752 = vand.u32 %v583, 4294901760
        %v753 = vsub.f32 %v583, %v752
        %v754 = vand.u32 %v753, 4294901760
        %755 = vmatpush.msra.mxu0 %v754
        %v756 = vand.u32 %v599, 4294901760
        %757 = vmatmul.f32.gmra.mxu0 %v756
        %v758 = vpop.f32.mrf.mxu0
        %v759 = vadd.f32 %v726, %v758
        %760 = vdwg.mxu0
        %761 = vmatpush.msra.mxu0 0.0
        %762 = vmatpush.msra.mxu0 0.0
        %763 = vmatpush.msra.mxu0 0.0
        %764 = vmatpush.msra.mxu0 0.0
        %765 = vmatpush.msra.mxu0 0.0
        %766 = vmatpush.msra.mxu0 0.0
        %767 = vmatpush.msra.mxu0 0.0
        %768 = vmatpush.msra.mxu0 0.0
        %769 = vmatpush.msra.mxu0 0.0
        %770 = vmatpush.msra.mxu0 0.0
        %771 = vmatpush.msra.mxu0 0.0
        %772 = vmatpush.msra.mxu0 0.0
        %v773 = vand.u32 %v589, 4294901760
        %774 = vmatpush.msra.mxu0 %v773
        %v775 = vand.u32 %v587, 4294901760
        %776 = vmatpush.msra.mxu0 %v775
        %v777 = vand.u32 %v585, 4294901760
        %778 = vmatpush.msra.mxu0 %v777
        %v779 = vand.u32 %v583, 4294901760
        %780 = vmatpush.msra.mxu0 %v779
        %v781 = vand.u32 %v599, 4294901760
        %782 = vmatmul.f32.gmra.mxu0 %v781
        %v783 = vpop.f32.mrf.mxu0
        %v784 = vadd.f32 %v759, %v783
        %785 = vdwg.mxu0
        %786 = vmatpush.msra.mxu0 0.0
        %787 = vmatpush.msra.mxu0 0.0
        %788 = vmatpush.msra.mxu0 0.0
        %789 = vmatpush.msra.mxu0 0.0
        %790 = vmatpush.msra.mxu0 0.0
        %791 = vmatpush.msra.mxu0 0.0
        %792 = vmatpush.msra.mxu0 0.0
        %793 = vmatpush.msra.mxu0 0.0
        %794 = vmatpush.msra.mxu0 0.0
        %795 = vmatpush.msra.mxu0 0.0
        %796 = vmatpush.msra.mxu0 0.0
        %797 = vmatpush.msra.mxu0 0.0
        %v798 = vand.u32 %v590, 4294901760
        %799 = vmatpush.msra.mxu0 %v798
        %v800 = vand.u32 %v588, 4294901760
        %801 = vmatpush.msra.mxu0 %v800
        %v802 = vand.u32 %v586, 4294901760
        %803 = vmatpush.msra.mxu0 %v802
        %v804 = vand.u32 %v584, 4294901760
        %805 = vmatpush.msra.mxu0 %v804
        %v806 = vand.u32 %v599, 4294901760
        %v807 = vsub.f32 %v599, %v806
        %v808 = vand.u32 %v807, 4294901760
        %v809 = vsub.f32 %v807, %v808
        %v810 = vand.u32 %v809, 4294901760
        %811 = vmatmul.f32.gmra.mxu0 %v810
        %v812 = vpop.f32.mrf.mxu0
        %v813 = vadd.f32 %v594, %v812
        %814 = vdwg.mxu0
        %815 = vmatpush.msra.mxu0 0.0
        %816 = vmatpush.msra.mxu0 0.0
        %817 = vmatpush.msra.mxu0 0.0
        %818 = vmatpush.msra.mxu0 0.0
        %819 = vmatpush.msra.mxu0 0.0
        %820 = vmatpush.msra.mxu0 0.0
        %821 = vmatpush.msra.mxu0 0.0
        %822 = vmatpush.msra.mxu0 0.0
        %823 = vmatpush.msra.mxu0 0.0
        %824 = vmatpush.msra.mxu0 0.0
        %825 = vmatpush.msra.mxu0 0.0
        %826 = vmatpush.msra.mxu0 0.0
        %v827 = vand.u32 %v590, 4294901760
        %v828 = vsub.f32 %v590, %v827
        %v829 = vand.u32 %v828, 4294901760
        %v830 = vsub.f32 %v828, %v829
        %v831 = vand.u32 %v830, 4294901760
        %832 = vmatpush.msra.mxu0 %v831
        %v833 = vand.u32 %v588, 4294901760
        %v834 = vsub.f32 %v588, %v833
        %v835 = vand.u32 %v834, 4294901760
        %v836 = vsub.f32 %v834, %v835
        %v837 = vand.u32 %v836, 4294901760
        %838 = vmatpush.msra.mxu0 %v837
        %v839 = vand.u32 %v586, 4294901760
        %v840 = vsub.f32 %v586, %v839
        %v841 = vand.u32 %v840, 4294901760
        %v842 = vsub.f32 %v840, %v841
        %v843 = vand.u32 %v842, 4294901760
        %844 = vmatpush.msra.mxu0 %v843
        %v845 = vand.u32 %v584, 4294901760
        %v846 = vsub.f32 %v584, %v845
        %v847 = vand.u32 %v846, 4294901760
        %v848 = vsub.f32 %v846, %v847
        %v849 = vand.u32 %v848, 4294901760
        %850 = vmatpush.msra.mxu0 %v849
        %v851 = vand.u32 %v599, 4294901760
        %852 = vmatmul.f32.gmra.mxu0 %v851
        %v853 = vpop.f32.mrf.mxu0
        %v854 = vadd.f32 %v813, %v853
        %855 = vdwg.mxu0
        %856 = vmatpush.msra.mxu0 0.0
        %857 = vmatpush.msra.mxu0 0.0
        %858 = vmatpush.msra.mxu0 0.0
        %859 = vmatpush.msra.mxu0 0.0
        %860 = vmatpush.msra.mxu0 0.0
        %861 = vmatpush.msra.mxu0 0.0
        %862 = vmatpush.msra.mxu0 0.0
        %863 = vmatpush.msra.mxu0 0.0
        %864 = vmatpush.msra.mxu0 0.0
        %865 = vmatpush.msra.mxu0 0.0
        %866 = vmatpush.msra.mxu0 0.0
        %867 = vmatpush.msra.mxu0 0.0
        %v868 = vand.u32 %v590, 4294901760
        %v869 = vsub.f32 %v590, %v868
        %870 = vmatpush.msra.mxu0 %v869
        %v871 = vand.u32 %v588, 4294901760
        %v872 = vsub.f32 %v588, %v871
        %873 = vmatpush.msra.mxu0 %v872
        %v874 = vand.u32 %v586, 4294901760
        %v875 = vsub.f32 %v586, %v874
        %876 = vmatpush.msra.mxu0 %v875
        %v877 = vand.u32 %v584, 4294901760
        %v878 = vsub.f32 %v584, %v877
        %879 = vmatpush.msra.mxu0 %v878
        %v880 = vand.u32 %v599, 4294901760
        %v881 = vsub.f32 %v599, %v880
        %882 = vmatmul.f32.gmra.mxu0 %v881
        %v883 = vpop.f32.mrf.mxu0
        %v884 = vadd.f32 %v854, %v883
        %885 = vdwg.mxu0
        %886 = vmatpush.msra.mxu0 0.0
        %887 = vmatpush.msra.mxu0 0.0
        %888 = vmatpush.msra.mxu0 0.0
        %889 = vmatpush.msra.mxu0 0.0
        %890 = vmatpush.msra.mxu0 0.0
        %891 = vmatpush.msra.mxu0 0.0
        %892 = vmatpush.msra.mxu0 0.0
        %893 = vmatpush.msra.mxu0 0.0
        %894 = vmatpush.msra.mxu0 0.0
        %895 = vmatpush.msra.mxu0 0.0
        %896 = vmatpush.msra.mxu0 0.0
        %897 = vmatpush.msra.mxu0 0.0
        %v898 = vand.u32 %v590, 4294901760
        %899 = vmatpush.msra.mxu0 %v898
        %v900 = vand.u32 %v588, 4294901760
        %901 = vmatpush.msra.mxu0 %v900
        %v902 = vand.u32 %v586, 4294901760
        %903 = vmatpush.msra.mxu0 %v902
        %v904 = vand.u32 %v584, 4294901760
        %905 = vmatpush.msra.mxu0 %v904
        %v906 = vand.u32 %v599, 4294901760
        %v907 = vsub.f32 %v599, %v906
        %v908 = vand.u32 %v907, 4294901760
        %909 = vmatmul.f32.gmra.mxu0 %v908
        %v910 = vpop.f32.mrf.mxu0
        %v911 = vadd.f32 %v884, %v910
        %912 = vdwg.mxu0
        %913 = vmatpush.msra.mxu0 0.0
        %914 = vmatpush.msra.mxu0 0.0
        %915 = vmatpush.msra.mxu0 0.0
        %916 = vmatpush.msra.mxu0 0.0
        %917 = vmatpush.msra.mxu0 0.0
        %918 = vmatpush.msra.mxu0 0.0
        %919 = vmatpush.msra.mxu0 0.0
        %920 = vmatpush.msra.mxu0 0.0
        %921 = vmatpush.msra.mxu0 0.0
        %922 = vmatpush.msra.mxu0 0.0
        %923 = vmatpush.msra.mxu0 0.0
        %924 = vmatpush.msra.mxu0 0.0
        %v925 = vand.u32 %v590, 4294901760
        %v926 = vsub.f32 %v590, %v925
        %v927 = vand.u32 %v926, 4294901760
        %928 = vmatpush.msra.mxu0 %v927
        %v929 = vand.u32 %v588, 4294901760
        %v930 = vsub.f32 %v588, %v929
        %v931 = vand.u32 %v930, 4294901760
        %932 = vmatpush.msra.mxu0 %v931
        %v933 = vand.u32 %v586, 4294901760
        %v934 = vsub.f32 %v586, %v933
        %v935 = vand.u32 %v934, 4294901760
        %936 = vmatpush.msra.mxu0 %v935
        %v937 = vand.u32 %v584, 4294901760
        %v938 = vsub.f32 %v584, %v937
        %v939 = vand.u32 %v938, 4294901760
        %940 = vmatpush.msra.mxu0 %v939
        %v941 = vand.u32 %v599, 4294901760
        %942 = vmatmul.f32.gmra.mxu0 %v941
        %v943 = vpop.f32.mrf.mxu0
        %v944 = vadd.f32 %v911, %v943
        %945 = vdwg.mxu0
        %946 = vmatpush.msra.mxu0 0.0
        %947 = vmatpush.msra.mxu0 0.0
        %948 = vmatpush.msra.mxu0 0.0
        %949 = vmatpush.msra.mxu0 0.0
        %950 = vmatpush.msra.mxu0 0.0
        %951 = vmatpush.msra.mxu0 0.0
        %952 = vmatpush.msra.mxu0 0.0
        %953 = vmatpush.msra.mxu0 0.0
        %954 = vmatpush.msra.mxu0 0.0
        %955 = vmatpush.msra.mxu0 0.0
        %956 = vmatpush.msra.mxu0 0.0
        %957 = vmatpush.msra.mxu0 0.0
        %v958 = vand.u32 %v590, 4294901760
        %959 = vmatpush.msra.mxu0 %v958
        %v960 = vand.u32 %v588, 4294901760
        %961 = vmatpush.msra.mxu0 %v960
        %v962 = vand.u32 %v586, 4294901760
        %963 = vmatpush.msra.mxu0 %v962
        %v964 = vand.u32 %v584, 4294901760
        %965 = vmatpush.msra.mxu0 %v964
        %v966 = vand.u32 %v599, 4294901760
        %967 = vmatmul.f32.gmra.mxu0 %v966
        %v968 = vpop.f32.mrf.mxu0
        %v969 = vadd.f32 %v944, %v968
        %970 = vdwg.mxu0
        %v971 = vmax.f32 %v784, 0.0
        %v972 = vmax.f32 %v969, 0.0
        %v973 = vld [vmem:[%s5] sm:$0xff]
        %v974 = vld [vmem:[%s5 + $0x8] sm:$0xff]
        %v975 = vld [vmem:[%s5 + $0x10] sm:$0xff]
        %v976 = vld [vmem:[%s5 + $0x18] sm:$0xff]
        %v977 = vld [vmem:[%s5 + $0x20] sm:$0xff]
        %v978 = vld [vmem:[%s5 + $0x28] sm:$0xff]
        %v979 = vld [vmem:[%s5 + $0x30] sm:$0xff]
        %v980 = vld [vmem:[%s5 + $0x38] sm:$0xff]
        %v981 = vld [vmem:[%s5 + $0x40] sm:$0xff]
        %v982 = vld [vmem:[%s5 + $0x48] sm:$0xff]
        %v983 = vld [vmem:[%s5 + $0x50] sm:$0xff]
        %v984 = vld [vmem:[%s5 + $0x58] sm:$0xff]
        %v985 = vld [vmem:[%s5 + $0x60] sm:$0xff]
        %v986 = vld [vmem:[%s5 + $0x68] sm:$0xff]
        %v987 = vld [vmem:[%s5 + $0x70] sm:$0xff]
        %v988 = vld [vmem:[%s5 + $0x78] sm:$0xff]
        %v989 = vld [vmem:[%s5 + $0x80] sm:$0xff]
        %v990 = vld [vmem:[%s5 + $0x88] sm:$0xff]
        %v991 = vld [vmem:[%s5 + $0x90] sm:$0xff]
        %v992 = vld [vmem:[%s5 + $0x98] sm:$0xff]
        %v993 = vld [vmem:[%s5 + $0xa0] sm:$0xff]
        %v994 = vld [vmem:[%s5 + $0xa8] sm:$0xff]
        %v995 = vld [vmem:[%s5 + $0xb0] sm:$0xff]
        %v996 = vld [vmem:[%s5 + $0xb8] sm:$0xff]
        %v997 = vld [vmem:[%s5 + $0xc0] sm:$0xff]
        %v998 = vld [vmem:[%s5 + $0xc8] sm:$0xff]
        %v999 = vld [vmem:[%s5 + $0xd0] sm:$0xff]
        %v1000 = vld [vmem:[%s5 + $0xd8] sm:$0xff]
        %v1001 = vld [vmem:[%s5 + $0xe0] sm:$0xff]
        %v1002 = vld [vmem:[%s5 + $0xe8] sm:$0xff]
        %v1003 = vld [vmem:[%s5 + $0xf0] sm:$0xff]
        %v1004 = vld [vmem:[%s5 + $0xf8] sm:$0xff]
        %v1005 = vld [vmem:[%s6] sm:$0x1]
        %v1007 = vperm.slane %v1005, 0
        %v1009 = vand.u32 %v988, 4294901760
        %1010 = vmatpush.msra.mxu0 %v1009
        %v1011 = vand.u32 %v987, 4294901760
        %1012 = vmatpush.msra.mxu0 %v1011
        %v1013 = vand.u32 %v986, 4294901760
        %1014 = vmatpush.msra.mxu0 %v1013
        %v1015 = vand.u32 %v985, 4294901760
        %1016 = vmatpush.msra.mxu0 %v1015
        %v1017 = vand.u32 %v984, 4294901760
        %1018 = vmatpush.msra.mxu0 %v1017
        %v1019 = vand.u32 %v983, 4294901760
        %1020 = vmatpush.msra.mxu0 %v1019
        %v1021 = vand.u32 %v982, 4294901760
        %1022 = vmatpush.msra.mxu0 %v1021
        %v1023 = vand.u32 %v981, 4294901760
        %1024 = vmatpush.msra.mxu0 %v1023
        %v1025 = vand.u32 %v980, 4294901760
        %1026 = vmatpush.msra.mxu0 %v1025
        %v1027 = vand.u32 %v979, 4294901760
        %1028 = vmatpush.msra.mxu0 %v1027
        %v1029 = vand.u32 %v978, 4294901760
        %1030 = vmatpush.msra.mxu0 %v1029
        %v1031 = vand.u32 %v977, 4294901760
        %1032 = vmatpush.msra.mxu0 %v1031
        %v1033 = vand.u32 %v976, 4294901760
        %1034 = vmatpush.msra.mxu0 %v1033
        %v1035 = vand.u32 %v975, 4294901760
        %1036 = vmatpush.msra.mxu0 %v1035
        %v1037 = vand.u32 %v974, 4294901760
        %1038 = vmatpush.msra.mxu0 %v1037
        %v1039 = vand.u32 %v973, 4294901760
        %1040 = vmatpush.msra.mxu0 %v1039
        %v1041 = vand.u32 %v971, 4294901760
        %v1042 = vsub.f32 %v971, %v1041
        %v1043 = vand.u32 %v1042, 4294901760
        %v1044 = vsub.f32 %v1042, %v1043
        %v1045 = vand.u32 %v1044, 4294901760
        %1046 = vmatmul.f32.gmra.mxu0 %v1045
        %v1047 = vpop.f32.mrf.mxu0
        %v1048 = vadd.f32 %v1007, %v1047
        %1049 = vdwg.mxu0
        %v1050 = vand.u32 %v988, 4294901760
        %v1051 = vsub.f32 %v988, %v1050
        %v1052 = vand.u32 %v1051, 4294901760
        %v1053 = vsub.f32 %v1051, %v1052
        %v1054 = vand.u32 %v1053, 4294901760
        %1055 = vmatpush.msra.mxu0 %v1054
        %v1056 = vand.u32 %v987, 4294901760
        %v1057 = vsub.f32 %v987, %v1056
        %v1058 = vand.u32 %v1057, 4294901760
        %v1059 = vsub.f32 %v1057, %v1058
        %v1060 = vand.u32 %v1059, 4294901760
        %1061 = vmatpush.msra.mxu0 %v1060
        %v1062 = vand.u32 %v986, 4294901760
        %v1063 = vsub.f32 %v986, %v1062
        %v1064 = vand.u32 %v1063, 4294901760
        %v1065 = vsub.f32 %v1063, %v1064
        %v1066 = vand.u32 %v1065, 4294901760
        %1067 = vmatpush.msra.mxu0 %v1066
        %v1068 = vand.u32 %v985, 4294901760
        %v1069 = vsub.f32 %v985, %v1068
        %v1070 = vand.u32 %v1069, 4294901760
        %v1071 = vsub.f32 %v1069, %v1070
        %v1072 = vand.u32 %v1071, 4294901760
        %1073 = vmatpush.msra.mxu0 %v1072
        %v1074 = vand.u32 %v984, 4294901760
        %v1075 = vsub.f32 %v984, %v1074
        %v1076 = vand.u32 %v1075, 4294901760
        %v1077 = vsub.f32 %v1075, %v1076
        %v1078 = vand.u32 %v1077, 4294901760
        %1079 = vmatpush.msra.mxu0 %v1078
        %v1080 = vand.u32 %v983, 4294901760
        %v1081 = vsub.f32 %v983, %v1080
        %v1082 = vand.u32 %v1081, 4294901760
        %v1083 = vsub.f32 %v1081, %v1082
        %v1084 = vand.u32 %v1083, 4294901760
        %1085 = vmatpush.msra.mxu0 %v1084
        %v1086 = vand.u32 %v982, 4294901760
        %v1087 = vsub.f32 %v982, %v1086
        %v1088 = vand.u32 %v1087, 4294901760
        %v1089 = vsub.f32 %v1087, %v1088
        %v1090 = vand.u32 %v1089, 4294901760
        %1091 = vmatpush.msra.mxu0 %v1090
        %v1092 = vand.u32 %v981, 4294901760
        %v1093 = vsub.f32 %v981, %v1092
        %v1094 = vand.u32 %v1093, 4294901760
        %v1095 = vsub.f32 %v1093, %v1094
        %v1096 = vand.u32 %v1095, 4294901760
        %1097 = vmatpush.msra.mxu0 %v1096
        %v1098 = vand.u32 %v980, 4294901760
        %v1099 = vsub.f32 %v980, %v1098
        %v1100 = vand.u32 %v1099, 4294901760
        %v1101 = vsub.f32 %v1099, %v1100
        %v1102 = vand.u32 %v1101, 4294901760
        %1103 = vmatpush.msra.mxu0 %v1102
        %v1104 = vand.u32 %v979, 4294901760
        %v1105 = vsub.f32 %v979, %v1104
        %v1106 = vand.u32 %v1105, 4294901760
        %v1107 = vsub.f32 %v1105, %v1106
        %v1108 = vand.u32 %v1107, 4294901760
        %1109 = vmatpush.msra.mxu0 %v1108
        %v1110 = vand.u32 %v978, 4294901760
        %v1111 = vsub.f32 %v978, %v1110
        %v1112 = vand.u32 %v1111, 4294901760
        %v1113 = vsub.f32 %v1111, %v1112
        %v1114 = vand.u32 %v1113, 4294901760
        %1115 = vmatpush.msra.mxu0 %v1114
        %v1116 = vand.u32 %v977, 4294901760
        %v1117 = vsub.f32 %v977, %v1116
        %v1118 = vand.u32 %v1117, 4294901760
        %v1119 = vsub.f32 %v1117, %v1118
        %v1120 = vand.u32 %v1119, 4294901760
        %1121 = vmatpush.msra.mxu0 %v1120
        %v1122 = vand.u32 %v976, 4294901760
        %v1123 = vsub.f32 %v976, %v1122
        %v1124 = vand.u32 %v1123, 4294901760
        %v1125 = vsub.f32 %v1123, %v1124
        %v1126 = vand.u32 %v1125, 4294901760
        %1127 = vmatpush.msra.mxu0 %v1126
        %v1128 = vand.u32 %v975, 4294901760
        %v1129 = vsub.f32 %v975, %v1128
        %v1130 = vand.u32 %v1129, 4294901760
        %v1131 = vsub.f32 %v1129, %v1130
        %v1132 = vand.u32 %v1131, 4294901760
        %1133 = vmatpush.msra.mxu0 %v1132
        %v1134 = vand.u32 %v974, 4294901760
        %v1135 = vsub.f32 %v974, %v1134
        %v1136 = vand.u32 %v1135, 4294901760
        %v1137 = vsub.f32 %v1135, %v1136
        %v1138 = vand.u32 %v1137, 4294901760
        %1139 = vmatpush.msra.mxu0 %v1138
        %v1140 = vand.u32 %v973, 4294901760
        %v1141 = vsub.f32 %v973, %v1140
        %v1142 = vand.u32 %v1141, 4294901760
        %v1143 = vsub.f32 %v1141, %v1142
        %v1144 = vand.u32 %v1143, 4294901760
        %1145 = vmatpush.msra.mxu0 %v1144
        %v1146 = vand.u32 %v971, 4294901760
        %1147 = vmatmul.f32.gmra.mxu0 %v1146
        %v1148 = vpop.f32.mrf.mxu0
        %v1149 = vadd.f32 %v1048, %v1148
        %1150 = vdwg.mxu0
        %v1151 = vand.u32 %v988, 4294901760
        %v1152 = vsub.f32 %v988, %v1151
        %1153 = vmatpush.msra.mxu0 %v1152
        %v1154 = vand.u32 %v987, 4294901760
        %v1155 = vsub.f32 %v987, %v1154
        %1156 = vmatpush.msra.mxu0 %v1155
        %v1157 = vand.u32 %v986, 4294901760
        %v1158 = vsub.f32 %v986, %v1157
        %1159 = vmatpush.msra.mxu0 %v1158
        %v1160 = vand.u32 %v985, 4294901760
        %v1161 = vsub.f32 %v985, %v1160
        %1162 = vmatpush.msra.mxu0 %v1161
        %v1163 = vand.u32 %v984, 4294901760
        %v1164 = vsub.f32 %v984, %v1163
        %1165 = vmatpush.msra.mxu0 %v1164
        %v1166 = vand.u32 %v983, 4294901760
        %v1167 = vsub.f32 %v983, %v1166
        %1168 = vmatpush.msra.mxu0 %v1167
        %v1169 = vand.u32 %v982, 4294901760
        %v1170 = vsub.f32 %v982, %v1169
        %1171 = vmatpush.msra.mxu0 %v1170
        %v1172 = vand.u32 %v981, 4294901760
        %v1173 = vsub.f32 %v981, %v1172
        %1174 = vmatpush.msra.mxu0 %v1173
        %v1175 = vand.u32 %v980, 4294901760
        %v1176 = vsub.f32 %v980, %v1175
        %1177 = vmatpush.msra.mxu0 %v1176
        %v1178 = vand.u32 %v979, 4294901760
        %v1179 = vsub.f32 %v979, %v1178
        %1180 = vmatpush.msra.mxu0 %v1179
        %v1181 = vand.u32 %v978, 4294901760
        %v1182 = vsub.f32 %v978, %v1181
        %1183 = vmatpush.msra.mxu0 %v1182
        %v1184 = vand.u32 %v977, 4294901760
        %v1185 = vsub.f32 %v977, %v1184
        %1186 = vmatpush.msra.mxu0 %v1185
        %v1187 = vand.u32 %v976, 4294901760
        %v1188 = vsub.f32 %v976, %v1187
        %1189 = vmatpush.msra.mxu0 %v1188
        %v1190 = vand.u32 %v975, 4294901760
        %v1191 = vsub.f32 %v975, %v1190
        %1192 = vmatpush.msra.mxu0 %v1191
        %v1193 = vand.u32 %v974, 4294901760
        %v1194 = vsub.f32 %v974, %v1193
        %1195 = vmatpush.msra.mxu0 %v1194
        %v1196 = vand.u32 %v973, 4294901760
        %v1197 = vsub.f32 %v973, %v1196
        %1198 = vmatpush.msra.mxu0 %v1197
        %v1199 = vand.u32 %v971, 4294901760
        %v1200 = vsub.f32 %v971, %v1199
        %1201 = vmatmul.f32.gmra.mxu0 %v1200
        %v1202 = vpop.f32.mrf.mxu0
        %v1203 = vadd.f32 %v1149, %v1202
        %1204 = vdwg.mxu0
        %v1205 = vand.u32 %v988, 4294901760
        %1206 = vmatpush.msra.mxu0 %v1205
        %v1207 = vand.u32 %v987, 4294901760
        %1208 = vmatpush.msra.mxu0 %v1207
        %v1209 = vand.u32 %v986, 4294901760
        %1210 = vmatpush.msra.mxu0 %v1209
        %v1211 = vand.u32 %v985, 4294901760
        %1212 = vmatpush.msra.mxu0 %v1211
        %v1213 = vand.u32 %v984, 4294901760
        %1214 = vmatpush.msra.mxu0 %v1213
        %v1215 = vand.u32 %v983, 4294901760
        %1216 = vmatpush.msra.mxu0 %v1215
        %v1217 = vand.u32 %v982, 4294901760
        %1218 = vmatpush.msra.mxu0 %v1217
        %v1219 = vand.u32 %v981, 4294901760
        %1220 = vmatpush.msra.mxu0 %v1219
        %v1221 = vand.u32 %v980, 4294901760
        %1222 = vmatpush.msra.mxu0 %v1221
        %v1223 = vand.u32 %v979, 4294901760
        %1224 = vmatpush.msra.mxu0 %v1223
        %v1225 = vand.u32 %v978, 4294901760
        %1226 = vmatpush.msra.mxu0 %v1225
        %v1227 = vand.u32 %v977, 4294901760
        %1228 = vmatpush.msra.mxu0 %v1227
        %v1229 = vand.u32 %v976, 4294901760
        %1230 = vmatpush.msra.mxu0 %v1229
        %v1231 = vand.u32 %v975, 4294901760
        %1232 = vmatpush.msra.mxu0 %v1231
        %v1233 = vand.u32 %v974, 4294901760
        %1234 = vmatpush.msra.mxu0 %v1233
        %v1235 = vand.u32 %v973, 4294901760
        %1236 = vmatpush.msra.mxu0 %v1235
        %v1237 = vand.u32 %v971, 4294901760
        %v1238 = vsub.f32 %v971, %v1237
        %v1239 = vand.u32 %v1238, 4294901760
        %1240 = vmatmul.f32.gmra.mxu0 %v1239
        %v1241 = vpop.f32.mrf.mxu0
        %v1242 = vadd.f32 %v1203, %v1241
        %1243 = vdwg.mxu0
        %v1244 = vand.u32 %v988, 4294901760
        %v1245 = vsub.f32 %v988, %v1244
        %v1246 = vand.u32 %v1245, 4294901760
        %1247 = vmatpush.msra.mxu0 %v1246
        %v1248 = vand.u32 %v987, 4294901760
        %v1249 = vsub.f32 %v987, %v1248
        %v1250 = vand.u32 %v1249, 4294901760
        %1251 = vmatpush.msra.mxu0 %v1250
        %v1252 = vand.u32 %v986, 4294901760
        %v1253 = vsub.f32 %v986, %v1252
        %v1254 = vand.u32 %v1253, 4294901760
        %1255 = vmatpush.msra.mxu0 %v1254
        %v1256 = vand.u32 %v985, 4294901760
        %v1257 = vsub.f32 %v985, %v1256
        %v1258 = vand.u32 %v1257, 4294901760
        %1259 = vmatpush.msra.mxu0 %v1258
        %v1260 = vand.u32 %v984, 4294901760
        %v1261 = vsub.f32 %v984, %v1260
        %v1262 = vand.u32 %v1261, 4294901760
        %1263 = vmatpush.msra.mxu0 %v1262
        %v1264 = vand.u32 %v983, 4294901760
        %v1265 = vsub.f32 %v983, %v1264
        %v1266 = vand.u32 %v1265, 4294901760
        %1267 = vmatpush.msra.mxu0 %v1266
        %v1268 = vand.u32 %v982, 4294901760
        %v1269 = vsub.f32 %v982, %v1268
        %v1270 = vand.u32 %v1269, 4294901760
        %1271 = vmatpush.msra.mxu0 %v1270
        %v1272 = vand.u32 %v981, 4294901760
        %v1273 = vsub.f32 %v981, %v1272
        %v1274 = vand.u32 %v1273, 4294901760
        %1275 = vmatpush.msra.mxu0 %v1274
        %v1276 = vand.u32 %v980, 4294901760
        %v1277 = vsub.f32 %v980, %v1276
        %v1278 = vand.u32 %v1277, 4294901760
        %1279 = vmatpush.msra.mxu0 %v1278
        %v1280 = vand.u32 %v979, 4294901760
        %v1281 = vsub.f32 %v979, %v1280
        %v1282 = vand.u32 %v1281, 4294901760
        %1283 = vmatpush.msra.mxu0 %v1282
        %v1284 = vand.u32 %v978, 4294901760
        %v1285 = vsub.f32 %v978, %v1284
        %v1286 = vand.u32 %v1285, 4294901760
        %1287 = vmatpush.msra.mxu0 %v1286
        %v1288 = vand.u32 %v977, 4294901760
        %v1289 = vsub.f32 %v977, %v1288
        %v1290 = vand.u32 %v1289, 4294901760
        %1291 = vmatpush.msra.mxu0 %v1290
        %v1292 = vand.u32 %v976, 4294901760
        %v1293 = vsub.f32 %v976, %v1292
        %v1294 = vand.u32 %v1293, 4294901760
        %1295 = vmatpush.msra.mxu0 %v1294
        %v1296 = vand.u32 %v975, 4294901760
        %v1297 = vsub.f32 %v975, %v1296
        %v1298 = vand.u32 %v1297, 4294901760
        %1299 = vmatpush.msra.mxu0 %v1298
        %v1300 = vand.u32 %v974, 4294901760
        %v1301 = vsub.f32 %v974, %v1300
        %v1302 = vand.u32 %v1301, 4294901760
        %1303 = vmatpush.msra.mxu0 %v1302
        %v1304 = vand.u32 %v973, 4294901760
        %v1305 = vsub.f32 %v973, %v1304
        %v1306 = vand.u32 %v1305, 4294901760
        %1307 = vmatpush.msra.mxu0 %v1306
        %v1308 = vand.u32 %v971, 4294901760
        %1309 = vmatmul.f32.gmra.mxu0 %v1308
        %v1310 = vpop.f32.mrf.mxu0
        %v1311 = vadd.f32 %v1242, %v1310
        %1312 = vdwg.mxu0
        %v1313 = vand.u32 %v988, 4294901760
        %1314 = vmatpush.msra.mxu0 %v1313
        %v1315 = vand.u32 %v987, 4294901760
        %1316 = vmatpush.msra.mxu0 %v1315
        %v1317 = vand.u32 %v986, 4294901760
        %1318 = vmatpush.msra.mxu0 %v1317
        %v1319 = vand.u32 %v985, 4294901760
        %1320 = vmatpush.msra.mxu0 %v1319
        %v1321 = vand.u32 %v984, 4294901760
        %1322 = vmatpush.msra.mxu0 %v1321
        %v1323 = vand.u32 %v983, 4294901760
        %1324 = vmatpush.msra.mxu0 %v1323
        %v1325 = vand.u32 %v982, 4294901760
        %1326 = vmatpush.msra.mxu0 %v1325
        %v1327 = vand.u32 %v981, 4294901760
        %1328 = vmatpush.msra.mxu0 %v1327
        %v1329 = vand.u32 %v980, 4294901760
        %1330 = vmatpush.msra.mxu0 %v1329
        %v1331 = vand.u32 %v979, 4294901760
        %1332 = vmatpush.msra.mxu0 %v1331
        %v1333 = vand.u32 %v978, 4294901760
        %1334 = vmatpush.msra.mxu0 %v1333
        %v1335 = vand.u32 %v977, 4294901760
        %1336 = vmatpush.msra.mxu0 %v1335
        %v1337 = vand.u32 %v976, 4294901760
        %1338 = vmatpush.msra.mxu0 %v1337
        %v1339 = vand.u32 %v975, 4294901760
        %1340 = vmatpush.msra.mxu0 %v1339
        %v1341 = vand.u32 %v974, 4294901760
        %1342 = vmatpush.msra.mxu0 %v1341
        %v1343 = vand.u32 %v973, 4294901760
        %1344 = vmatpush.msra.mxu0 %v1343
        %v1345 = vand.u32 %v971, 4294901760
        %1346 = vmatmul.f32.gmra.mxu0 %v1345
        %v1347 = vpop.f32.mrf.mxu0
        %v1348 = vadd.f32 %v1311, %v1347
        %1349 = vdwg.mxu0
        %v1350 = vand.u32 %v1004, 4294901760
        %1351 = vmatpush.msra.mxu0 %v1350
        %v1352 = vand.u32 %v1003, 4294901760
        %1353 = vmatpush.msra.mxu0 %v1352
        %v1354 = vand.u32 %v1002, 4294901760
        %1355 = vmatpush.msra.mxu0 %v1354
        %v1356 = vand.u32 %v1001, 4294901760
        %1357 = vmatpush.msra.mxu0 %v1356
        %v1358 = vand.u32 %v1000, 4294901760
        %1359 = vmatpush.msra.mxu0 %v1358
        %v1360 = vand.u32 %v999, 4294901760
        %1361 = vmatpush.msra.mxu0 %v1360
        %v1362 = vand.u32 %v998, 4294901760
        %1363 = vmatpush.msra.mxu0 %v1362
        %v1364 = vand.u32 %v997, 4294901760
        %1365 = vmatpush.msra.mxu0 %v1364
        %v1366 = vand.u32 %v996, 4294901760
        %1367 = vmatpush.msra.mxu0 %v1366
        %v1368 = vand.u32 %v995, 4294901760
        %1369 = vmatpush.msra.mxu0 %v1368
        %v1370 = vand.u32 %v994, 4294901760
        %1371 = vmatpush.msra.mxu0 %v1370
        %v1372 = vand.u32 %v993, 4294901760
        %1373 = vmatpush.msra.mxu0 %v1372
        %v1374 = vand.u32 %v992, 4294901760
        %1375 = vmatpush.msra.mxu0 %v1374
        %v1376 = vand.u32 %v991, 4294901760
        %1377 = vmatpush.msra.mxu0 %v1376
        %v1378 = vand.u32 %v990, 4294901760
        %1379 = vmatpush.msra.mxu0 %v1378
        %v1380 = vand.u32 %v989, 4294901760
        %1381 = vmatpush.msra.mxu0 %v1380
        %v1382 = vand.u32 %v972, 4294901760
        %v1383 = vsub.f32 %v972, %v1382
        %v1384 = vand.u32 %v1383, 4294901760
        %v1385 = vsub.f32 %v1383, %v1384
        %v1386 = vand.u32 %v1385, 4294901760
        %1387 = vmatmul.f32.gmra.mxu0 %v1386
        %v1388 = vpop.f32.mrf.mxu0
        %v1389 = vadd.f32 %v1348, %v1388
        %1390 = vdwg.mxu0
        %v1391 = vand.u32 %v1004, 4294901760
        %v1392 = vsub.f32 %v1004, %v1391
        %v1393 = vand.u32 %v1392, 4294901760
        %v1394 = vsub.f32 %v1392, %v1393
        %v1395 = vand.u32 %v1394, 4294901760
        %1396 = vmatpush.msra.mxu0 %v1395
        %v1397 = vand.u32 %v1003, 4294901760
        %v1398 = vsub.f32 %v1003, %v1397
        %v1399 = vand.u32 %v1398, 4294901760
        %v1400 = vsub.f32 %v1398, %v1399
        %v1401 = vand.u32 %v1400, 4294901760
        %1402 = vmatpush.msra.mxu0 %v1401
        %v1403 = vand.u32 %v1002, 4294901760
        %v1404 = vsub.f32 %v1002, %v1403
        %v1405 = vand.u32 %v1404, 4294901760
        %v1406 = vsub.f32 %v1404, %v1405
        %v1407 = vand.u32 %v1406, 4294901760
        %1408 = vmatpush.msra.mxu0 %v1407
        %v1409 = vand.u32 %v1001, 4294901760
        %v1410 = vsub.f32 %v1001, %v1409
        %v1411 = vand.u32 %v1410, 4294901760
        %v1412 = vsub.f32 %v1410, %v1411
        %v1413 = vand.u32 %v1412, 4294901760
        %1414 = vmatpush.msra.mxu0 %v1413
        %v1415 = vand.u32 %v1000, 4294901760
        %v1416 = vsub.f32 %v1000, %v1415
        %v1417 = vand.u32 %v1416, 4294901760
        %v1418 = vsub.f32 %v1416, %v1417
        %v1419 = vand.u32 %v1418, 4294901760
        %1420 = vmatpush.msra.mxu0 %v1419
        %v1421 = vand.u32 %v999, 4294901760
        %v1422 = vsub.f32 %v999, %v1421
        %v1423 = vand.u32 %v1422, 4294901760
        %v1424 = vsub.f32 %v1422, %v1423
        %v1425 = vand.u32 %v1424, 4294901760
        %1426 = vmatpush.msra.mxu0 %v1425
        %v1427 = vand.u32 %v998, 4294901760
        %v1428 = vsub.f32 %v998, %v1427
        %v1429 = vand.u32 %v1428, 4294901760
        %v1430 = vsub.f32 %v1428, %v1429
        %v1431 = vand.u32 %v1430, 4294901760
        %1432 = vmatpush.msra.mxu0 %v1431
        %v1433 = vand.u32 %v997, 4294901760
        %v1434 = vsub.f32 %v997, %v1433
        %v1435 = vand.u32 %v1434, 4294901760
        %v1436 = vsub.f32 %v1434, %v1435
        %v1437 = vand.u32 %v1436, 4294901760
        %1438 = vmatpush.msra.mxu0 %v1437
        %v1439 = vand.u32 %v996, 4294901760
        %v1440 = vsub.f32 %v996, %v1439
        %v1441 = vand.u32 %v1440, 4294901760
        %v1442 = vsub.f32 %v1440, %v1441
        %v1443 = vand.u32 %v1442, 4294901760
        %1444 = vmatpush.msra.mxu0 %v1443
        %v1445 = vand.u32 %v995, 4294901760
        %v1446 = vsub.f32 %v995, %v1445
        %v1447 = vand.u32 %v1446, 4294901760
        %v1448 = vsub.f32 %v1446, %v1447
        %v1449 = vand.u32 %v1448, 4294901760
        %1450 = vmatpush.msra.mxu0 %v1449
        %v1451 = vand.u32 %v994, 4294901760
        %v1452 = vsub.f32 %v994, %v1451
        %v1453 = vand.u32 %v1452, 4294901760
        %v1454 = vsub.f32 %v1452, %v1453
        %v1455 = vand.u32 %v1454, 4294901760
        %1456 = vmatpush.msra.mxu0 %v1455
        %v1457 = vand.u32 %v993, 4294901760
        %v1458 = vsub.f32 %v993, %v1457
        %v1459 = vand.u32 %v1458, 4294901760
        %v1460 = vsub.f32 %v1458, %v1459
        %v1461 = vand.u32 %v1460, 4294901760
        %1462 = vmatpush.msra.mxu0 %v1461
        %v1463 = vand.u32 %v992, 4294901760
        %v1464 = vsub.f32 %v992, %v1463
        %v1465 = vand.u32 %v1464, 4294901760
        %v1466 = vsub.f32 %v1464, %v1465
        %v1467 = vand.u32 %v1466, 4294901760
        %1468 = vmatpush.msra.mxu0 %v1467
        %v1469 = vand.u32 %v991, 4294901760
        %v1470 = vsub.f32 %v991, %v1469
        %v1471 = vand.u32 %v1470, 4294901760
        %v1472 = vsub.f32 %v1470, %v1471
        %v1473 = vand.u32 %v1472, 4294901760
        %1474 = vmatpush.msra.mxu0 %v1473
        %v1475 = vand.u32 %v990, 4294901760
        %v1476 = vsub.f32 %v990, %v1475
        %v1477 = vand.u32 %v1476, 4294901760
        %v1478 = vsub.f32 %v1476, %v1477
        %v1479 = vand.u32 %v1478, 4294901760
        %1480 = vmatpush.msra.mxu0 %v1479
        %v1481 = vand.u32 %v989, 4294901760
        %v1482 = vsub.f32 %v989, %v1481
        %v1483 = vand.u32 %v1482, 4294901760
        %v1484 = vsub.f32 %v1482, %v1483
        %v1485 = vand.u32 %v1484, 4294901760
        %1486 = vmatpush.msra.mxu0 %v1485
        %v1487 = vand.u32 %v972, 4294901760
        %1488 = vmatmul.f32.gmra.mxu0 %v1487
        %v1489 = vpop.f32.mrf.mxu0
        %v1490 = vadd.f32 %v1389, %v1489
        %1491 = vdwg.mxu0
        %v1492 = vand.u32 %v1004, 4294901760
        %v1493 = vsub.f32 %v1004, %v1492
        %1494 = vmatpush.msra.mxu0 %v1493
        %v1495 = vand.u32 %v1003, 4294901760
        %v1496 = vsub.f32 %v1003, %v1495
        %1497 = vmatpush.msra.mxu0 %v1496
        %v1498 = vand.u32 %v1002, 4294901760
        %v1499 = vsub.f32 %v1002, %v1498
        %1500 = vmatpush.msra.mxu0 %v1499
        %v1501 = vand.u32 %v1001, 4294901760
        %v1502 = vsub.f32 %v1001, %v1501
        %1503 = vmatpush.msra.mxu0 %v1502
        %v1504 = vand.u32 %v1000, 4294901760
        %v1505 = vsub.f32 %v1000, %v1504
        %1506 = vmatpush.msra.mxu0 %v1505
        %v1507 = vand.u32 %v999, 4294901760
        %v1508 = vsub.f32 %v999, %v1507
        %1509 = vmatpush.msra.mxu0 %v1508
        %v1510 = vand.u32 %v998, 4294901760
        %v1511 = vsub.f32 %v998, %v1510
        %1512 = vmatpush.msra.mxu0 %v1511
        %v1513 = vand.u32 %v997, 4294901760
        %v1514 = vsub.f32 %v997, %v1513
        %1515 = vmatpush.msra.mxu0 %v1514
        %v1516 = vand.u32 %v996, 4294901760
        %v1517 = vsub.f32 %v996, %v1516
        %1518 = vmatpush.msra.mxu0 %v1517
        %v1519 = vand.u32 %v995, 4294901760
        %v1520 = vsub.f32 %v995, %v1519
        %1521 = vmatpush.msra.mxu0 %v1520
        %v1522 = vand.u32 %v994, 4294901760
        %v1523 = vsub.f32 %v994, %v1522
        %1524 = vmatpush.msra.mxu0 %v1523
        %v1525 = vand.u32 %v993, 4294901760
        %v1526 = vsub.f32 %v993, %v1525
        %1527 = vmatpush.msra.mxu0 %v1526
        %v1528 = vand.u32 %v992, 4294901760
        %v1529 = vsub.f32 %v992, %v1528
        %1530 = vmatpush.msra.mxu0 %v1529
        %v1531 = vand.u32 %v991, 4294901760
        %v1532 = vsub.f32 %v991, %v1531
        %1533 = vmatpush.msra.mxu0 %v1532
        %v1534 = vand.u32 %v990, 4294901760
        %v1535 = vsub.f32 %v990, %v1534
        %1536 = vmatpush.msra.mxu0 %v1535
        %v1537 = vand.u32 %v989, 4294901760
        %v1538 = vsub.f32 %v989, %v1537
        %1539 = vmatpush.msra.mxu0 %v1538
        %v1540 = vand.u32 %v972, 4294901760
        %v1541 = vsub.f32 %v972, %v1540
        %1542 = vmatmul.f32.gmra.mxu0 %v1541
        %v1543 = vpop.f32.mrf.mxu0
        %v1544 = vadd.f32 %v1490, %v1543
        %1545 = vdwg.mxu0
        %v1546 = vand.u32 %v1004, 4294901760
        %1547 = vmatpush.msra.mxu0 %v1546
        %v1548 = vand.u32 %v1003, 4294901760
        %1549 = vmatpush.msra.mxu0 %v1548
        %v1550 = vand.u32 %v1002, 4294901760
        %1551 = vmatpush.msra.mxu0 %v1550
        %v1552 = vand.u32 %v1001, 4294901760
        %1553 = vmatpush.msra.mxu0 %v1552
        %v1554 = vand.u32 %v1000, 4294901760
        %1555 = vmatpush.msra.mxu0 %v1554
        %v1556 = vand.u32 %v999, 4294901760
        %1557 = vmatpush.msra.mxu0 %v1556
        %v1558 = vand.u32 %v998, 4294901760
        %1559 = vmatpush.msra.mxu0 %v1558
        %v1560 = vand.u32 %v997, 4294901760
        %1561 = vmatpush.msra.mxu0 %v1560
        %v1562 = vand.u32 %v996, 4294901760
        %1563 = vmatpush.msra.mxu0 %v1562
        %v1564 = vand.u32 %v995, 4294901760
        %1565 = vmatpush.msra.mxu0 %v1564
        %v1566 = vand.u32 %v994, 4294901760
        %1567 = vmatpush.msra.mxu0 %v1566
        %v1568 = vand.u32 %v993, 4294901760
        %1569 = vmatpush.msra.mxu0 %v1568
        %v1570 = vand.u32 %v992, 4294901760
        %1571 = vmatpush.msra.mxu0 %v1570
        %v1572 = vand.u32 %v991, 4294901760
        %1573 = vmatpush.msra.mxu0 %v1572
        %v1574 = vand.u32 %v990, 4294901760
        %1575 = vmatpush.msra.mxu0 %v1574
        %v1576 = vand.u32 %v989, 4294901760
        %1577 = vmatpush.msra.mxu0 %v1576
        %v1578 = vand.u32 %v972, 4294901760
        %v1579 = vsub.f32 %v972, %v1578
        %v1580 = vand.u32 %v1579, 4294901760
        %1581 = vmatmul.f32.gmra.mxu0 %v1580
        %v1582 = vpop.f32.mrf.mxu0
        %v1583 = vadd.f32 %v1544, %v1582
        %1584 = vdwg.mxu0
        %v1585 = vand.u32 %v1004, 4294901760
        %v1586 = vsub.f32 %v1004, %v1585
        %v1587 = vand.u32 %v1586, 4294901760
        %1588 = vmatpush.msra.mxu0 %v1587
        %v1589 = vand.u32 %v1003, 4294901760
        %v1590 = vsub.f32 %v1003, %v1589
        %v1591 = vand.u32 %v1590, 4294901760
        %1592 = vmatpush.msra.mxu0 %v1591
        %v1593 = vand.u32 %v1002, 4294901760
        %v1594 = vsub.f32 %v1002, %v1593
        %v1595 = vand.u32 %v1594, 4294901760
        %1596 = vmatpush.msra.mxu0 %v1595
        %v1597 = vand.u32 %v1001, 4294901760
        %v1598 = vsub.f32 %v1001, %v1597
        %v1599 = vand.u32 %v1598, 4294901760
        %1600 = vmatpush.msra.mxu0 %v1599
        %v1601 = vand.u32 %v1000, 4294901760
        %v1602 = vsub.f32 %v1000, %v1601
        %v1603 = vand.u32 %v1602, 4294901760
        %1604 = vmatpush.msra.mxu0 %v1603
        %v1605 = vand.u32 %v999, 4294901760
        %v1606 = vsub.f32 %v999, %v1605
        %v1607 = vand.u32 %v1606, 4294901760
        %1608 = vmatpush.msra.mxu0 %v1607
        %v1609 = vand.u32 %v998, 4294901760
        %v1610 = vsub.f32 %v998, %v1609
        %v1611 = vand.u32 %v1610, 4294901760
        %1612 = vmatpush.msra.mxu0 %v1611
        %v1613 = vand.u32 %v997, 4294901760
        %v1614 = vsub.f32 %v997, %v1613
        %v1615 = vand.u32 %v1614, 4294901760
        %1616 = vmatpush.msra.mxu0 %v1615
        %v1617 = vand.u32 %v996, 4294901760
        %v1618 = vsub.f32 %v996, %v1617
        %v1619 = vand.u32 %v1618, 4294901760
        %1620 = vmatpush.msra.mxu0 %v1619
        %v1621 = vand.u32 %v995, 4294901760
        %v1622 = vsub.f32 %v995, %v1621
        %v1623 = vand.u32 %v1622, 4294901760
        %1624 = vmatpush.msra.mxu0 %v1623
        %v1625 = vand.u32 %v994, 4294901760
        %v1626 = vsub.f32 %v994, %v1625
        %v1627 = vand.u32 %v1626, 4294901760
        %1628 = vmatpush.msra.mxu0 %v1627
        %v1629 = vand.u32 %v993, 4294901760
        %v1630 = vsub.f32 %v993, %v1629
        %v1631 = vand.u32 %v1630, 4294901760
        %1632 = vmatpush.msra.mxu0 %v1631
        %v1633 = vand.u32 %v992, 4294901760
        %v1634 = vsub.f32 %v992, %v1633
        %v1635 = vand.u32 %v1634, 4294901760
        %1636 = vmatpush.msra.mxu0 %v1635
        %v1637 = vand.u32 %v991, 4294901760
        %v1638 = vsub.f32 %v991, %v1637
        %v1639 = vand.u32 %v1638, 4294901760
        %1640 = vmatpush.msra.mxu0 %v1639
        %v1641 = vand.u32 %v990, 4294901760
        %v1642 = vsub.f32 %v990, %v1641
        %v1643 = vand.u32 %v1642, 4294901760
        %1644 = vmatpush.msra.mxu0 %v1643
        %v1645 = vand.u32 %v989, 4294901760
        %v1646 = vsub.f32 %v989, %v1645
        %v1647 = vand.u32 %v1646, 4294901760
        %1648 = vmatpush.msra.mxu0 %v1647
        %v1649 = vand.u32 %v972, 4294901760
        %1650 = vmatmul.f32.gmra.mxu0 %v1649
        %v1651 = vpop.f32.mrf.mxu0
        %v1652 = vadd.f32 %v1583, %v1651
        %1653 = vdwg.mxu0
        %v1654 = vand.u32 %v1004, 4294901760
        %1655 = vmatpush.msra.mxu0 %v1654
        %v1656 = vand.u32 %v1003, 4294901760
        %1657 = vmatpush.msra.mxu0 %v1656
        %v1658 = vand.u32 %v1002, 4294901760
        %1659 = vmatpush.msra.mxu0 %v1658
        %v1660 = vand.u32 %v1001, 4294901760
        %1661 = vmatpush.msra.mxu0 %v1660
        %v1662 = vand.u32 %v1000, 4294901760
        %1663 = vmatpush.msra.mxu0 %v1662
        %v1664 = vand.u32 %v999, 4294901760
        %1665 = vmatpush.msra.mxu0 %v1664
        %v1666 = vand.u32 %v998, 4294901760
        %1667 = vmatpush.msra.mxu0 %v1666
        %v1668 = vand.u32 %v997, 4294901760
        %1669 = vmatpush.msra.mxu0 %v1668
        %v1670 = vand.u32 %v996, 4294901760
        %1671 = vmatpush.msra.mxu0 %v1670
        %v1672 = vand.u32 %v995, 4294901760
        %1673 = vmatpush.msra.mxu0 %v1672
        %v1674 = vand.u32 %v994, 4294901760
        %1675 = vmatpush.msra.mxu0 %v1674
        %v1676 = vand.u32 %v993, 4294901760
        %1677 = vmatpush.msra.mxu0 %v1676
        %v1678 = vand.u32 %v992, 4294901760
        %1679 = vmatpush.msra.mxu0 %v1678
        %v1680 = vand.u32 %v991, 4294901760
        %1681 = vmatpush.msra.mxu0 %v1680
        %v1682 = vand.u32 %v990, 4294901760
        %1683 = vmatpush.msra.mxu0 %v1682
        %v1684 = vand.u32 %v989, 4294901760
        %1685 = vmatpush.msra.mxu0 %v1684
        %v1686 = vand.u32 %v972, 4294901760
        %1687 = vmatmul.f32.gmra.mxu0 %v1686
        %v1688 = vpop.f32.mrf.mxu0
        %v1689 = vadd.f32 %v1652, %v1688
        %1690 = vdwg.mxu0
        %v1691 = vmax.f32 %v1689, 0.0
        %v1692 = vld [vmem:[%s7] sm:$0xff]
        %v1693 = vld [vmem:[%s7 + $0x8] sm:$0xff]
        %v1694 = vld [vmem:[%s7 + $0x10] sm:$0xff]
        %v1695 = vld [vmem:[%s7 + $0x18] sm:$0xff]
        %v1696 = vld [vmem:[%s8] sm:$0x1]
        %v1698 = vperm.slane %v1696, 0
        %v1701 = vsel %vm597, %v1691, 0
        %1703 = vmatpush.msra.mxu0 0.0
        %1704 = vmatpush.msra.mxu0 0.0
        %1705 = vmatpush.msra.mxu0 0.0
        %1706 = vmatpush.msra.mxu0 0.0
        %1707 = vmatpush.msra.mxu0 0.0
        %1708 = vmatpush.msra.mxu0 0.0
        %1709 = vmatpush.msra.mxu0 0.0
        %1710 = vmatpush.msra.mxu0 0.0
        %1711 = vmatpush.msra.mxu0 0.0
        %1712 = vmatpush.msra.mxu0 0.0
        %1713 = vmatpush.msra.mxu0 0.0
        %1714 = vmatpush.msra.mxu0 0.0
        %v1715 = vand.u32 %v1695, 4294901760
        %1716 = vmatpush.msra.mxu0 %v1715
        %v1717 = vand.u32 %v1694, 4294901760
        %1718 = vmatpush.msra.mxu0 %v1717
        %v1719 = vand.u32 %v1693, 4294901760
        %1720 = vmatpush.msra.mxu0 %v1719
        %v1721 = vand.u32 %v1692, 4294901760
        %1722 = vmatpush.msra.mxu0 %v1721
        %v1723 = vand.u32 %v1701, 4294901760
        %v1724 = vsub.f32 %v1701, %v1723
        %v1725 = vand.u32 %v1724, 4294901760
        %v1726 = vsub.f32 %v1724, %v1725
        %v1727 = vand.u32 %v1726, 4294901760
        %1728 = vmatmul.f32.gmra.mxu0 %v1727
        %v1729 = vpop.f32.mrf.mxu0
        %v1730 = vadd.f32 %v1698, %v1729
        %1731 = vdwg.mxu0
        %1732 = vmatpush.msra.mxu0 0.0
        %1733 = vmatpush.msra.mxu0 0.0
        %1734 = vmatpush.msra.mxu0 0.0
        %1735 = vmatpush.msra.mxu0 0.0
        %1736 = vmatpush.msra.mxu0 0.0
        %1737 = vmatpush.msra.mxu0 0.0
        %1738 = vmatpush.msra.mxu0 0.0
        %1739 = vmatpush.msra.mxu0 0.0
        %1740 = vmatpush.msra.mxu0 0.0
        %1741 = vmatpush.msra.mxu0 0.0
        %1742 = vmatpush.msra.mxu0 0.0
        %1743 = vmatpush.msra.mxu0 0.0
        %v1744 = vand.u32 %v1695, 4294901760
        %v1745 = vsub.f32 %v1695, %v1744
        %v1746 = vand.u32 %v1745, 4294901760
        %v1747 = vsub.f32 %v1745, %v1746
        %v1748 = vand.u32 %v1747, 4294901760
        %1749 = vmatpush.msra.mxu0 %v1748
        %v1750 = vand.u32 %v1694, 4294901760
        %v1751 = vsub.f32 %v1694, %v1750
        %v1752 = vand.u32 %v1751, 4294901760
        %v1753 = vsub.f32 %v1751, %v1752
        %v1754 = vand.u32 %v1753, 4294901760
        %1755 = vmatpush.msra.mxu0 %v1754
        %v1756 = vand.u32 %v1693, 4294901760
        %v1757 = vsub.f32 %v1693, %v1756
        %v1758 = vand.u32 %v1757, 4294901760
        %v1759 = vsub.f32 %v1757, %v1758
        %v1760 = vand.u32 %v1759, 4294901760
        %1761 = vmatpush.msra.mxu0 %v1760
        %v1762 = vand.u32 %v1692, 4294901760
        %v1763 = vsub.f32 %v1692, %v1762
        %v1764 = vand.u32 %v1763, 4294901760
        %v1765 = vsub.f32 %v1763, %v1764
        %v1766 = vand.u32 %v1765, 4294901760
        %1767 = vmatpush.msra.mxu0 %v1766
        %v1768 = vand.u32 %v1701, 4294901760
        %1769 = vmatmul.f32.gmra.mxu0 %v1768
        %v1770 = vpop.f32.mrf.mxu0
        %v1771 = vadd.f32 %v1730, %v1770
        %1772 = vdwg.mxu0
        %1773 = vmatpush.msra.mxu0 0.0
        %1774 = vmatpush.msra.mxu0 0.0
        %1775 = vmatpush.msra.mxu0 0.0
        %1776 = vmatpush.msra.mxu0 0.0
        %1777 = vmatpush.msra.mxu0 0.0
        %1778 = vmatpush.msra.mxu0 0.0
        %1779 = vmatpush.msra.mxu0 0.0
        %1780 = vmatpush.msra.mxu0 0.0
        %1781 = vmatpush.msra.mxu0 0.0
        %1782 = vmatpush.msra.mxu0 0.0
        %1783 = vmatpush.msra.mxu0 0.0
        %1784 = vmatpush.msra.mxu0 0.0
        %v1785 = vand.u32 %v1695, 4294901760
        %v1786 = vsub.f32 %v1695, %v1785
        %1787 = vmatpush.msra.mxu0 %v1786
        %v1788 = vand.u32 %v1694, 4294901760
        %v1789 = vsub.f32 %v1694, %v1788
        %1790 = vmatpush.msra.mxu0 %v1789
        %v1791 = vand.u32 %v1693, 4294901760
        %v1792 = vsub.f32 %v1693, %v1791
        %1793 = vmatpush.msra.mxu0 %v1792
        %v1794 = vand.u32 %v1692, 4294901760
        %v1795 = vsub.f32 %v1692, %v1794
        %1796 = vmatpush.msra.mxu0 %v1795
        %v1797 = vand.u32 %v1701, 4294901760
        %v1798 = vsub.f32 %v1701, %v1797
        %1799 = vmatmul.f32.gmra.mxu0 %v1798
        %v1800 = vpop.f32.mrf.mxu0
        %v1801 = vadd.f32 %v1771, %v1800
        %1802 = vdwg.mxu0
        %1803 = vmatpush.msra.mxu0 0.0
        %1804 = vmatpush.msra.mxu0 0.0
        %1805 = vmatpush.msra.mxu0 0.0
        %1806 = vmatpush.msra.mxu0 0.0
        %1807 = vmatpush.msra.mxu0 0.0
        %1808 = vmatpush.msra.mxu0 0.0
        %1809 = vmatpush.msra.mxu0 0.0
        %1810 = vmatpush.msra.mxu0 0.0
        %1811 = vmatpush.msra.mxu0 0.0
        %1812 = vmatpush.msra.mxu0 0.0
        %1813 = vmatpush.msra.mxu0 0.0
        %1814 = vmatpush.msra.mxu0 0.0
        %v1815 = vand.u32 %v1695, 4294901760
        %1816 = vmatpush.msra.mxu0 %v1815
        %v1817 = vand.u32 %v1694, 4294901760
        %1818 = vmatpush.msra.mxu0 %v1817
        %v1819 = vand.u32 %v1693, 4294901760
        %1820 = vmatpush.msra.mxu0 %v1819
        %v1821 = vand.u32 %v1692, 4294901760
        %1822 = vmatpush.msra.mxu0 %v1821
        %v1823 = vand.u32 %v1701, 4294901760
        %v1824 = vsub.f32 %v1701, %v1823
        %v1825 = vand.u32 %v1824, 4294901760
        %1826 = vmatmul.f32.gmra.mxu0 %v1825
        %v1827 = vpop.f32.mrf.mxu0
        %v1828 = vadd.f32 %v1801, %v1827
        %1829 = vdwg.mxu0
        %1830 = vmatpush.msra.mxu0 0.0
        %1831 = vmatpush.msra.mxu0 0.0
        %1832 = vmatpush.msra.mxu0 0.0
        %1833 = vmatpush.msra.mxu0 0.0
        %1834 = vmatpush.msra.mxu0 0.0
        %1835 = vmatpush.msra.mxu0 0.0
        %1836 = vmatpush.msra.mxu0 0.0
        %1837 = vmatpush.msra.mxu0 0.0
        %1838 = vmatpush.msra.mxu0 0.0
        %1839 = vmatpush.msra.mxu0 0.0
        %1840 = vmatpush.msra.mxu0 0.0
        %1841 = vmatpush.msra.mxu0 0.0
        %v1842 = vand.u32 %v1695, 4294901760
        %v1843 = vsub.f32 %v1695, %v1842
        %v1844 = vand.u32 %v1843, 4294901760
        %1845 = vmatpush.msra.mxu0 %v1844
        %v1846 = vand.u32 %v1694, 4294901760
        %v1847 = vsub.f32 %v1694, %v1846
        %v1848 = vand.u32 %v1847, 4294901760
        %1849 = vmatpush.msra.mxu0 %v1848
        %v1850 = vand.u32 %v1693, 4294901760
        %v1851 = vsub.f32 %v1693, %v1850
        %v1852 = vand.u32 %v1851, 4294901760
        %1853 = vmatpush.msra.mxu0 %v1852
        %v1854 = vand.u32 %v1692, 4294901760
        %v1855 = vsub.f32 %v1692, %v1854
        %v1856 = vand.u32 %v1855, 4294901760
        %1857 = vmatpush.msra.mxu0 %v1856
        %v1858 = vand.u32 %v1701, 4294901760
        %1859 = vmatmul.f32.gmra.mxu0 %v1858
        %v1860 = vpop.f32.mrf.mxu0
        %v1861 = vadd.f32 %v1828, %v1860
        %1862 = vdwg.mxu0
        %1863 = vmatpush.msra.mxu0 0.0
        %1864 = vmatpush.msra.mxu0 0.0
        %1865 = vmatpush.msra.mxu0 0.0
        %1866 = vmatpush.msra.mxu0 0.0
        %1867 = vmatpush.msra.mxu0 0.0
        %1868 = vmatpush.msra.mxu0 0.0
        %1869 = vmatpush.msra.mxu0 0.0
        %1870 = vmatpush.msra.mxu0 0.0
        %1871 = vmatpush.msra.mxu0 0.0
        %1872 = vmatpush.msra.mxu0 0.0
        %1873 = vmatpush.msra.mxu0 0.0
        %1874 = vmatpush.msra.mxu0 0.0
        %v1875 = vand.u32 %v1695, 4294901760
        %1876 = vmatpush.msra.mxu0 %v1875
        %v1877 = vand.u32 %v1694, 4294901760
        %1878 = vmatpush.msra.mxu0 %v1877
        %v1879 = vand.u32 %v1693, 4294901760
        %1880 = vmatpush.msra.mxu0 %v1879
        %v1881 = vand.u32 %v1692, 4294901760
        %1882 = vmatpush.msra.mxu0 %v1881
        %v1883 = vand.u32 %v1701, 4294901760
        %1884 = vmatmul.f32.gmra.mxu0 %v1883
        %v1885 = vpop.f32.mrf.mxu0
        %v1886 = vadd.f32 %v1861, %v1885
        %1887 = vdwg.mxu0
        %v1888 = vxor.u32 %v1886, 2147483648
        %v1889 = vmul.f32 %v1888, 1.442695
        %v1890 = vpow.pop %v1889
        %v1891 = vadd.f32 %v1890, 1.0
        %v1892 = vrcp.pop %v1891
        %v1893 = vmul.f32 %v1891, %v1892
        %v1894 = vsub.f32 1.0, %v1893
        %v1895 = vmul.f32 %v1892, %v1894
        %v1896 = vadd.f32 %v1892, %v1895
        %vm1897 = vweird.f32 %v1891
        %vm1898 = vweird.f32 %v1892
        %vm1899 = vmor %vm1897, %vm1898
        %v1900 = vsel %vm1899, %v1892, %v1896
        %v1901 = vand.u32 2147483647, %v1891
        %vm1902 = vcmp.eq.f32.partialorder %v1901, 8.507059e+37
        %v1903 = vand.u32 %v1891, 2147483648
        %v1904 = vor.u32 1.1754944e-38, %v1903
        %v1905 = vsel %vm1902, %v1904, %v1900
        %v1906 = vmul.f32 1.0, %v1905
        %1907 = vst.msk [vmem:[%s323] sm:$0xff] %vm341, %v1906
        %s1908 = sand.u32 %s225, 1
        %s1909 = scalar_lea.sflag [#allocation3], %s1908
        %s1910 = sand.u32 %s225, 1
        %s1911 = smul.addr %s1910, 8
        %s1912 = scalar_lea.vmem [#allocation2], %s1911
        // Predicated region
        $region57: #{tpu_custom_call.1} parent=55 // pred_check
          %p1913 = pneg %p235
        $region58: #{tpu_custom_call.1} parent=55 // pred_check_branch
          %1915 = sbr.rel (%p1913) target = $region60
        $region59: #{tpu_custom_call.1} parent=55 // pred_region
          %1917 = vsyncadd %s1909, 0
          %s1918 = smul.addr %s23, 8
          %s1919 = scalar_lea.hbm %s9, %s1918
          %s1921 = sshll.u32 %s1912, 4
          %s1922 = int_to_ptr.vmem [resolvable:$true] %s1921
          %s1923 = sshll.u32 %s1919, 4
          %s1924 = int_to_ptr.hbm [resolvable:$true] %s1923
          %1926 = dma.vmem_to_hbm [thread:$0]  %s1922, 128, %s1924, %s1909
        $region60: #{tpu_custom_call.1} parent=55 // pred_fallthru
          _
      $region56: #{tpu_custom_call.1} parent=5 // pred_fallthru
        _
      %p1927 = scmp.le.s32.totalorder 2, %s18
      // Predicated region
      $region61: #{tpu_custom_call.1} parent=5 // pred_check
        %p1928 = pneg %p1927
      $region62: #{tpu_custom_call.1} parent=5 // pred_check_branch
        %1930 = sbr.rel (%p1928) target = $region64
      $region63: #{tpu_custom_call.1} parent=5 // pred_region
        %s1931 = ssub.s32 %s18, 2
        // Predicated region
        $region65: #{tpu_custom_call.1} parent=63 // pred_check
          %p1932 = pneg %p241
        $region66: #{tpu_custom_call.1} parent=63 // pred_check_branch
          %1934 = sbr.rel (%p1932) target = $region68
        $region67: #{tpu_custom_call.1} parent=63 // pred_region
          %s1935 = sand.u32 %s226, 1
          %s1936 = scalar_lea.sflag [#allocation3], %s1935
          %s1937 = sand.u32 %s226, 1
          %s1938 = smul.addr %s1937, 8
          %s1939 = scalar_lea.vmem [#allocation2], %s1938
          %1941 = dma.done %s1936, 128
        $region68: #{tpu_custom_call.1} parent=63 // pred_fallthru
          _
      $region64: #{tpu_custom_call.1} parent=5 // pred_fallthru
        _
    $region6: #{tpu_custom_call.1} parent=1 // loop_footer
      %s22 = sadd.s32 1, %s18
    $region7: #{tpu_custom_call.1} parent=1 // loop_footer_branch
      %17 = sbr.rel target = $region3
    $region8: #{tpu_custom_call.1} parent=1 // loop_exit
      _
    %1942 = vsyncpa [#allocation3], 1
    %s1943 = scalar_lea.sflag [#allocation3], 1
    %1944 = vsyncpa %s1943, 1

// kernel: tpu_custom_call.1
$region0: #{tpu_custom_call.1}
  #allocation0 [shape = 'u32[]', space=smem, size = 0x4, offset = 0x4, fixed_abs, tag = 'smem constant byte address 0x4 - core index']
  #allocation1 [shape = 'u32[72,128]{1,0:T(1,128)}', space=vmem, size = 0x9000, scoped, tag = 'internal scratch']
  %s0 = inlined_call_operand.vmem [shape: f32[16,64], index: 0, kind: input, shape index: {}]
  %s1 = inlined_call_operand.vmem [shape: f32[64,32], index: 1, kind: input, shape index: {}]
  %s2 = inlined_call_operand.vmem [shape: f32[1,32], index: 2, kind: input, shape index: {}]
  %s3 = inlined_call_operand.vmem [shape: f32[32,256], index: 3, kind: input, shape index: {}]
  %s4 = inlined_call_operand.vmem [shape: f32[1,256], index: 4, kind: input, shape index: {}]
  %s5 = inlined_call_operand.vmem [shape: f32[256,32], index: 5, kind: input, shape index: {}]
  %s6 = inlined_call_operand.vmem [shape: f32[1,32], index: 6, kind: input, shape index: {}]
  %s7 = inlined_call_operand.vmem [shape: f32[32,64], index: 7, kind: input, shape index: {}]
  %s8 = inlined_call_operand.vmem [shape: f32[1,64], index: 8, kind: input, shape index: {}]
  %s9 = inlined_call_operand.hbm [shape: f32[16,64], index: 9, kind: output, shape index: {}]
  %s10 = sld [smem:[#allocation0]]
  $region69: #{tpu_custom_call.1} parent=0
    _
  %s12 = ssub.s32 1, %s10
  %s13 = scalar_select 0, %s12, %s10
  $region1: #{tpu_custom_call.1} parent=0
    #allocation2 [shape = 'u8[8192]{0}', space=vmem, size = 0x2000, scoped, tag = 'output window, operand 0']
    #allocation3 [shape = 's32[2]{0}', space=sflag, size = 0x8, scoped, tag = 'scoped memory for tpu_custom_call.1']
    %14 = vsyncpa [#allocation3], 0
    %s15 = scalar_lea.sflag [#allocation3], 1
    %16 = vsyncpa %s15, 0
    loop: start=0, step=1, limit=4
    $region2: #{tpu_custom_call.1} parent=1 // loop_pre_header
      _
    $region3: #{tpu_custom_call.1} parent=1 // loop_header
      %s18 = sphi 0, %s22
      %p19 = scmp.ge.s32.totalorder %s18, 4
      %s28 = sphi 0, %s30
      %s31 = sphi 0, %s28
      %s32 = sphi 0, %s31
      %s48 = sphi 0, %s32
      %s52 = sphi 0, %s52
      %s54 = sphi 0, %s52
      %s55 = sphi 0, %s54
      %s69 = sphi 0, %s55
      %s73 = sphi 0, %s73
      %s75 = sphi 0, %s73
      %s76 = sphi 0, %s75
      %s90 = sphi 0, %s76
      %s94 = sphi 0, %s94
      %s96 = sphi 0, %s94
      %s97 = sphi 0, %s96
      %s111 = sphi 0, %s97
      %s115 = sphi 0, %s115
      %s117 = sphi 0, %s115
      %s118 = sphi 0, %s117
      %s132 = sphi 0, %s118
      %s136 = sphi 0, %s136
      %s138 = sphi 0, %s136
      %s139 = sphi 0, %s138
      %s153 = sphi 0, %s139
      %s157 = sphi 0, %s157
      %s159 = sphi 0, %s157
      %s160 = sphi 0, %s159
      %s174 = sphi 0, %s160
      %s178 = sphi 0, %s178
      %s180 = sphi 0, %s178
      %s181 = sphi 0, %s180
      %s195 = sphi 0, %s181
      %s199 = sphi 0, %s199
      %s201 = sphi 0, %s199
      %s202 = sphi 0, %s201
      %s216 = sphi 0, %s202
      %s222 = sphi 0, %s224
      %s225 = sphi 0, %s222
      %s226 = sphi 0, %s225
      %s242 = sphi 0, %s226
    $region4: #{tpu_custom_call.1} parent=1 // loop_header_branch
      %21 = sbr.rel (%p19) target = $region8
    $region5: #{tpu_custom_call.1} parent=1 // loop_body
      %s23 = ssub.s32 %s18, 1
      %s24 = ssub.s32 %s18, 2
      %s25 = sadd.s32 %s18, 1
      %s26 = ssub.s32 %s18, %s25
      %p27 = scmp.eq.s32.totalorder %s26, 0
      %s29 = sadd.s32 %s28, 1
      %s30 = scalar_select %p27, %s28, %s29
      %p33 = pneg %p27
      %p34 = scmp.eq.s32.totalorder %s18, 1
      %p35 = por %p33, %p34
      %p36 = scmp.ne.s32.totalorder %s28, %s31
      %p37 = scmp.eq.s32.totalorder %s18, 0
      %p38 = por %p36, %p37
      %p39 = scmp.ne.s32.totalorder %s28, %s31
      %p40 = scmp.eq.s32.totalorder %s23, 1
      %p41 = por %p39, %p40
      %p42 = scmp.ne.s32.totalorder %s31, %s32
      %p43 = scmp.eq.s32.totalorder %s23, 0
      %p44 = por %p42, %p43
      %p45 = scmp.ne.s32.totalorder %s31, %s32
      %p46 = scmp.eq.s32.totalorder %s24, 1
      %p47 = por %p45, %p46
      %p49 = scmp.ne.s32.totalorder %s32, %s48
      %p50 = scmp.eq.s32.totalorder %s24, 0
      %p51 = por %p49, %p50
      %s53 = sadd.s32 %s52, 1
      %p56 = scmp.eq.s32.totalorder %s18, 1
      %p57 = scmp.ne.s32.totalorder %s52, %s54
      %p58 = scmp.eq.s32.totalorder %s18, 0
      %p59 = por %p57, %p58
      %p60 = scmp.ne.s32.totalorder %s52, %s54
      %p61 = scmp.eq.s32.totalorder %s23, 1
      %p62 = por %p60, %p61
      %p63 = scmp.ne.s32.totalorder %s54, %s55
      %p64 = scmp.eq.s32.totalorder %s23, 0
      %p65 = por %p63, %p64
      %p66 = scmp.ne.s32.totalorder %s54, %s55
      %p67 = scmp.eq.s32.totalorder %s24, 1
      %p68 = por %p66, %p67
      %p70 = scmp.ne.s32.totalorder %s55, %s69
      %p71 = scmp.eq.s32.totalorder %s24, 0
      %p72 = por %p70, %p71
      %s74 = sadd.s32 %s73, 1
      %p77 = scmp.eq.s32.totalorder %s18, 1
      %p78 = scmp.ne.s32.totalorder %s73, %s75
      %p79 = scmp.eq.s32.totalorder %s18, 0
      %p80 = por %p78, %p79
      %p81 = scmp.ne.s32.totalorder %s73, %s75
      %p82 = scmp.eq.s32.totalorder %s23, 1
      %p83 = por %p81, %p82
      %p84 = scmp.ne.s32.totalorder %s75, %s76
      %p85 = scmp.eq.s32.totalorder %s23, 0
      %p86 = por %p84, %p85
      %p87 = scmp.ne.s32.totalorder %s75, %s76
      %p88 = scmp.eq.s32.totalorder %s24, 1
      %p89 = por %p87, %p88
      %p91 = scmp.ne.s32.totalorder %s76, %s90
      %p92 = scmp.eq.s32.totalorder %s24, 0
      %p93 = por %p91, %p92
      %s95 = sadd.s32 %s94, 1
      %p98 = scmp.eq.s32.totalorder %s18, 1
      %p99 = scmp.ne.s32.totalorder %s94, %s96
      %p100 = scmp.eq.s32.totalorder %s18, 0
      %p101 = por %p99, %p100
      %p102 = scmp.ne.s32.totalorder %s94, %s96
      %p103 = scmp.eq.s32.totalorder %s23, 1
      %p104 = por %p102, %p103
      %p105 = scmp.ne.s32.totalorder %s96, %s97
      %p106 = scmp.eq.s32.totalorder %s23, 0
      %p107 = por %p105, %p106
      %p108 = scmp.ne.s32.totalorder %s96, %s97
      %p109 = scmp.eq.s32.totalorder %s24, 1
      %p110 = por %p108, %p109
      %p112 = scmp.ne.s32.totalorder %s97, %s111
      %p113 = scmp.eq.s32.totalorder %s24, 0
      %p114 = por %p112, %p113
      %s116 = sadd.s32 %s115, 1
      %p119 = scmp.eq.s32.totalorder %s18, 1
      %p120 = scmp.ne.s32.totalorder %s115, %s117
      %p121 = scmp.eq.s32.totalorder %s18, 0
      %p122 = por %p120, %p121
      %p123 = scmp.ne.s32.totalorder %s115, %s117
      %p124 = scmp.eq.s32.totalorder %s23, 1
      %p125 = por %p123, %p124
      %p126 = scmp.ne.s32.totalorder %s117, %s118
      %p127 = scmp.eq.s32.totalorder %s23, 0
      %p128 = por %p126, %p127
      %p129 = scmp.ne.s32.totalorder %s117, %s118
      %p130 = scmp.eq.s32.totalorder %s24, 1
      %p131 = por %p129, %p130
      %p133 = scmp.ne.s32.totalorder %s118, %s132
      %p134 = scmp.eq.s32.totalorder %s24, 0
      %p135 = por %p133, %p134
      %s137 = sadd.s32 %s136, 1
      %p140 = scmp.eq.s32.totalorder %s18, 1
      %p141 = scmp.ne.s32.totalorder %s136, %s138
      %p142 = scmp.eq.s32.totalorder %s18, 0
      %p143 = por %p141, %p142
      %p144 = scmp.ne.s32.totalorder %s136, %s138
      %p145 = scmp.eq.s32.totalorder %s23, 1
      %p146 = por %p144, %p145
      %p147 = scmp.ne.s32.totalorder %s138, %s139
      %p148 = scmp.eq.s32.totalorder %s23, 0
      %p149 = por %p147, %p148
      %p150 = scmp.ne.s32.totalorder %s138, %s139
      %p151 = scmp.eq.s32.totalorder %s24, 1
      %p152 = por %p150, %p151
      %p154 = scmp.ne.s32.totalorder %s139, %s153
      %p155 = scmp.eq.s32.totalorder %s24, 0
      %p156 = por %p154, %p155
      %s158 = sadd.s32 %s157, 1
      %p161 = scmp.eq.s32.totalorder %s18, 1
      %p162 = scmp.ne.s32.totalorder %s157, %s159
      %p163 = scmp.eq.s32.totalorder %s18, 0
      %p164 = por %p162, %p163
      %p165 = scmp.ne.s32.totalorder %s157, %s159
      %p166 = scmp.eq.s32.totalorder %s23, 1
      %p167 = por %p165, %p166
      %p168 = scmp.ne.s32.totalorder %s159, %s160
      %p169 = scmp.eq.s32.totalorder %s23, 0
      %p170 = por %p168, %p169
      %p171 = scmp.ne.s32.totalorder %s159, %s160
      %p172 = scmp.eq.s32.totalorder %s24, 1
      %p173 = por %p171, %p172
      %p175 = scmp.ne.s32.totalorder %s160, %s174
      %p176 = scmp.eq.s32.totalorder %s24, 0
      %p177 = por %p175, %p176
      %s179 = sadd.s32 %s178, 1
      %p182 = scmp.eq.s32.totalorder %s18, 1
      %p183 = scmp.ne.s32.totalorder %s178, %s180
      %p184 = scmp.eq.s32.totalorder %s18, 0
      %p185 = por %p183, %p184
      %p186 = scmp.ne.s32.totalorder %s178, %s180
      %p187 = scmp.eq.s32.totalorder %s23, 1
      %p188 = por %p186, %p187
      %p189 = scmp.ne.s32.totalorder %s180, %s181
      %p190 = scmp.eq.s32.totalorder %s23, 0
      %p191 = por %p189, %p190
      %p192 = scmp.ne.s32.totalorder %s180, %s181
      %p193 = scmp.eq.s32.totalorder %s24, 1
      %p194 = por %p192, %p193
      %p196 = scmp.ne.s32.totalorder %s181, %s195
      %p197 = scmp.eq.s32.totalorder %s24, 0
      %p198 = por %p196, %p197
      %s200 = sadd.s32 %s199, 1
      %p203 = scmp.eq.s32.totalorder %s18, 1
      %p204 = scmp.ne.s32.totalorder %s199, %s201
      %p205 = scmp.eq.s32.totalorder %s18, 0
      %p206 = por %p204, %p205
      %p207 = scmp.ne.s32.totalorder %s199, %s201
      %p208 = scmp.eq.s32.totalorder %s23, 1
      %p209 = por %p207, %p208
      %p210 = scmp.ne.s32.totalorder %s201, %s202
      %p211 = scmp.eq.s32.totalorder %s23, 0
      %p212 = por %p210, %p211
      %p213 = scmp.ne.s32.totalorder %s201, %s202
      %p214 = scmp.eq.s32.totalorder %s24, 1
      %p215 = por %p213, %p214
      %p217 = scmp.ne.s32.totalorder %s202, %s216
      %p218 = scmp.eq.s32.totalorder %s24, 0
      %p219 = por %p217, %p218
      %s220 = ssub.s32 %s18, %s25
      %p221 = scmp.eq.s32.totalorder %s220, 0
      %s223 = sadd.s32 %s222, 1
      %s224 = scalar_select %p221, %s222, %s223
      %p227 = pneg %p221
      %p228 = scmp.eq.s32.totalorder %s18, 1
      %p229 = por %p227, %p228
      %p230 = scmp.ne.s32.totalorder %s222, %s225
      %p231 = scmp.eq.s32.totalorder %s18, 0
      %p232 = por %p230, %p231
      %p233 = scmp.ne.s32.totalorder %s222, %s225
      %p234 = scmp.eq.s32.totalorder %s23, 1
      %p235 = por %p233, %p234
      %p236 = scmp.ne.s32.totalorder %s225, %s226
      %p237 = scmp.eq.s32.totalorder %s23, 0
      %p238 = por %p236, %p237
      %p239 = scmp.ne.s32.totalorder %s225, %s226
      %p240 = scmp.eq.s32.totalorder %s24, 1
      %p241 = por %p239, %p240
      %p243 = scmp.ne.s32.totalorder %s226, %s242
      %p244 = scmp.eq.s32.totalorder %s24, 0
      %p245 = por %p243, %p244
      %p246 = scmp.le.s32.totalorder 1, %s18
      %p247 = scmp.lt.s32.totalorder %s18, 3
      %p248 = pnand %p246, %p247
      %p249 = pneg %p248
      // Predicated region
      $region9: #{tpu_custom_call.1} parent=5 // pred_check
        _
      $region10: #{tpu_custom_call.1} parent=5 // pred_check_branch
        %251 = sbr.rel (%p248) target = $region12
      $region11: #{tpu_custom_call.1} parent=5 // pred_region
        %s252 = ssub.s32 %s18, 1
        // Predicated region
        $region13: #{tpu_custom_call.1} parent=11 // pred_check
          %p253 = pneg %p65
        $region14: #{tpu_custom_call.1} parent=11 // pred_check_branch
          %255 = sbr.rel (%p253) target = $region16
        $region15: #{tpu_custom_call.1} parent=11 // pred_region
          _
        $region16: #{tpu_custom_call.1} parent=11 // pred_fallthru
          _
        // Predicated region
        $region17: #{tpu_custom_call.1} parent=11 // pred_check
          %p256 = pneg %p86
        $region18: #{tpu_custom_call.1} parent=11 // pred_check_branch
          %258 = sbr.rel (%p256) target = $region20
        $region19: #{tpu_custom_call.1} parent=11 // pred_region
          _
        $region20: #{tpu_custom_call.1} parent=11 // pred_fallthru
          _
        // Predicated region
        $region21: #{tpu_custom_call.1} parent=11 // pred_check
          %p259 = pneg %p107
        $region22: #{tpu_custom_call.1} parent=11 // pred_check_branch
          %261 = sbr.rel (%p259) target = $region24
        $region23: #{tpu_custom_call.1} parent=11 // pred_region
          _
        $region24: #{tpu_custom_call.1} parent=11 // pred_fallthru
          _
        // Predicated region
        $region25: #{tpu_custom_call.1} parent=11 // pred_check
          %p262 = pneg %p128
        $region26: #{tpu_custom_call.1} parent=11 // pred_check_branch
          %264 = sbr.rel (%p262) target = $region28
        $region27: #{tpu_custom_call.1} parent=11 // pred_region
          _
        $region28: #{tpu_custom_call.1} parent=11 // pred_fallthru
          _
        // Predicated region
        $region29: #{tpu_custom_call.1} parent=11 // pred_check
          %p265 = pneg %p149
        $region30: #{tpu_custom_call.1} parent=11 // pred_check_branch
          %267 = sbr.rel (%p265) target = $region32
        $region31: #{tpu_custom_call.1} parent=11 // pred_region
          _
        $region32: #{tpu_custom_call.1} parent=11 // pred_fallthru
          _
        // Predicated region
        $region33: #{tpu_custom_call.1} parent=11 // pred_check
          %p268 = pneg %p170
        $region34: #{tpu_custom_call.1} parent=11 // pred_check_branch
          %270 = sbr.rel (%p268) target = $region36
        $region35: #{tpu_custom_call.1} parent=11 // pred_region
          _
        $region36: #{tpu_custom_call.1} parent=11 // pred_fallthru
          _
        // Predicated region
        $region37: #{tpu_custom_call.1} parent=11 // pred_check
          %p271 = pneg %p191
        $region38: #{tpu_custom_call.1} parent=11 // pred_check_branch
          %273 = sbr.rel (%p271) target = $region40
        $region39: #{tpu_custom_call.1} parent=11 // pred_region
          _
        $region40: #{tpu_custom_call.1} parent=11 // pred_fallthru
          _
        // Predicated region
        $region41: #{tpu_custom_call.1} parent=11 // pred_check
          %p274 = pneg %p212
        $region42: #{tpu_custom_call.1} parent=11 // pred_check_branch
          %276 = sbr.rel (%p274) target = $region44
        $region43: #{tpu_custom_call.1} parent=11 // pred_region
          _
        $region44: #{tpu_custom_call.1} parent=11 // pred_fallthru
          _
      $region12: #{tpu_custom_call.1} parent=5 // pred_fallthru
        _
      %p277 = scmp.lt.s32.totalorder %s18, 2
      // Predicated region
      $region45: #{tpu_custom_call.1} parent=5 // pred_check
        %p278 = pneg %p277
      $region46: #{tpu_custom_call.1} parent=5 // pred_check_branch
        %280 = sbr.rel (%p278) target = $region48
      $region47: #{tpu_custom_call.1} parent=5 // pred_region
        // Predicated region
        $region49: #{tpu_custom_call.1} parent=47 // pred_check
          %p281 = pneg %p38
        $region50: #{tpu_custom_call.1} parent=47 // pred_check_branch
          %283 = sbr.rel (%p281) target = $region52
        $region51: #{tpu_custom_call.1} parent=47 // pred_region
          %p284 = scmp.lt.s32.totalorder %s18, 1
          %s285 = scalar_select %p284, %s18, 1
          %s286 = smul.addr %s285, 8
          %s287 = scalar_lea.vmem %s0, %s286
        $region52: #{tpu_custom_call.1} parent=47 // pred_fallthru
          _
      $region48: #{tpu_custom_call.1} parent=5 // pred_fallthru
        _
      %p288 = scmp.le.s32.totalorder 1, %s18
      %p289 = scmp.lt.s32.totalorder %s18, 3
      %p290 = pnand %p288, %p289
      %p291 = pneg %p290
      // Predicated region
      $region53: #{tpu_custom_call.1} parent=5 // pred_check
        _
      $region54: #{tpu_custom_call.1} parent=5 // pred_check_branch
        %293 = sbr.rel (%p290) target = $region56
      $region55: #{tpu_custom_call.1} parent=5 // pred_region
        %s294 = ssub.s32 %s18, 1
        %p295 = scmp.lt.s32.totalorder %s23, 1
        %s296 = scalar_select %p295, %s23, 1
        %s297 = smul.addr %s296, 8
        %s298 = scalar_lea.vmem %s0, %s297
        %p299 = pneg %p44
        %p300 = pneg %p41
        %p301 = pneg %p65
        %p302 = pneg %p62
        %p303 = pneg %p86
        %p304 = pneg %p83
        %p305 = pneg %p107
        %p306 = pneg %p104
        %p307 = pneg %p128
        %p308 = pneg %p125
        %p309 = pneg %p149
        %p310 = pneg %p146
        %p311 = pneg %p170
        %p312 = pneg %p167
        %p313 = pneg %p191
        %p314 = pneg %p188
        %p315 = pneg %p212
        %p316 = pneg %p209
        %p317 = pneg %p238
        %p318 = pneg %p235
        %s319 = sand.u32 %s225, 1
        %s320 = scalar_lea.sflag [#allocation3], %s319
        %s321 = sand.u32 %s225, 1
        %s322 = smul.addr %s321, 8
        %s323 = scalar_lea.vmem [#allocation2], %s322
        %p324 = scmp.lt.s32.totalorder %s23, 1
        %s325 = scalar_select %p324, %s23, 1
        %s326 = smul.addr %s325, 8
        %s327 = scalar_lea.vmem %s0, %s326
        %v328 = vld [vmem:[%s327] sm:$0xff]
        %v329 = vld [vmem:[%s1] sm:$0xff]
        %v330 = vld [vmem:[%s1 + $0x8] sm:$0xff]
        %v331 = vld [vmem:[%s1 + $0x10] sm:$0xff]
        %v332 = vld [vmem:[%s1 + $0x18] sm:$0xff]
        %v333 = vld [vmem:[%s1 + $0x20] sm:$0xff]
        %v334 = vld [vmem:[%s1 + $0x28] sm:$0xff]
        %v335 = vld [vmem:[%s1 + $0x30] sm:$0xff]
        %v336 = vld [vmem:[%s1 + $0x38] sm:$0xff]
        %v337 = vld [vmem:[%s2] sm:$0x1]
        %v339 = vperm.slane %v337, 0
        %vm341 = vcmask 523264
        %v343 = vsel %vm341, %v328, 0
        %345 = vmatpush.msra.mxu0 0.0
        %346 = vmatpush.msra.mxu0 0.0
        %347 = vmatpush.msra.mxu0 0.0
        %348 = vmatpush.msra.mxu0 0.0
        %349 = vmatpush.msra.mxu0 0.0
        %350 = vmatpush.msra.mxu0 0.0
        %351 = vmatpush.msra.mxu0 0.0
        %352 = vmatpush.msra.mxu0 0.0
        %v353 = vand.u32 %v336, 4294901760
        %354 = vmatpush.msra.mxu0 %v353
        %v355 = vand.u32 %v335, 4294901760
        %356 = vmatpush.msra.mxu0 %v355
        %v357 = vand.u32 %v334, 4294901760
        %358 = vmatpush.msra.mxu0 %v357
        %v359 = vand.u32 %v333, 4294901760
        %360 = vmatpush.msra.mxu0 %v359
        %v361 = vand.u32 %v332, 4294901760
        %362 = vmatpush.msra.mxu0 %v361
        %v363 = vand.u32 %v331, 4294901760
        %364 = vmatpush.msra.mxu0 %v363
        %v365 = vand.u32 %v330, 4294901760
        %366 = vmatpush.msra.mxu0 %v365
        %v367 = vand.u32 %v329, 4294901760
        %368 = vmatpush.msra.mxu0 %v367
        %v369 = vand.u32 %v343, 4294901760
        %v370 = vsub.f32 %v343, %v369
        %v371 = vand.u32 %v370, 4294901760
        %v372 = vsub.f32 %v370, %v371
        %v373 = vand.u32 %v372, 4294901760
        %374 = vmatmul.f32.gmra.mxu0 %v373
        %v375 = vpop.f32.mrf.mxu0
        %v376 = vadd.f32 %v339, %v375
        %377 = vdwg.mxu0
        %378 = vmatpush.msra.mxu0 0.0
        %379 = vmatpush.msra.mxu0 0.0
        %380 = vmatpush.msra.mxu0 0.0
        %381 = vmatpush.msra.mxu0 0.0
        %382 = vmatpush.msra.mxu0 0.0
        %383 = vmatpush.msra.mxu0 0.0
        %384 = vmatpush.msra.mxu0 0.0
        %385 = vmatpush.msra.mxu0 0.0
        %v386 = vand.u32 %v336, 4294901760
        %v387 = vsub.f32 %v336, %v386
        %v388 = vand.u32 %v387, 4294901760
        %v389 = vsub.f32 %v387, %v388
        %v390 = vand.u32 %v389, 4294901760
        %391 = vmatpush.msra.mxu0 %v390
        %v392 = vand.u32 %v335, 4294901760
        %v393 = vsub.f32 %v335, %v392
        %v394 = vand.u32 %v393, 4294901760
        %v395 = vsub.f32 %v393, %v394
        %v396 = vand.u32 %v395, 4294901760
        %397 = vmatpush.msra.mxu0 %v396
        %v398 = vand.u32 %v334, 4294901760
        %v399 = vsub.f32 %v334, %v398
        %v400 = vand.u32 %v399, 4294901760
        %v401 = vsub.f32 %v399, %v400
        %v402 = vand.u32 %v401, 4294901760
        %403 = vmatpush.msra.mxu0 %v402
        %v404 = vand.u32 %v333, 4294901760
        %v405 = vsub.f32 %v333, %v404
        %v406 = vand.u32 %v405, 4294901760
        %v407 = vsub.f32 %v405, %v406
        %v408 = vand.u32 %v407, 4294901760
        %409 = vmatpush.msra.mxu0 %v408
        %v410 = vand.u32 %v332, 4294901760
        %v411 = vsub.f32 %v332, %v410
        %v412 = vand.u32 %v411, 4294901760
        %v413 = vsub.f32 %v411, %v412
        %v414 = vand.u32 %v413, 4294901760
        %415 = vmatpush.msra.mxu0 %v414
        %v416 = vand.u32 %v331, 4294901760
        %v417 = vsub.f32 %v331, %v416
        %v418 = vand.u32 %v417, 4294901760
        %v419 = vsub.f32 %v417, %v418
        %v420 = vand.u32 %v419, 4294901760
        %421 = vmatpush.msra.mxu0 %v420
        %v422 = vand.u32 %v330, 4294901760
        %v423 = vsub.f32 %v330, %v422
        %v424 = vand.u32 %v423, 4294901760
        %v425 = vsub.f32 %v423, %v424
        %v426 = vand.u32 %v425, 4294901760
        %427 = vmatpush.msra.mxu0 %v426
        %v428 = vand.u32 %v329, 4294901760
        %v429 = vsub.f32 %v329, %v428
        %v430 = vand.u32 %v429, 4294901760
        %v431 = vsub.f32 %v429, %v430
        %v432 = vand.u32 %v431, 4294901760
        %433 = vmatpush.msra.mxu0 %v432
        %v434 = vand.u32 %v343, 4294901760
        %435 = vmatmul.f32.gmra.mxu0 %v434
        %v436 = vpop.f32.mrf.mxu0
        %v437 = vadd.f32 %v376, %v436
        %438 = vdwg.mxu0
        %439 = vmatpush.msra.mxu0 0.0
        %440 = vmatpush.msra.mxu0 0.0
        %441 = vmatpush.msra.mxu0 0.0
        %442 = vmatpush.msra.mxu0 0.0
        %443 = vmatpush.msra.mxu0 0.0
        %444 = vmatpush.msra.mxu0 0.0
        %445 = vmatpush.msra.mxu0 0.0
        %446 = vmatpush.msra.mxu0 0.0
        %v447 = vand.u32 %v336, 4294901760
        %v448 = vsub.f32 %v336, %v447
        %449 = vmatpush.msra.mxu0 %v448
        %v450 = vand.u32 %v335, 4294901760
        %v451 = vsub.f32 %v335, %v450
        %452 = vmatpush.msra.mxu0 %v451
        %v453 = vand.u32 %v334, 4294901760
        %v454 = vsub.f32 %v334, %v453
        %455 = vmatpush.msra.mxu0 %v454
        %v456 = vand.u32 %v333, 4294901760
        %v457 = vsub.f32 %v333, %v456
        %458 = vmatpush.msra.mxu0 %v457
        %v459 = vand.u32 %v332, 4294901760
        %v460 = vsub.f32 %v332, %v459
        %461 = vmatpush.msra.mxu0 %v460
        %v462 = vand.u32 %v331, 4294901760
        %v463 = vsub.f32 %v331, %v462
        %464 = vmatpush.msra.mxu0 %v463
        %v465 = vand.u32 %v330, 4294901760
        %v466 = vsub.f32 %v330, %v465
        %467 = vmatpush.msra.mxu0 %v466
        %v468 = vand.u32 %v329, 4294901760
        %v469 = vsub.f32 %v329, %v468
        %470 = vmatpush.msra.mxu0 %v469
        %v471 = vand.u32 %v343, 4294901760
        %v472 = vsub.f32 %v343, %v471
        %473 = vmatmul.f32.gmra.mxu0 %v472
        %v474 = vpop.f32.mrf.mxu0
        %v475 = vadd.f32 %v437, %v474
        %476 = vdwg.mxu0
        %477 = vmatpush.msra.mxu0 0.0
        %478 = vmatpush.msra.mxu0 0.0
        %479 = vmatpush.msra.mxu0 0.0
        %480 = vmatpush.msra.mxu0 0.0
        %481 = vmatpush.msra.mxu0 0.0
        %482 = vmatpush.msra.mxu0 0.0
        %483 = vmatpush.msra.mxu0 0.0
        %484 = vmatpush.msra.mxu0 0.0
        %v485 = vand.u32 %v336, 4294901760
        %486 = vmatpush.msra.mxu0 %v485
        %v487 = vand.u32 %v335, 4294901760
        %488 = vmatpush.msra.mxu0 %v487
        %v489 = vand.u32 %v334, 4294901760
        %490 = vmatpush.msra.mxu0 %v489
        %v491 = vand.u32 %v333, 4294901760
        %492 = vmatpush.msra.mxu0 %v491
        %v493 = vand.u32 %v332, 4294901760
        %494 = vmatpush.msra.mxu0 %v493
        %v495 = vand.u32 %v331, 4294901760
        %496 = vmatpush.msra.mxu0 %v495
        %v497 = vand.u32 %v330, 4294901760
        %498 = vmatpush.msra.mxu0 %v497
        %v499 = vand.u32 %v329, 4294901760
        %500 = vmatpush.msra.mxu0 %v499
        %v501 = vand.u32 %v343, 4294901760
        %v502 = vsub.f32 %v343, %v501
        %v503 = vand.u32 %v502, 4294901760
        %504 = vmatmul.f32.gmra.mxu0 %v503
        %v505 = vpop.f32.mrf.mxu0
        %v506 = vadd.f32 %v475, %v505
        %507 = vdwg.mxu0
        %508 = vmatpush.msra.mxu0 0.0
        %509 = vmatpush.msra.mxu0 0.0
        %510 = vmatpush.msra.mxu0 0.0
        %511 = vmatpush.msra.mxu0 0.0
        %512 = vmatpush.msra.mxu0 0.0
        %513 = vmatpush.msra.mxu0 0.0
        %514 = vmatpush.msra.mxu0 0.0
        %515 = vmatpush.msra.mxu0 0.0
        %v516 = vand.u32 %v336, 4294901760
        %v517 = vsub.f32 %v336, %v516
        %v518 = vand.u32 %v517, 4294901760
        %519 = vmatpush.msra.mxu0 %v518
        %v520 = vand.u32 %v335, 4294901760
        %v521 = vsub.f32 %v335, %v520
        %v522 = vand.u32 %v521, 4294901760
        %523 = vmatpush.msra.mxu0 %v522
        %v524 = vand.u32 %v334, 4294901760
        %v525 = vsub.f32 %v334, %v524
        %v526 = vand.u32 %v525, 4294901760
        %527 = vmatpush.msra.mxu0 %v526
        %v528 = vand.u32 %v333, 4294901760
        %v529 = vsub.f32 %v333, %v528
        %v530 = vand.u32 %v529, 4294901760
        %531 = vmatpush.msra.mxu0 %v530
        %v532 = vand.u32 %v332, 4294901760
        %v533 = vsub.f32 %v332, %v532
        %v534 = vand.u32 %v533, 4294901760
        %535 = vmatpush.msra.mxu0 %v534
        %v536 = vand.u32 %v331, 4294901760
        %v537 = vsub.f32 %v331, %v536
        %v538 = vand.u32 %v537, 4294901760
        %539 = vmatpush.msra.mxu0 %v538
        %v540 = vand.u32 %v330, 4294901760
        %v541 = vsub.f32 %v330, %v540
        %v542 = vand.u32 %v541, 4294901760
        %543 = vmatpush.msra.mxu0 %v542
        %v544 = vand.u32 %v329, 4294901760
        %v545 = vsub.f32 %v329, %v544
        %v546 = vand.u32 %v545, 4294901760
        %547 = vmatpush.msra.mxu0 %v546
        %v548 = vand.u32 %v343, 4294901760
        %549 = vmatmul.f32.gmra.mxu0 %v548
        %v550 = vpop.f32.mrf.mxu0
        %v551 = vadd.f32 %v506, %v550
        %552 = vdwg.mxu0
        %553 = vmatpush.msra.mxu0 0.0
        %554 = vmatpush.msra.mxu0 0.0
        %555 = vmatpush.msra.mxu0 0.0
        %556 = vmatpush.msra.mxu0 0.0
        %557 = vmatpush.msra.mxu0 0.0
        %558 = vmatpush.msra.mxu0 0.0
        %559 = vmatpush.msra.mxu0 0.0
        %560 = vmatpush.msra.mxu0 0.0
        %v561 = vand.u32 %v336, 4294901760
        %562 = vmatpush.msra.mxu0 %v561
        %v563 = vand.u32 %v335, 4294901760
        %564 = vmatpush.msra.mxu0 %v563
        %v565 = vand.u32 %v334, 4294901760
        %566 = vmatpush.msra.mxu0 %v565
        %v567 = vand.u32 %v333, 4294901760
        %568 = vmatpush.msra.mxu0 %v567
        %v569 = vand.u32 %v332, 4294901760
        %570 = vmatpush.msra.mxu0 %v569
        %v571 = vand.u32 %v331, 4294901760
        %572 = vmatpush.msra.mxu0 %v571
        %v573 = vand.u32 %v330, 4294901760
        %574 = vmatpush.msra.mxu0 %v573
        %v575 = vand.u32 %v329, 4294901760
        %576 = vmatpush.msra.mxu0 %v575
        %v577 = vand.u32 %v343, 4294901760
        %578 = vmatmul.f32.gmra.mxu0 %v577
        %v579 = vpop.f32.mrf.mxu0
        %v580 = vadd.f32 %v551, %v579
        %581 = vdwg.mxu0
        %v582 = vmax.f32 %v580, 0.0
        %v583 = vld [vmem:[%s3] sm:$0xff]
        %v584 = vld [vmem:[%s3 + $0x8] sm:$0xff]
        %v585 = vld [vmem:[%s3 + $0x10] sm:$0xff]
        %v586 = vld [vmem:[%s3 + $0x18] sm:$0xff]
        %v587 = vld [vmem:[%s3 + $0x20] sm:$0xff]
        %v588 = vld [vmem:[%s3 + $0x28] sm:$0xff]
        %v589 = vld [vmem:[%s3 + $0x30] sm:$0xff]
        %v590 = vld [vmem:[%s3 + $0x38] sm:$0xff]
        %v591 = vld [vmem:[%s4] sm:$0x3]
        %v593 = vperm.slane %v591, 0
        %v594 = vperm.slane %v591, 1
        %vm597 = vcmask 261120
        %v599 = vsel %vm597, %v582, 0
        %601 = vmatpush.msra.mxu0 0.0
        %602 = vmatpush.msra.mxu0 0.0
        %603 = vmatpush.msra.mxu0 0.0
        %604 = vmatpush.msra.mxu0 0.0
        %605 = vmatpush.msra.mxu0 0.0
        %606 = vmatpush.msra.mxu0 0.0
        %607 = vmatpush.msra.mxu0 0.0
        %608 = vmatpush.msra.mxu0 0.0
        %609 = vmatpush.msra.mxu0 0.0
        %610 = vmatpush.msra.mxu0 0.0
        %611 = vmatpush.msra.mxu0 0.0
        %612 = vmatpush.msra.mxu0 0.0
        %v613 = vand.u32 %v589, 4294901760
        %614 = vmatpush.msra.mxu0 %v613
        %v615 = vand.u32 %v587, 4294901760
        %616 = vmatpush.msra.mxu0 %v615
        %v617 = vand.u32 %v585, 4294901760
        %618 = vmatpush.msra.mxu0 %v617
        %v619 = vand.u32 %v583, 4294901760
        %620 = vmatpush.msra.mxu0 %v619
        %v621 = vand.u32 %v599, 4294901760
        %v622 = vsub.f32 %v599, %v621
        %v623 = vand.u32 %v622, 4294901760
        %v624 = vsub.f32 %v622, %v623
        %v625 = vand.u32 %v624, 4294901760
        %626 = vmatmul.f32.gmra.mxu0 %v625
        %v627 = vpop.f32.mrf.mxu0
        %v628 = vadd.f32 %v593, %v627
        %629 = vdwg.mxu0
        %630 = vmatpush.msra.mxu0 0.0
        %631 = vmatpush.msra.mxu0 0.0
        %632 = vmatpush.msra.mxu0 0.0
        %633 = vmatpush.msra.mxu0 0.0
        %634 = vmatpush.msra.mxu0 0.0
        %635 = vmatpush.msra.mxu0 0.0
        %636 = vmatpush.msra.mxu0 0.0
        %637 = vmatpush.msra.mxu0 0.0
        %638 = vmatpush.msra.mxu0 0.0
        %639 = vmatpush.msra.mxu0 0.0
        %640 = vmatpush.msra.mxu0 0.0
        %641 = vmatpush.msra.mxu0 0.0
        %v642 = vand.u32 %v589, 4294901760
        %v643 = vsub.f32 %v589, %v642
        %v644 = vand.u32 %v643, 4294901760
        %v645 = vsub.f32 %v643, %v644
        %v646 = vand.u32 %v645, 4294901760
        %647 = vmatpush.msra.mxu0 %v646
        %v648 = vand.u32 %v587, 4294901760
        %v649 = vsub.f32 %v587, %v648
        %v650 = vand.u32 %v649, 4294901760
        %v651 = vsub.f32 %v649, %v650
        %v652 = vand.u32 %v651, 4294901760
        %653 = vmatpush.msra.mxu0 %v652
        %v654 = vand.u32 %v585, 4294901760
        %v655 = vsub.f32 %v585, %v654
        %v656 = vand.u32 %v655, 4294901760
        %v657 = vsub.f32 %v655, %v656
        %v658 = vand.u32 %v657, 4294901760
        %659 = vmatpush.msra.mxu0 %v658
        %v660 = vand.u32 %v583, 4294901760
        %v661 = vsub.f32 %v583, %v660
        %v662 = vand.u32 %v661, 4294901760
        %v663 = vsub.f32 %v661, %v662
        %v664 = vand.u32 %v663, 4294901760
        %665 = vmatpush.msra.mxu0 %v664
        %v666 = vand.u32 %v599, 4294901760
        %667 = vmatmul.f32.gmra.mxu0 %v666
        %v668 = vpop.f32.mrf.mxu0
        %v669 = vadd.f32 %v628, %v668
        %670 = vdwg.mxu0
        %671 = vmatpush.msra.mxu0 0.0
        %672 = vmatpush.msra.mxu0 0.0
        %673 = vmatpush.msra.mxu0 0.0
        %674 = vmatpush.msra.mxu0 0.0
        %675 = vmatpush.msra.mxu0 0.0
        %676 = vmatpush.msra.mxu0 0.0
        %677 = vmatpush.msra.mxu0 0.0
        %678 = vmatpush.msra.mxu0 0.0
        %679 = vmatpush.msra.mxu0 0.0
        %680 = vmatpush.msra.mxu0 0.0
        %681 = vmatpush.msra.mxu0 0.0
        %682 = vmatpush.msra.mxu0 0.0
        %v683 = vand.u32 %v589, 4294901760
        %v684 = vsub.f32 %v589, %v683
        %685 = vmatpush.msra.mxu0 %v684
        %v686 = vand.u32 %v587, 4294901760
        %v687 = vsub.f32 %v587, %v686
        %688 = vmatpush.msra.mxu0 %v687
        %v689 = vand.u32 %v585, 4294901760
        %v690 = vsub.f32 %v585, %v689
        %691 = vmatpush.msra.mxu0 %v690
        %v692 = vand.u32 %v583, 4294901760
        %v693 = vsub.f32 %v583, %v692
        %694 = vmatpush.msra.mxu0 %v693
        %v695 = vand.u32 %v599, 4294901760
        %v696 = vsub.f32 %v599, %v695
        %697 = vmatmul.f32.gmra.mxu0 %v696
        %v698 = vpop.f32.mrf.mxu0
        %v699 = vadd.f32 %v669, %v698
        %700 = vdwg.mxu0
        %701 = vmatpush.msra.mxu0 0.0
        %702 = vmatpush.msra.mxu0 0.0
        %703 = vmatpush.msra.mxu0 0.0
        %704 = vmatpush.msra.mxu0 0.0
        %705 = vmatpush.msra.mxu0 0.0
        %706 = vmatpush.msra.mxu0 0.0
        %707 = vmatpush.msra.mxu0 0.0
        %708 = vmatpush.msra.mxu0 0.0
        %709 = vmatpush.msra.mxu0 0.0
        %710 = vmatpush.msra.mxu0 0.0
        %711 = vmatpush.msra.mxu0 0.0
        %712 = vmatpush.msra.mxu0 0.0
        %v713 = vand.u32 %v589, 4294901760
        %714 = vmatpush.msra.mxu0 %v713
        %v715 = vand.u32 %v587, 4294901760
        %716 = vmatpush.msra.mxu0 %v715
        %v717 = vand.u32 %v585, 4294901760
        %718 = vmatpush.msra.mxu0 %v717
        %v719 = vand.u32 %v583, 4294901760
        %720 = vmatpush.msra.mxu0 %v719
        %v721 = vand.u32 %v599, 4294901760
        %v722 = vsub.f32 %v599, %v721
        %v723 = vand.u32 %v722, 4294901760
        %724 = vmatmul.f32.gmra.mxu0 %v723
        %v725 = vpop.f32.mrf.mxu0
        %v726 = vadd.f32 %v699, %v725
        %727 = vdwg.mxu0
        %728 = vmatpush.msra.mxu0 0.0
        %729 = vmatpush.msra.mxu0 0.0
        %730 = vmatpush.msra.mxu0 0.0
        %731 = vmatpush.msra.mxu0 0.0
        %732 = vmatpush.msra.mxu0 0.0
        %733 = vmatpush.msra.mxu0 0.0
        %734 = vmatpush.msra.mxu0 0.0
        %735 = vmatpush.msra.mxu0 0.0
        %736 = vmatpush.msra.mxu0 0.0
        %737 = vmatpush.msra.mxu0 0.0
        %738 = vmatpush.msra.mxu0 0.0
        %739 = vmatpush.msra.mxu0 0.0
        %v740 = vand.u32 %v589, 4294901760
        %v741 = vsub.f32 %v589, %v740
        %v742 = vand.u32 %v741, 4294901760
        %743 = vmatpush.msra.mxu0 %v742
        %v744 = vand.u32 %v587, 4294901760
        %v745 = vsub.f32 %v587, %v744
        %v746 = vand.u32 %v745, 4294901760
        %747 = vmatpush.msra.mxu0 %v746
        %v748 = vand.u32 %v585, 4294901760
        %v749 = vsub.f32 %v585, %v748
        %v750 = vand.u32 %v749, 4294901760
        %751 = vmatpush.msra.mxu0 %v750
        %v752 = vand.u32 %v583, 4294901760
        %v753 = vsub.f32 %v583, %v752
        %v754 = vand.u32 %v753, 4294901760
        %755 = vmatpush.msra.mxu0 %v754
        %v756 = vand.u32 %v599, 4294901760
        %757 = vmatmul.f32.gmra.mxu0 %v756
        %v758 = vpop.f32.mrf.mxu0
        %v759 = vadd.f32 %v726, %v758
        %760 = vdwg.mxu0
        %761 = vmatpush.msra.mxu0 0.0
        %762 = vmatpush.msra.mxu0 0.0
        %763 = vmatpush.msra.mxu0 0.0
        %764 = vmatpush.msra.mxu0 0.0
        %765 = vmatpush.msra.mxu0 0.0
        %766 = vmatpush.msra.mxu0 0.0
        %767 = vmatpush.msra.mxu0 0.0
        %768 = vmatpush.msra.mxu0 0.0
        %769 = vmatpush.msra.mxu0 0.0
        %770 = vmatpush.msra.mxu0 0.0
        %771 = vmatpush.msra.mxu0 0.0
        %772 = vmatpush.msra.mxu0 0.0
        %v773 = vand.u32 %v589, 4294901760
        %774 = vmatpush.msra.mxu0 %v773
        %v775 = vand.u32 %v587, 4294901760
        %776 = vmatpush.msra.mxu0 %v775
        %v777 = vand.u32 %v585, 4294901760
        %778 = vmatpush.msra.mxu0 %v777
        %v779 = vand.u32 %v583, 4294901760
        %780 = vmatpush.msra.mxu0 %v779
        %v781 = vand.u32 %v599, 4294901760
        %782 = vmatmul.f32.gmra.mxu0 %v781
        %v783 = vpop.f32.mrf.mxu0
        %v784 = vadd.f32 %v759, %v783
        %785 = vdwg.mxu0
        %786 = vmatpush.msra.mxu0 0.0
        %787 = vmatpush.msra.mxu0 0.0
        %788 = vmatpush.msra.mxu0 0.0
        %789 = vmatpush.msra.mxu0 0.0
        %790 = vmatpush.msra.mxu0 0.0
        %791 = vmatpush.msra.mxu0 0.0
        %792 = vmatpush.msra.mxu0 0.0
        %793 = vmatpush.msra.mxu0 0.0
        %794 = vmatpush.msra.mxu0 0.0
        %795 = vmatpush.msra.mxu0 0.0
        %796 = vmatpush.msra.mxu0 0.0
        %797 = vmatpush.msra.mxu0 0.0
        %v798 = vand.u32 %v590, 4294901760
        %799 = vmatpush.msra.mxu0 %v798
        %v800 = vand.u32 %v588, 4294901760
        %801 = vmatpush.msra.mxu0 %v800
        %v802 = vand.u32 %v586, 4294901760
        %803 = vmatpush.msra.mxu0 %v802
        %v804 = vand.u32 %v584, 4294901760
        %805 = vmatpush.msra.mxu0 %v804
        %v806 = vand.u32 %v599, 4294901760
        %v807 = vsub.f32 %v599, %v806
        %v808 = vand.u32 %v807, 4294901760
        %v809 = vsub.f32 %v807, %v808
        %v810 = vand.u32 %v809, 4294901760
        %811 = vmatmul.f32.gmra.mxu0 %v810
        %v812 = vpop.f32.mrf.mxu0
        %v813 = vadd.f32 %v594, %v812
        %814 = vdwg.mxu0
        %815 = vmatpush.msra.mxu0 0.0
        %816 = vmatpush.msra.mxu0 0.0
        %817 = vmatpush.msra.mxu0 0.0
        %818 = vmatpush.msra.mxu0 0.0
        %819 = vmatpush.msra.mxu0 0.0
        %820 = vmatpush.msra.mxu0 0.0
        %821 = vmatpush.msra.mxu0 0.0
        %822 = vmatpush.msra.mxu0 0.0
        %823 = vmatpush.msra.mxu0 0.0
        %824 = vmatpush.msra.mxu0 0.0
        %825 = vmatpush.msra.mxu0 0.0
        %826 = vmatpush.msra.mxu0 0.0
        %v827 = vand.u32 %v590, 4294901760
        %v828 = vsub.f32 %v590, %v827
        %v829 = vand.u32 %v828, 4294901760
        %v830 = vsub.f32 %v828, %v829
        %v831 = vand.u32 %v830, 4294901760
        %832 = vmatpush.msra.mxu0 %v831
        %v833 = vand.u32 %v588, 4294901760
        %v834 = vsub.f32 %v588, %v833
        %v835 = vand.u32 %v834, 4294901760
        %v836 = vsub.f32 %v834, %v835
        %v837 = vand.u32 %v836, 4294901760
        %838 = vmatpush.msra.mxu0 %v837
        %v839 = vand.u32 %v586, 4294901760
        %v840 = vsub.f32 %v586, %v839
        %v841 = vand.u32 %v840, 4294901760
        %v842 = vsub.f32 %v840, %v841
        %v843 = vand.u32 %v842, 4294901760
        %844 = vmatpush.msra.mxu0 %v843
        %v845 = vand.u32 %v584, 4294901760
        %v846 = vsub.f32 %v584, %v845
        %v847 = vand.u32 %v846, 4294901760
        %v848 = vsub.f32 %v846, %v847
        %v849 = vand.u32 %v848, 4294901760
        %850 = vmatpush.msra.mxu0 %v849
        %v851 = vand.u32 %v599, 4294901760
        %852 = vmatmul.f32.gmra.mxu0 %v851
        %v853 = vpop.f32.mrf.mxu0
        %v854 = vadd.f32 %v813, %v853
        %855 = vdwg.mxu0
        %856 = vmatpush.msra.mxu0 0.0
        %857 = vmatpush.msra.mxu0 0.0
        %858 = vmatpush.msra.mxu0 0.0
        %859 = vmatpush.msra.mxu0 0.0
        %860 = vmatpush.msra.mxu0 0.0
        %861 = vmatpush.msra.mxu0 0.0
        %862 = vmatpush.msra.mxu0 0.0
        %863 = vmatpush.msra.mxu0 0.0
        %864 = vmatpush.msra.mxu0 0.0
        %865 = vmatpush.msra.mxu0 0.0
        %866 = vmatpush.msra.mxu0 0.0
        %867 = vmatpush.msra.mxu0 0.0
        %v868 = vand.u32 %v590, 4294901760
        %v869 = vsub.f32 %v590, %v868
        %870 = vmatpush.msra.mxu0 %v869
        %v871 = vand.u32 %v588, 4294901760
        %v872 = vsub.f32 %v588, %v871
        %873 = vmatpush.msra.mxu0 %v872
        %v874 = vand.u32 %v586, 4294901760
        %v875 = vsub.f32 %v586, %v874
        %876 = vmatpush.msra.mxu0 %v875
        %v877 = vand.u32 %v584, 4294901760
        %v878 = vsub.f32 %v584, %v877
        %879 = vmatpush.msra.mxu0 %v878
        %v880 = vand.u32 %v599, 4294901760
        %v881 = vsub.f32 %v599, %v880
        %882 = vmatmul.f32.gmra.mxu0 %v881
        %v883 = vpop.f32.mrf.mxu0
        %v884 = vadd.f32 %v854, %v883
        %885 = vdwg.mxu0
        %886 = vmatpush.msra.mxu0 0.0
        %887 = vmatpush.msra.mxu0 0.0
        %888 = vmatpush.msra.mxu0 0.0
        %889 = vmatpush.msra.mxu0 0.0
        %890 = vmatpush.msra.mxu0 0.0
        %891 = vmatpush.msra.mxu0 0.0
        %892 = vmatpush.msra.mxu0 0.0
        %893 = vmatpush.msra.mxu0 0.0
        %894 = vmatpush.msra.mxu0 0.0
        %895 = vmatpush.msra.mxu0 0.0
        %896 = vmatpush.msra.mxu0 0.0
        %897 = vmatpush.msra.mxu0 0.0
        %v898 = vand.u32 %v590, 4294901760
        %899 = vmatpush.msra.mxu0 %v898
        %v900 = vand.u32 %v588, 4294901760
        %901 = vmatpush.msra.mxu0 %v900
        %v902 = vand.u32 %v586, 4294901760
        %903 = vmatpush.msra.mxu0 %v902
        %v904 = vand.u32 %v584, 4294901760
        %905 = vmatpush.msra.mxu0 %v904
        %v906 = vand.u32 %v599, 4294901760
        %v907 = vsub.f32 %v599, %v906
        %v908 = vand.u32 %v907, 4294901760
        %909 = vmatmul.f32.gmra.mxu0 %v908
        %v910 = vpop.f32.mrf.mxu0
        %v911 = vadd.f32 %v884, %v910
        %912 = vdwg.mxu0
        %913 = vmatpush.msra.mxu0 0.0
        %914 = vmatpush.msra.mxu0 0.0
        %915 = vmatpush.msra.mxu0 0.0
        %916 = vmatpush.msra.mxu0 0.0
        %917 = vmatpush.msra.mxu0 0.0
        %918 = vmatpush.msra.mxu0 0.0
        %919 = vmatpush.msra.mxu0 0.0
        %920 = vmatpush.msra.mxu0 0.0
        %921 = vmatpush.msra.mxu0 0.0
        %922 = vmatpush.msra.mxu0 0.0
        %923 = vmatpush.msra.mxu0 0.0
        %924 = vmatpush.msra.mxu0 0.0
        %v925 = vand.u32 %v590, 4294901760
        %v926 = vsub.f32 %v590, %v925
        %v927 = vand.u32 %v926, 4294901760
        %928 = vmatpush.msra.mxu0 %v927
        %v929 = vand.u32 %v588, 4294901760
        %v930 = vsub.f32 %v588, %v929
        %v931 = vand.u32 %v930, 4294901760
        %932 = vmatpush.msra.mxu0 %v931
        %v933 = vand.u32 %v586, 4294901760
        %v934 = vsub.f32 %v586, %v933
        %v935 = vand.u32 %v934, 4294901760
        %936 = vmatpush.msra.mxu0 %v935
        %v937 = vand.u32 %v584, 4294901760
        %v938 = vsub.f32 %v584, %v937
        %v939 = vand.u32 %v938, 4294901760
        %940 = vmatpush.msra.mxu0 %v939
        %v941 = vand.u32 %v599, 4294901760
        %942 = vmatmul.f32.gmra.mxu0 %v941
        %v943 = vpop.f32.mrf.mxu0
        %v944 = vadd.f32 %v911, %v943
        %945 = vdwg.mxu0
        %946 = vmatpush.msra.mxu0 0.0
        %947 = vmatpush.msra.mxu0 0.0
        %948 = vmatpush.msra.mxu0 0.0
        %949 = vmatpush.msra.mxu0 0.0
        %950 = vmatpush.msra.mxu0 0.0
        %951 = vmatpush.msra.mxu0 0.0
        %952 = vmatpush.msra.mxu0 0.0
        %953 = vmatpush.msra.mxu0 0.0
        %954 = vmatpush.msra.mxu0 0.0
        %955 = vmatpush.msra.mxu0 0.0
        %956 = vmatpush.msra.mxu0 0.0
        %957 = vmatpush.msra.mxu0 0.0
        %v958 = vand.u32 %v590, 4294901760
        %959 = vmatpush.msra.mxu0 %v958
        %v960 = vand.u32 %v588, 4294901760
        %961 = vmatpush.msra.mxu0 %v960
        %v962 = vand.u32 %v586, 4294901760
        %963 = vmatpush.msra.mxu0 %v962
        %v964 = vand.u32 %v584, 4294901760
        %965 = vmatpush.msra.mxu0 %v964
        %v966 = vand.u32 %v599, 4294901760
        %967 = vmatmul.f32.gmra.mxu0 %v966
        %v968 = vpop.f32.mrf.mxu0
        %v969 = vadd.f32 %v944, %v968
        %970 = vdwg.mxu0
        %v971 = vmax.f32 %v784, 0.0
        %v972 = vmax.f32 %v969, 0.0
        %v973 = vld [vmem:[%s5] sm:$0xff]
        %v974 = vld [vmem:[%s5 + $0x8] sm:$0xff]
        %v975 = vld [vmem:[%s5 + $0x10] sm:$0xff]
        %v976 = vld [vmem:[%s5 + $0x18] sm:$0xff]
        %v977 = vld [vmem:[%s5 + $0x20] sm:$0xff]
        %v978 = vld [vmem:[%s5 + $0x28] sm:$0xff]
        %v979 = vld [vmem:[%s5 + $0x30] sm:$0xff]
        %v980 = vld [vmem:[%s5 + $0x38] sm:$0xff]
        %v981 = vld [vmem:[%s5 + $0x40] sm:$0xff]
        %v982 = vld [vmem:[%s5 + $0x48] sm:$0xff]
        %v983 = vld [vmem:[%s5 + $0x50] sm:$0xff]
        %v984 = vld [vmem:[%s5 + $0x58] sm:$0xff]
        %v985 = vld [vmem:[%s5 + $0x60] sm:$0xff]
        %v986 = vld [vmem:[%s5 + $0x68] sm:$0xff]
        %v987 = vld [vmem:[%s5 + $0x70] sm:$0xff]
        %v988 = vld [vmem:[%s5 + $0x78] sm:$0xff]
        %v989 = vld [vmem:[%s5 + $0x80] sm:$0xff]
        %v990 = vld [vmem:[%s5 + $0x88] sm:$0xff]
        %v991 = vld [vmem:[%s5 + $0x90] sm:$0xff]
        %v992 = vld [vmem:[%s5 + $0x98] sm:$0xff]
        %v993 = vld [vmem:[%s5 + $0xa0] sm:$0xff]
        %v994 = vld [vmem:[%s5 + $0xa8] sm:$0xff]
        %v995 = vld [vmem:[%s5 + $0xb0] sm:$0xff]
        %v996 = vld [vmem:[%s5 + $0xb8] sm:$0xff]
        %v997 = vld [vmem:[%s5 + $0xc0] sm:$0xff]
        %v998 = vld [vmem:[%s5 + $0xc8] sm:$0xff]
        %v999 = vld [vmem:[%s5 + $0xd0] sm:$0xff]
        %v1000 = vld [vmem:[%s5 + $0xd8] sm:$0xff]
        %v1001 = vld [vmem:[%s5 + $0xe0] sm:$0xff]
        %v1002 = vld [vmem:[%s5 + $0xe8] sm:$0xff]
        %v1003 = vld [vmem:[%s5 + $0xf0] sm:$0xff]
        %v1004 = vld [vmem:[%s5 + $0xf8] sm:$0xff]
        %v1005 = vld [vmem:[%s6] sm:$0x1]
        %v1007 = vperm.slane %v1005, 0
        %v1009 = vand.u32 %v988, 4294901760
        %1010 = vmatpush.msra.mxu0 %v1009
        %v1011 = vand.u32 %v987, 4294901760
        %1012 = vmatpush.msra.mxu0 %v1011
        %v1013 = vand.u32 %v986, 4294901760
        %1014 = vmatpush.msra.mxu0 %v1013
        %v1015 = vand.u32 %v985, 4294901760
        %1016 = vmatpush.msra.mxu0 %v1015
        %v1017 = vand.u32 %v984, 4294901760
        %1018 = vmatpush.msra.mxu0 %v1017
        %v1019 = vand.u32 %v983, 4294901760
        %1020 = vmatpush.msra.mxu0 %v1019
        %v1021 = vand.u32 %v982, 4294901760
        %1022 = vmatpush.msra.mxu0 %v1021
        %v1023 = vand.u32 %v981, 4294901760
        %1024 = vmatpush.msra.mxu0 %v1023
        %v1025 = vand.u32 %v980, 4294901760
        %1026 = vmatpush.msra.mxu0 %v1025
        %v1027 = vand.u32 %v979, 4294901760
        %1028 = vmatpush.msra.mxu0 %v1027
        %v1029 = vand.u32 %v978, 4294901760
        %1030 = vmatpush.msra.mxu0 %v1029
        %v1031 = vand.u32 %v977, 4294901760
        %1032 = vmatpush.msra.mxu0 %v1031
        %v1033 = vand.u32 %v976, 4294901760
        %1034 = vmatpush.msra.mxu0 %v1033
        %v1035 = vand.u32 %v975, 4294901760
        %1036 = vmatpush.msra.mxu0 %v1035
        %v1037 = vand.u32 %v974, 4294901760
        %1038 = vmatpush.msra.mxu0 %v1037
        %v1039 = vand.u32 %v973, 4294901760
        %1040 = vmatpush.msra.mxu0 %v1039
        %v1041 = vand.u32 %v971, 4294901760
        %v1042 = vsub.f32 %v971, %v1041
        %v1043 = vand.u32 %v1042, 4294901760
        %v1044 = vsub.f32 %v1042, %v1043
        %v1045 = vand.u32 %v1044, 4294901760
        %1046 = vmatmul.f32.gmra.mxu0 %v1045
        %v1047 = vpop.f32.mrf.mxu0
        %v1048 = vadd.f32 %v1007, %v1047
        %1049 = vdwg.mxu0
        %v1050 = vand.u32 %v988, 4294901760
        %v1051 = vsub.f32 %v988, %v1050
        %v1052 = vand.u32 %v1051, 4294901760
        %v1053 = vsub.f32 %v1051, %v1052
        %v1054 = vand.u32 %v1053, 4294901760
        %1055 = vmatpush.msra.mxu0 %v1054
        %v1056 = vand.u32 %v987, 4294901760
        %v1057 = vsub.f32 %v987, %v1056
        %v1058 = vand.u32 %v1057, 4294901760
        %v1059 = vsub.f32 %v1057, %v1058
        %v1060 = vand.u32 %v1059, 4294901760
        %1061 = vmatpush.msra.mxu0 %v1060
        %v1062 = vand.u32 %v986, 4294901760
        %v1063 = vsub.f32 %v986, %v1062
        %v1064 = vand.u32 %v1063, 4294901760
        %v1065 = vsub.f32 %v1063, %v1064
        %v1066 = vand.u32 %v1065, 4294901760
        %1067 = vmatpush.msra.mxu0 %v1066
        %v1068 = vand.u32 %v985, 4294901760
        %v1069 = vsub.f32 %v985, %v1068
        %v1070 = vand.u32 %v1069, 4294901760
        %v1071 = vsub.f32 %v1069, %v1070
        %v1072 = vand.u32 %v1071, 4294901760
        %1073 = vmatpush.msra.mxu0 %v1072
        %v1074 = vand.u32 %v984, 4294901760
        %v1075 = vsub.f32 %v984, %v1074
        %v1076 = vand.u32 %v1075, 4294901760
        %v1077 = vsub.f32 %v1075, %v1076
        %v1078 = vand.u32 %v1077, 4294901760
        %1079 = vmatpush.msra.mxu0 %v1078
        %v1080 = vand.u32 %v983, 4294901760
        %v1081 = vsub.f32 %v983, %v1080
        %v1082 = vand.u32 %v1081, 4294901760
        %v1083 = vsub.f32 %v1081, %v1082
        %v1084 = vand.u32 %v1083, 4294901760
        %1085 = vmatpush.msra.mxu0 %v1084
        %v1086 = vand.u32 %v982, 4294901760
        %v1087 = vsub.f32 %v982, %v1086
        %v1088 = vand.u32 %v1087, 4294901760
        %v1089 = vsub.f32 %v1087, %v1088
        %v1090 = vand.u32 %v1089, 4294901760
        %1091 = vmatpush.msra.mxu0 %v1090
        %v1092 = vand.u32 %v981, 4294901760
        %v1093 = vsub.f32 %v981, %v1092
        %v1094 = vand.u32 %v1093, 4294901760
        %v1095 = vsub.f32 %v1093, %v1094
        %v1096 = vand.u32 %v1095, 4294901760
        %1097 = vmatpush.msra.mxu0 %v1096
        %v1098 = vand.u32 %v980, 4294901760
        %v1099 = vsub.f32 %v980, %v1098
        %v1100 = vand.u32 %v1099, 4294901760
        %v1101 = vsub.f32 %v1099, %v1100
        %v1102 = vand.u32 %v1101, 4294901760
        %1103 = vmatpush.msra.mxu0 %v1102
        %v1104 = vand.u32 %v979, 4294901760
        %v1105 = vsub.f32 %v979, %v1104
        %v1106 = vand.u32 %v1105, 4294901760
        %v1107 = vsub.f32 %v1105, %v1106
        %v1108 = vand.u32 %v1107, 4294901760
        %1109 = vmatpush.msra.mxu0 %v1108
        %v1110 = vand.u32 %v978, 4294901760
        %v1111 = vsub.f32 %v978, %v1110
        %v1112 = vand.u32 %v1111, 4294901760
        %v1113 = vsub.f32 %v1111, %v1112
        %v1114 = vand.u32 %v1113, 4294901760
        %1115 = vmatpush.msra.mxu0 %v1114
        %v1116 = vand.u32 %v977, 4294901760
        %v1117 = vsub.f32 %v977, %v1116
        %v1118 = vand.u32 %v1117, 4294901760
        %v1119 = vsub.f32 %v1117, %v1118
        %v1120 = vand.u32 %v1119, 4294901760
        %1121 = vmatpush.msra.mxu0 %v1120
        %v1122 = vand.u32 %v976, 4294901760
        %v1123 = vsub.f32 %v976, %v1122
        %v1124 = vand.u32 %v1123, 4294901760
        %v1125 = vsub.f32 %v1123, %v1124
        %v1126 = vand.u32 %v1125, 4294901760
        %1127 = vmatpush.msra.mxu0 %v1126
        %v1128 = vand.u32 %v975, 4294901760
        %v1129 = vsub.f32 %v975, %v1128
        %v1130 = vand.u32 %v1129, 4294901760
        %v1131 = vsub.f32 %v1129, %v1130
        %v1132 = vand.u32 %v1131, 4294901760
        %1133 = vmatpush.msra.mxu0 %v1132
        %v1134 = vand.u32 %v974, 4294901760
        %v1135 = vsub.f32 %v974, %v1134
        %v1136 = vand.u32 %v1135, 4294901760
        %v1137 = vsub.f32 %v1135, %v1136
        %v1138 = vand.u32 %v1137, 4294901760
        %1139 = vmatpush.msra.mxu0 %v1138
        %v1140 = vand.u32 %v973, 4294901760
        %v1141 = vsub.f32 %v973, %v1140
        %v1142 = vand.u32 %v1141, 4294901760
        %v1143 = vsub.f32 %v1141, %v1142
        %v1144 = vand.u32 %v1143, 4294901760
        %1145 = vmatpush.msra.mxu0 %v1144
        %v1146 = vand.u32 %v971, 4294901760
        %1147 = vmatmul.f32.gmra.mxu0 %v1146
        %v1148 = vpop.f32.mrf.mxu0
        %v1149 = vadd.f32 %v1048, %v1148
        %1150 = vdwg.mxu0
        %v1151 = vand.u32 %v988, 4294901760
        %v1152 = vsub.f32 %v988, %v1151
        %1153 = vmatpush.msra.mxu0 %v1152
        %v1154 = vand.u32 %v987, 4294901760
        %v1155 = vsub.f32 %v987, %v1154
        %1156 = vmatpush.msra.mxu0 %v1155
        %v1157 = vand.u32 %v986, 4294901760
        %v1158 = vsub.f32 %v986, %v1157
        %1159 = vmatpush.msra.mxu0 %v1158
        %v1160 = vand.u32 %v985, 4294901760
        %v1161 = vsub.f32 %v985, %v1160
        %1162 = vmatpush.msra.mxu0 %v1161
        %v1163 = vand.u32 %v984, 4294901760
        %v1164 = vsub.f32 %v984, %v1163
        %1165 = vmatpush.msra.mxu0 %v1164
        %v1166 = vand.u32 %v983, 4294901760
        %v1167 = vsub.f32 %v983, %v1166
        %1168 = vmatpush.msra.mxu0 %v1167
        %v1169 = vand.u32 %v982, 4294901760
        %v1170 = vsub.f32 %v982, %v1169
        %1171 = vmatpush.msra.mxu0 %v1170
        %v1172 = vand.u32 %v981, 4294901760
        %v1173 = vsub.f32 %v981, %v1172
        %1174 = vmatpush.msra.mxu0 %v1173
        %v1175 = vand.u32 %v980, 4294901760
        %v1176 = vsub.f32 %v980, %v1175
        %1177 = vmatpush.msra.mxu0 %v1176
        %v1178 = vand.u32 %v979, 4294901760
        %v1179 = vsub.f32 %v979, %v1178
        %1180 = vmatpush.msra.mxu0 %v1179
        %v1181 = vand.u32 %v978, 4294901760
        %v1182 = vsub.f32 %v978, %v1181
        %1183 = vmatpush.msra.mxu0 %v1182
        %v1184 = vand.u32 %v977, 4294901760
        %v1185 = vsub.f32 %v977, %v1184
        %1186 = vmatpush.msra.mxu0 %v1185
        %v1187 = vand.u32 %v976, 4294901760
        %v1188 = vsub.f32 %v976, %v1187
        %1189 = vmatpush.msra.mxu0 %v1188
        %v1190 = vand.u32 %v975, 4294901760
        %v1191 = vsub.f32 %v975, %v1190
        %1192 = vmatpush.msra.mxu0 %v1191
        %v1193 = vand.u32 %v974, 4294901760
        %v1194 = vsub.f32 %v974, %v1193
        %1195 = vmatpush.msra.mxu0 %v1194
        %v1196 = vand.u32 %v973, 4294901760
        %v1197 = vsub.f32 %v973, %v1196
        %1198 = vmatpush.msra.mxu0 %v1197
        %v1199 = vand.u32 %v971, 4294901760
        %v1200 = vsub.f32 %v971, %v1199
        %1201 = vmatmul.f32.gmra.mxu0 %v1200
        %v1202 = vpop.f32.mrf.mxu0
        %v1203 = vadd.f32 %v1149, %v1202
        %1204 = vdwg.mxu0
        %v1205 = vand.u32 %v988, 4294901760
        %1206 = vmatpush.msra.mxu0 %v1205
        %v1207 = vand.u32 %v987, 4294901760
        %1208 = vmatpush.msra.mxu0 %v1207
        %v1209 = vand.u32 %v986, 4294901760
        %1210 = vmatpush.msra.mxu0 %v1209
        %v1211 = vand.u32 %v985, 4294901760
        %1212 = vmatpush.msra.mxu0 %v1211
        %v1213 = vand.u32 %v984, 4294901760
        %1214 = vmatpush.msra.mxu0 %v1213
        %v1215 = vand.u32 %v983, 4294901760
        %1216 = vmatpush.msra.mxu0 %v1215
        %v1217 = vand.u32 %v982, 4294901760
        %1218 = vmatpush.msra.mxu0 %v1217
        %v1219 = vand.u32 %v981, 4294901760
        %1220 = vmatpush.msra.mxu0 %v1219
        %v1221 = vand.u32 %v980, 4294901760
        %1222 = vmatpush.msra.mxu0 %v1221
        %v1223 = vand.u32 %v979, 4294901760
        %1224 = vmatpush.msra.mxu0 %v1223
        %v1225 = vand.u32 %v978, 4294901760
        %1226 = vmatpush.msra.mxu0 %v1225
        %v1227 = vand.u32 %v977, 4294901760
        %1228 = vmatpush.msra.mxu0 %v1227
        %v1229 = vand.u32 %v976, 4294901760
        %1230 = vmatpush.msra.mxu0 %v1229
        %v1231 = vand.u32 %v975, 4294901760
        %1232 = vmatpush.msra.mxu0 %v1231
        %v1233 = vand.u32 %v974, 4294901760
        %1234 = vmatpush.msra.mxu0 %v1233
        %v1235 = vand.u32 %v973, 4294901760
        %1236 = vmatpush.msra.mxu0 %v1235
        %v1237 = vand.u32 %v971, 4294901760
        %v1238 = vsub.f32 %v971, %v1237
        %v1239 = vand.u32 %v1238, 4294901760
        %1240 = vmatmul.f32.gmra.mxu0 %v1239
        %v1241 = vpop.f32.mrf.mxu0
        %v1242 = vadd.f32 %v1203, %v1241
        %1243 = vdwg.mxu0
        %v1244 = vand.u32 %v988, 4294901760
        %v1245 = vsub.f32 %v988, %v1244
        %v1246 = vand.u32 %v1245, 4294901760
        %1247 = vmatpush.msra.mxu0 %v1246
        %v1248 = vand.u32 %v987, 4294901760
        %v1249 = vsub.f32 %v987, %v1248
        %v1250 = vand.u32 %v1249, 4294901760
        %1251 = vmatpush.msra.mxu0 %v1250
        %v1252 = vand.u32 %v986, 4294901760
        %v1253 = vsub.f32 %v986, %v1252
        %v1254 = vand.u32 %v1253, 4294901760
        %1255 = vmatpush.msra.mxu0 %v1254
        %v1256 = vand.u32 %v985, 4294901760
        %v1257 = vsub.f32 %v985, %v1256
        %v1258 = vand.u32 %v1257, 4294901760
        %1259 = vmatpush.msra.mxu0 %v1258
        %v1260 = vand.u32 %v984, 4294901760
        %v1261 = vsub.f32 %v984, %v1260
        %v1262 = vand.u32 %v1261, 4294901760
        %1263 = vmatpush.msra.mxu0 %v1262
        %v1264 = vand.u32 %v983, 4294901760
        %v1265 = vsub.f32 %v983, %v1264
        %v1266 = vand.u32 %v1265, 4294901760
        %1267 = vmatpush.msra.mxu0 %v1266
        %v1268 = vand.u32 %v982, 4294901760
        %v1269 = vsub.f32 %v982, %v1268
        %v1270 = vand.u32 %v1269, 4294901760
        %1271 = vmatpush.msra.mxu0 %v1270
        %v1272 = vand.u32 %v981, 4294901760
        %v1273 = vsub.f32 %v981, %v1272
        %v1274 = vand.u32 %v1273, 4294901760
        %1275 = vmatpush.msra.mxu0 %v1274
        %v1276 = vand.u32 %v980, 4294901760
        %v1277 = vsub.f32 %v980, %v1276
        %v1278 = vand.u32 %v1277, 4294901760
        %1279 = vmatpush.msra.mxu0 %v1278
        %v1280 = vand.u32 %v979, 4294901760
        %v1281 = vsub.f32 %v979, %v1280
        %v1282 = vand.u32 %v1281, 4294901760
        %1283 = vmatpush.msra.mxu0 %v1282
        %v1284 = vand.u32 %v978, 4294901760
        %v1285 = vsub.f32 %v978, %v1284
        %v1286 = vand.u32 %v1285, 4294901760
        %1287 = vmatpush.msra.mxu0 %v1286
        %v1288 = vand.u32 %v977, 4294901760
        %v1289 = vsub.f32 %v977, %v1288
        %v1290 = vand.u32 %v1289, 4294901760
        %1291 = vmatpush.msra.mxu0 %v1290
        %v1292 = vand.u32 %v976, 4294901760
        %v1293 = vsub.f32 %v976, %v1292
        %v1294 = vand.u32 %v1293, 4294901760
        %1295 = vmatpush.msra.mxu0 %v1294
        %v1296 = vand.u32 %v975, 4294901760
        %v1297 = vsub.f32 %v975, %v1296
        %v1298 = vand.u32 %v1297, 4294901760
        %1299 = vmatpush.msra.mxu0 %v1298
        %v1300 = vand.u32 %v974, 4294901760
        %v1301 = vsub.f32 %v974, %v1300
        %v1302 = vand.u32 %v1301, 4294901760
        %1303 = vmatpush.msra.mxu0 %v1302
        %v1304 = vand.u32 %v973, 4294901760
        %v1305 = vsub.f32 %v973, %v1304
        %v1306 = vand.u32 %v1305, 4294901760
        %1307 = vmatpush.msra.mxu0 %v1306
        %v1308 = vand.u32 %v971, 4294901760
        %1309 = vmatmul.f32.gmra.mxu0 %v1308
        %v1310 = vpop.f32.mrf.mxu0
        %v1311 = vadd.f32 %v1242, %v1310
        %1312 = vdwg.mxu0
        %v1313 = vand.u32 %v988, 4294901760
        %1314 = vmatpush.msra.mxu0 %v1313
        %v1315 = vand.u32 %v987, 4294901760
        %1316 = vmatpush.msra.mxu0 %v1315
        %v1317 = vand.u32 %v986, 4294901760
        %1318 = vmatpush.msra.mxu0 %v1317
        %v1319 = vand.u32 %v985, 4294901760
        %1320 = vmatpush.msra.mxu0 %v1319
        %v1321 = vand.u32 %v984, 4294901760
        %1322 = vmatpush.msra.mxu0 %v1321
        %v1323 = vand.u32 %v983, 4294901760
        %1324 = vmatpush.msra.mxu0 %v1323
        %v1325 = vand.u32 %v982, 4294901760
        %1326 = vmatpush.msra.mxu0 %v1325
        %v1327 = vand.u32 %v981, 4294901760
        %1328 = vmatpush.msra.mxu0 %v1327
        %v1329 = vand.u32 %v980, 4294901760
        %1330 = vmatpush.msra.mxu0 %v1329
        %v1331 = vand.u32 %v979, 4294901760
        %1332 = vmatpush.msra.mxu0 %v1331
        %v1333 = vand.u32 %v978, 4294901760
        %1334 = vmatpush.msra.mxu0 %v1333
        %v1335 = vand.u32 %v977, 4294901760
        %1336 = vmatpush.msra.mxu0 %v1335
        %v1337 = vand.u32 %v976, 4294901760
        %1338 = vmatpush.msra.mxu0 %v1337
        %v1339 = vand.u32 %v975, 4294901760
        %1340 = vmatpush.msra.mxu0 %v1339
        %v1341 = vand.u32 %v974, 4294901760
        %1342 = vmatpush.msra.mxu0 %v1341
        %v1343 = vand.u32 %v973, 4294901760
        %1344 = vmatpush.msra.mxu0 %v1343
        %v1345 = vand.u32 %v971, 4294901760
        %1346 = vmatmul.f32.gmra.mxu0 %v1345
        %v1347 = vpop.f32.mrf.mxu0
        %v1348 = vadd.f32 %v1311, %v1347
        %1349 = vdwg.mxu0
        %v1350 = vand.u32 %v1004, 4294901760
        %1351 = vmatpush.msra.mxu0 %v1350
        %v1352 = vand.u32 %v1003, 4294901760
        %1353 = vmatpush.msra.mxu0 %v1352
        %v1354 = vand.u32 %v1002, 4294901760
        %1355 = vmatpush.msra.mxu0 %v1354
        %v1356 = vand.u32 %v1001, 4294901760
        %1357 = vmatpush.msra.mxu0 %v1356
        %v1358 = vand.u32 %v1000, 4294901760
        %1359 = vmatpush.msra.mxu0 %v1358
        %v1360 = vand.u32 %v999, 4294901760
        %1361 = vmatpush.msra.mxu0 %v1360
        %v1362 = vand.u32 %v998, 4294901760
        %1363 = vmatpush.msra.mxu0 %v1362
        %v1364 = vand.u32 %v997, 4294901760
        %1365 = vmatpush.msra.mxu0 %v1364
        %v1366 = vand.u32 %v996, 4294901760
        %1367 = vmatpush.msra.mxu0 %v1366
        %v1368 = vand.u32 %v995, 4294901760
        %1369 = vmatpush.msra.mxu0 %v1368
        %v1370 = vand.u32 %v994, 4294901760
        %1371 = vmatpush.msra.mxu0 %v1370
        %v1372 = vand.u32 %v993, 4294901760
        %1373 = vmatpush.msra.mxu0 %v1372
        %v1374 = vand.u32 %v992, 4294901760
        %1375 = vmatpush.msra.mxu0 %v1374
        %v1376 = vand.u32 %v991, 4294901760
        %1377 = vmatpush.msra.mxu0 %v1376
        %v1378 = vand.u32 %v990, 4294901760
        %1379 = vmatpush.msra.mxu0 %v1378
        %v1380 = vand.u32 %v989, 4294901760
        %1381 = vmatpush.msra.mxu0 %v1380
        %v1382 = vand.u32 %v972, 4294901760
        %v1383 = vsub.f32 %v972, %v1382
        %v1384 = vand.u32 %v1383, 4294901760
        %v1385 = vsub.f32 %v1383, %v1384
        %v1386 = vand.u32 %v1385, 4294901760
        %1387 = vmatmul.f32.gmra.mxu0 %v1386
        %v1388 = vpop.f32.mrf.mxu0
        %v1389 = vadd.f32 %v1348, %v1388
        %1390 = vdwg.mxu0
        %v1391 = vand.u32 %v1004, 4294901760
        %v1392 = vsub.f32 %v1004, %v1391
        %v1393 = vand.u32 %v1392, 4294901760
        %v1394 = vsub.f32 %v1392, %v1393
        %v1395 = vand.u32 %v1394, 4294901760
        %1396 = vmatpush.msra.mxu0 %v1395
        %v1397 = vand.u32 %v1003, 4294901760
        %v1398 = vsub.f32 %v1003, %v1397
        %v1399 = vand.u32 %v1398, 4294901760
        %v1400 = vsub.f32 %v1398, %v1399
        %v1401 = vand.u32 %v1400, 4294901760
        %1402 = vmatpush.msra.mxu0 %v1401
        %v1403 = vand.u32 %v1002, 4294901760
        %v1404 = vsub.f32 %v1002, %v1403
        %v1405 = vand.u32 %v1404, 4294901760
        %v1406 = vsub.f32 %v1404, %v1405
        %v1407 = vand.u32 %v1406, 4294901760
        %1408 = vmatpush.msra.mxu0 %v1407
        %v1409 = vand.u32 %v1001, 4294901760
        %v1410 = vsub.f32 %v1001, %v1409
        %v1411 = vand.u32 %v1410, 4294901760
        %v1412 = vsub.f32 %v1410, %v1411
        %v1413 = vand.u32 %v1412, 4294901760
        %1414 = vmatpush.msra.mxu0 %v1413
        %v1415 = vand.u32 %v1000, 4294901760
        %v1416 = vsub.f32 %v1000, %v1415
        %v1417 = vand.u32 %v1416, 4294901760
        %v1418 = vsub.f32 %v1416, %v1417
        %v1419 = vand.u32 %v1418, 4294901760
        %1420 = vmatpush.msra.mxu0 %v1419
        %v1421 = vand.u32 %v999, 4294901760
        %v1422 = vsub.f32 %v999, %v1421
        %v1423 = vand.u32 %v1422, 4294901760
        %v1424 = vsub.f32 %v1422, %v1423
        %v1425 = vand.u32 %v1424, 4294901760
        %1426 = vmatpush.msra.mxu0 %v1425
        %v1427 = vand.u32 %v998, 4294901760
        %v1428 = vsub.f32 %v998, %v1427
        %v1429 = vand.u32 %v1428, 4294901760
        %v1430 = vsub.f32 %v1428, %v1429
        %v1431 = vand.u32 %v1430, 4294901760
        %1432 = vmatpush.msra.mxu0 %v1431
        %v1433 = vand.u32 %v997, 4294901760
        %v1434 = vsub.f32 %v997, %v1433
        %v1435 = vand.u32 %v1434, 4294901760
        %v1436 = vsub.f32 %v1434, %v1435
        %v1437 = vand.u32 %v1436, 4294901760
        %1438 = vmatpush.msra.mxu0 %v1437
        %v1439 = vand.u32 %v996, 4294901760
        %v1440 = vsub.f32 %v996, %v1439
        %v1441 = vand.u32 %v1440, 4294901760
        %v1442 = vsub.f32 %v1440, %v1441
        %v1443 = vand.u32 %v1442, 4294901760
        %1444 = vmatpush.msra.mxu0 %v1443
        %v1445 = vand.u32 %v995, 4294901760
        %v1446 = vsub.f32 %v995, %v1445
        %v1447 = vand.u32 %v1446, 4294901760
        %v1448 = vsub.f32 %v1446, %v1447
        %v1449 = vand.u32 %v1448, 4294901760
        %1450 = vmatpush.msra.mxu0 %v1449
        %v1451 = vand.u32 %v994, 4294901760
        %v1452 = vsub.f32 %v994, %v1451
        %v1453 = vand.u32 %v1452, 4294901760
        %v1454 = vsub.f32 %v1452, %v1453
        %v1455 = vand.u32 %v1454, 4294901760
        %1456 = vmatpush.msra.mxu0 %v1455
        %v1457 = vand.u32 %v993, 4294901760
        %v1458 = vsub.f32 %v993, %v1457
        %v1459 = vand.u32 %v1458, 4294901760
        %v1460 = vsub.f32 %v1458, %v1459
        %v1461 = vand.u32 %v1460, 4294901760
        %1462 = vmatpush.msra.mxu0 %v1461
        %v1463 = vand.u32 %v992, 4294901760
        %v1464 = vsub.f32 %v992, %v1463
        %v1465 = vand.u32 %v1464, 4294901760
        %v1466 = vsub.f32 %v1464, %v1465
        %v1467 = vand.u32 %v1466, 4294901760
        %1468 = vmatpush.msra.mxu0 %v1467
        %v1469 = vand.u32 %v991, 4294901760
        %v1470 = vsub.f32 %v991, %v1469
        %v1471 = vand.u32 %v1470, 4294901760
        %v1472 = vsub.f32 %v1470, %v1471
        %v1473 = vand.u32 %v1472, 4294901760
        %1474 = vmatpush.msra.mxu0 %v1473
        %v1475 = vand.u32 %v990, 4294901760
        %v1476 = vsub.f32 %v990, %v1475
        %v1477 = vand.u32 %v1476, 4294901760
        %v1478 = vsub.f32 %v1476, %v1477
        %v1479 = vand.u32 %v1478, 4294901760
        %1480 = vmatpush.msra.mxu0 %v1479
        %v1481 = vand.u32 %v989, 4294901760
        %v1482 = vsub.f32 %v989, %v1481
        %v1483 = vand.u32 %v1482, 4294901760
        %v1484 = vsub.f32 %v1482, %v1483
        %v1485 = vand.u32 %v1484, 4294901760
        %1486 = vmatpush.msra.mxu0 %v1485
        %v1487 = vand.u32 %v972, 4294901760
        %1488 = vmatmul.f32.gmra.mxu0 %v1487
        %v1489 = vpop.f32.mrf.mxu0
        %v1490 = vadd.f32 %v1389, %v1489
        %1491 = vdwg.mxu0
        %v1492 = vand.u32 %v1004, 4294901760
        %v1493 = vsub.f32 %v1004, %v1492
        %1494 = vmatpush.msra.mxu0 %v1493
        %v1495 = vand.u32 %v1003, 4294901760
        %v1496 = vsub.f32 %v1003, %v1495
        %1497 = vmatpush.msra.mxu0 %v1496
        %v1498 = vand.u32 %v1002, 4294901760
        %v1499 = vsub.f32 %v1002, %v1498
        %1500 = vmatpush.msra.mxu0 %v1499
        %v1501 = vand.u32 %v1001, 4294901760
        %v1502 = vsub.f32 %v1001, %v1501
        %1503 = vmatpush.msra.mxu0 %v1502
        %v1504 = vand.u32 %v1000, 4294901760
        %v1505 = vsub.f32 %v1000, %v1504
        %1506 = vmatpush.msra.mxu0 %v1505
        %v1507 = vand.u32 %v999, 4294901760
        %v1508 = vsub.f32 %v999, %v1507
        %1509 = vmatpush.msra.mxu0 %v1508
        %v1510 = vand.u32 %v998, 4294901760
        %v1511 = vsub.f32 %v998, %v1510
        %1512 = vmatpush.msra.mxu0 %v1511
        %v1513 = vand.u32 %v997, 4294901760
        %v1514 = vsub.f32 %v997, %v1513
        %1515 = vmatpush.msra.mxu0 %v1514
        %v1516 = vand.u32 %v996, 4294901760
        %v1517 = vsub.f32 %v996, %v1516
        %1518 = vmatpush.msra.mxu0 %v1517
        %v1519 = vand.u32 %v995, 4294901760
        %v1520 = vsub.f32 %v995, %v1519
        %1521 = vmatpush.msra.mxu0 %v1520
        %v1522 = vand.u32 %v994, 4294901760
        %v1523 = vsub.f32 %v994, %v1522
        %1524 = vmatpush.msra.mxu0 %v1523
        %v1525 = vand.u32 %v993, 4294901760
        %v1526 = vsub.f32 %v993, %v1525
        %1527 = vmatpush.msra.mxu0 %v1526
        %v1528 = vand.u32 %v992, 4294901760
        %v1529 = vsub.f32 %v992, %v1528
        %1530 = vmatpush.msra.mxu0 %v1529
        %v1531 = vand.u32 %v991, 4294901760
        %v1532 = vsub.f32 %v991, %v1531
        %1533 = vmatpush.msra.mxu0 %v1532
        %v1534 = vand.u32 %v990, 4294901760
        %v1535 = vsub.f32 %v990, %v1534
        %1536 = vmatpush.msra.mxu0 %v1535
        %v1537 = vand.u32 %v989, 4294901760
        %v1538 = vsub.f32 %v989, %v1537
        %1539 = vmatpush.msra.mxu0 %v1538
        %v1540 = vand.u32 %v972, 4294901760
        %v1541 = vsub.f32 %v972, %v1540
        %1542 = vmatmul.f32.gmra.mxu0 %v1541
        %v1543 = vpop.f32.mrf.mxu0
        %v1544 = vadd.f32 %v1490, %v1543
        %1545 = vdwg.mxu0
        %v1546 = vand.u32 %v1004, 4294901760
        %1547 = vmatpush.msra.mxu0 %v1546
        %v1548 = vand.u32 %v1003, 4294901760
        %1549 = vmatpush.msra.mxu0 %v1548
        %v1550 = vand.u32 %v1002, 4294901760
        %1551 = vmatpush.msra.mxu0 %v1550
        %v1552 = vand.u32 %v1001, 4294901760
        %1553 = vmatpush.msra.mxu0 %v1552
        %v1554 = vand.u32 %v1000, 4294901760
        %1555 = vmatpush.msra.mxu0 %v1554
        %v1556 = vand.u32 %v999, 4294901760
        %1557 = vmatpush.msra.mxu0 %v1556
        %v1558 = vand.u32 %v998, 4294901760
        %1559 = vmatpush.msra.mxu0 %v1558
        %v1560 = vand.u32 %v997, 4294901760
        %1561 = vmatpush.msra.mxu0 %v1560
        %v1562 = vand.u32 %v996, 4294901760
        %1563 = vmatpush.msra.mxu0 %v1562
        %v1564 = vand.u32 %v995, 4294901760
        %1565 = vmatpush.msra.mxu0 %v1564
        %v1566 = vand.u32 %v994, 4294901760
        %1567 = vmatpush.msra.mxu0 %v1566
        %v1568 = vand.u32 %v993, 4294901760
        %1569 = vmatpush.msra.mxu0 %v1568
        %v1570 = vand.u32 %v992, 4294901760
        %1571 = vmatpush.msra.mxu0 %v1570
        %v1572 = vand.u32 %v991, 4294901760
        %1573 = vmatpush.msra.mxu0 %v1572
        %v1574 = vand.u32 %v990, 4294901760
        %1575 = vmatpush.msra.mxu0 %v1574
        %v1576 = vand.u32 %v989, 4294901760
        %1577 = vmatpush.msra.mxu0 %v1576
        %v1578 = vand.u32 %v972, 4294901760
        %v1579 = vsub.f32 %v972, %v1578
        %v1580 = vand.u32 %v1579, 4294901760
        %1581 = vmatmul.f32.gmra.mxu0 %v1580
        %v1582 = vpop.f32.mrf.mxu0
        %v1583 = vadd.f32 %v1544, %v1582
        %1584 = vdwg.mxu0
        %v1585 = vand.u32 %v1004, 4294901760
        %v1586 = vsub.f32 %v1004, %v1585
        %v1587 = vand.u32 %v1586, 4294901760
        %1588 = vmatpush.msra.mxu0 %v1587
        %v1589 = vand.u32 %v1003, 4294901760
        %v1590 = vsub.f32 %v1003, %v1589
        %v1591 = vand.u32 %v1590, 4294901760
        %1592 = vmatpush.msra.mxu0 %v1591
        %v1593 = vand.u32 %v1002, 4294901760
        %v1594 = vsub.f32 %v1002, %v1593
        %v1595 = vand.u32 %v1594, 4294901760
        %1596 = vmatpush.msra.mxu0 %v1595
        %v1597 = vand.u32 %v1001, 4294901760
        %v1598 = vsub.f32 %v1001, %v1597
        %v1599 = vand.u32 %v1598, 4294901760
        %1600 = vmatpush.msra.mxu0 %v1599
        %v1601 = vand.u32 %v1000, 4294901760
        %v1602 = vsub.f32 %v1000, %v1601
        %v1603 = vand.u32 %v1602, 4294901760
        %1604 = vmatpush.msra.mxu0 %v1603
        %v1605 = vand.u32 %v999, 4294901760
        %v1606 = vsub.f32 %v999, %v1605
        %v1607 = vand.u32 %v1606, 4294901760
        %1608 = vmatpush.msra.mxu0 %v1607
        %v1609 = vand.u32 %v998, 4294901760
        %v1610 = vsub.f32 %v998, %v1609
        %v1611 = vand.u32 %v1610, 4294901760
        %1612 = vmatpush.msra.mxu0 %v1611
        %v1613 = vand.u32 %v997, 4294901760
        %v1614 = vsub.f32 %v997, %v1613
        %v1615 = vand.u32 %v1614, 4294901760
        %1616 = vmatpush.msra.mxu0 %v1615
        %v1617 = vand.u32 %v996, 4294901760
        %v1618 = vsub.f32 %v996, %v1617
        %v1619 = vand.u32 %v1618, 4294901760
        %1620 = vmatpush.msra.mxu0 %v1619
        %v1621 = vand.u32 %v995, 4294901760
        %v1622 = vsub.f32 %v995, %v1621
        %v1623 = vand.u32 %v1622, 4294901760
        %1624 = vmatpush.msra.mxu0 %v1623
        %v1625 = vand.u32 %v994, 4294901760
        %v1626 = vsub.f32 %v994, %v1625
        %v1627 = vand.u32 %v1626, 4294901760
        %1628 = vmatpush.msra.mxu0 %v1627
        %v1629 = vand.u32 %v993, 4294901760
        %v1630 = vsub.f32 %v993, %v1629
        %v1631 = vand.u32 %v1630, 4294901760
        %1632 = vmatpush.msra.mxu0 %v1631
        %v1633 = vand.u32 %v992, 4294901760
        %v1634 = vsub.f32 %v992, %v1633
        %v1635 = vand.u32 %v1634, 4294901760
        %1636 = vmatpush.msra.mxu0 %v1635
        %v1637 = vand.u32 %v991, 4294901760
        %v1638 = vsub.f32 %v991, %v1637
        %v1639 = vand.u32 %v1638, 4294901760
        %1640 = vmatpush.msra.mxu0 %v1639
        %v1641 = vand.u32 %v990, 4294901760
        %v1642 = vsub.f32 %v990, %v1641
        %v1643 = vand.u32 %v1642, 4294901760
        %1644 = vmatpush.msra.mxu0 %v1643
        %v1645 = vand.u32 %v989, 4294901760
        %v1646 = vsub.f32 %v989, %v1645
        %v1647 = vand.u32 %v1646, 4294901760
        %1648 = vmatpush.msra.mxu0 %v1647
        %v1649 = vand.u32 %v972, 4294901760
        %1650 = vmatmul.f32.gmra.mxu0 %v1649
        %v1651 = vpop.f32.mrf.mxu0
        %v1652 = vadd.f32 %v1583, %v1651
        %1653 = vdwg.mxu0
        %v1654 = vand.u32 %v1004, 4294901760
        %1655 = vmatpush.msra.mxu0 %v1654
        %v1656 = vand.u32 %v1003, 4294901760
        %1657 = vmatpush.msra.mxu0 %v1656
        %v1658 = vand.u32 %v1002, 4294901760
        %1659 = vmatpush.msra.mxu0 %v1658
        %v1660 = vand.u32 %v1001, 4294901760
        %1661 = vmatpush.msra.mxu0 %v1660
        %v1662 = vand.u32 %v1000, 4294901760
        %1663 = vmatpush.msra.mxu0 %v1662
        %v1664 = vand.u32 %v999, 4294901760
        %1665 = vmatpush.msra.mxu0 %v1664
        %v1666 = vand.u32 %v998, 4294901760
        %1667 = vmatpush.msra.mxu0 %v1666
        %v1668 = vand.u32 %v997, 4294901760
        %1669 = vmatpush.msra.mxu0 %v1668
        %v1670 = vand.u32 %v996, 4294901760
        %1671 = vmatpush.msra.mxu0 %v1670
        %v1672 = vand.u32 %v995, 4294901760
        %1673 = vmatpush.msra.mxu0 %v1672
        %v1674 = vand.u32 %v994, 4294901760
        %1675 = vmatpush.msra.mxu0 %v1674
        %v1676 = vand.u32 %v993, 4294901760
        %1677 = vmatpush.msra.mxu0 %v1676
        %v1678 = vand.u32 %v992, 4294901760
        %1679 = vmatpush.msra.mxu0 %v1678
        %v1680 = vand.u32 %v991, 4294901760
        %1681 = vmatpush.msra.mxu0 %v1680
        %v1682 = vand.u32 %v990, 4294901760
        %1683 = vmatpush.msra.mxu0 %v1682
        %v1684 = vand.u32 %v989, 4294901760
        %1685 = vmatpush.msra.mxu0 %v1684
        %v1686 = vand.u32 %v972, 4294901760
        %1687 = vmatmul.f32.gmra.mxu0 %v1686
        %v1688 = vpop.f32.mrf.mxu0
        %v1689 = vadd.f32 %v1652, %v1688
        %1690 = vdwg.mxu0
        %v1691 = vmax.f32 %v1689, 0.0
        %v1692 = vld [vmem:[%s7] sm:$0xff]
        %v1693 = vld [vmem:[%s7 + $0x8] sm:$0xff]
        %v1694 = vld [vmem:[%s7 + $0x10] sm:$0xff]
        %v1695 = vld [vmem:[%s7 + $0x18] sm:$0xff]
        %v1696 = vld [vmem:[%s8] sm:$0x1]
        %v1698 = vperm.slane %v1696, 0
        %v1701 = vsel %vm597, %v1691, 0
        %1703 = vmatpush.msra.mxu0 0.0
        %1704 = vmatpush.msra.mxu0 0.0
        %1705 = vmatpush.msra.mxu0 0.0
        %1706 = vmatpush.msra.mxu0 0.0
        %1707 = vmatpush.msra.mxu0 0.0
        %1708 = vmatpush.msra.mxu0 0.0
        %1709 = vmatpush.msra.mxu0 0.0
        %1710 = vmatpush.msra.mxu0 0.0
        %1711 = vmatpush.msra.mxu0 0.0
        %1712 = vmatpush.msra.mxu0 0.0
        %1713 = vmatpush.msra.mxu0 0.0
        %1714 = vmatpush.msra.mxu0 0.0
        %v1715 = vand.u32 %v1695, 4294901760
        %1716 = vmatpush.msra.mxu0 %v1715
        %v1717 = vand.u32 %v1694, 4294901760
        %1718 = vmatpush.msra.mxu0 %v1717
        %v1719 = vand.u32 %v1693, 4294901760
        %1720 = vmatpush.msra.mxu0 %v1719
        %v1721 = vand.u32 %v1692, 4294901760
        %1722 = vmatpush.msra.mxu0 %v1721
        %v1723 = vand.u32 %v1701, 4294901760
        %v1724 = vsub.f32 %v1701, %v1723
        %v1725 = vand.u32 %v1724, 4294901760
        %v1726 = vsub.f32 %v1724, %v1725
        %v1727 = vand.u32 %v1726, 4294901760
        %1728 = vmatmul.f32.gmra.mxu0 %v1727
        %v1729 = vpop.f32.mrf.mxu0
        %v1730 = vadd.f32 %v1698, %v1729
        %1731 = vdwg.mxu0
        %1732 = vmatpush.msra.mxu0 0.0
        %1733 = vmatpush.msra.mxu0 0.0
        %1734 = vmatpush.msra.mxu0 0.0
        %1735 = vmatpush.msra.mxu0 0.0
        %1736 = vmatpush.msra.mxu0 0.0
        %1737 = vmatpush.msra.mxu0 0.0
        %1738 = vmatpush.msra.mxu0 0.0
        %1739 = vmatpush.msra.mxu0 0.0
        %1740 = vmatpush.msra.mxu0 0.0
        %1741 = vmatpush.msra.mxu0 0.0
        %1742 = vmatpush.msra.mxu0 0.0
        %1743 = vmatpush.msra.mxu0 0.0
        %v1744 = vand.u32 %v1695, 4294901760
        %v1745 = vsub.f32 %v1695, %v1744
        %v1746 = vand.u32 %v1745, 4294901760
        %v1747 = vsub.f32 %v1745, %v1746
        %v1748 = vand.u32 %v1747, 4294901760
        %1749 = vmatpush.msra.mxu0 %v1748
        %v1750 = vand.u32 %v1694, 4294901760
        %v1751 = vsub.f32 %v1694, %v1750
        %v1752 = vand.u32 %v1751, 4294901760
        %v1753 = vsub.f32 %v1751, %v1752
        %v1754 = vand.u32 %v1753, 4294901760
        %1755 = vmatpush.msra.mxu0 %v1754
        %v1756 = vand.u32 %v1693, 4294901760
        %v1757 = vsub.f32 %v1693, %v1756
        %v1758 = vand.u32 %v1757, 4294901760
        %v1759 = vsub.f32 %v1757, %v1758
        %v1760 = vand.u32 %v1759, 4294901760
        %1761 = vmatpush.msra.mxu0 %v1760
        %v1762 = vand.u32 %v1692, 4294901760
        %v1763 = vsub.f32 %v1692, %v1762
        %v1764 = vand.u32 %v1763, 4294901760
        %v1765 = vsub.f32 %v1763, %v1764
        %v1766 = vand.u32 %v1765, 4294901760
        %1767 = vmatpush.msra.mxu0 %v1766
        %v1768 = vand.u32 %v1701, 4294901760
        %1769 = vmatmul.f32.gmra.mxu0 %v1768
        %v1770 = vpop.f32.mrf.mxu0
        %v1771 = vadd.f32 %v1730, %v1770
        %1772 = vdwg.mxu0
        %1773 = vmatpush.msra.mxu0 0.0
        %1774 = vmatpush.msra.mxu0 0.0
        %1775 = vmatpush.msra.mxu0 0.0
        %1776 = vmatpush.msra.mxu0 0.0
        %1777 = vmatpush.msra.mxu0 0.0
        %1778 = vmatpush.msra.mxu0 0.0
        %1779 = vmatpush.msra.mxu0 0.0
        %1780 = vmatpush.msra.mxu0 0.0
        %1781 = vmatpush.msra.mxu0 0.0
        %1782 = vmatpush.msra.mxu0 0.0
        %1783 = vmatpush.msra.mxu0 0.0
        %1784 = vmatpush.msra.mxu0 0.0
        %v1785 = vand.u32 %v1695, 4294901760
        %v1786 = vsub.f32 %v1695, %v1785
        %1787 = vmatpush.msra.mxu0 %v1786
        %v1788 = vand.u32 %v1694, 4294901760
        %v1789 = vsub.f32 %v1694, %v1788
        %1790 = vmatpush.msra.mxu0 %v1789
        %v1791 = vand.u32 %v1693, 4294901760
        %v1792 = vsub.f32 %v1693, %v1791
        %1793 = vmatpush.msra.mxu0 %v1792
        %v1794 = vand.u32 %v1692, 4294901760
        %v1795 = vsub.f32 %v1692, %v1794
        %1796 = vmatpush.msra.mxu0 %v1795
        %v1797 = vand.u32 %v1701, 4294901760
        %v1798 = vsub.f32 %v1701, %v1797
        %1799 = vmatmul.f32.gmra.mxu0 %v1798
        %v1800 = vpop.f32.mrf.mxu0
        %v1801 = vadd.f32 %v1771, %v1800
        %1802 = vdwg.mxu0
        %1803 = vmatpush.msra.mxu0 0.0
        %1804 = vmatpush.msra.mxu0 0.0
        %1805 = vmatpush.msra.mxu0 0.0
        %1806 = vmatpush.msra.mxu0 0.0
        %1807 = vmatpush.msra.mxu0 0.0
        %1808 = vmatpush.msra.mxu0 0.0
        %1809 = vmatpush.msra.mxu0 0.0
        %1810 = vmatpush.msra.mxu0 0.0
        %1811 = vmatpush.msra.mxu0 0.0
        %1812 = vmatpush.msra.mxu0 0.0
        %1813 = vmatpush.msra.mxu0 0.0
        %1814 = vmatpush.msra.mxu0 0.0
        %v1815 = vand.u32 %v1695, 4294901760
        %1816 = vmatpush.msra.mxu0 %v1815
        %v1817 = vand.u32 %v1694, 4294901760
        %1818 = vmatpush.msra.mxu0 %v1817
        %v1819 = vand.u32 %v1693, 4294901760
        %1820 = vmatpush.msra.mxu0 %v1819
        %v1821 = vand.u32 %v1692, 4294901760
        %1822 = vmatpush.msra.mxu0 %v1821
        %v1823 = vand.u32 %v1701, 4294901760
        %v1824 = vsub.f32 %v1701, %v1823
        %v1825 = vand.u32 %v1824, 4294901760
        %1826 = vmatmul.f32.gmra.mxu0 %v1825
        %v1827 = vpop.f32.mrf.mxu0
        %v1828 = vadd.f32 %v1801, %v1827
        %1829 = vdwg.mxu0
        %1830 = vmatpush.msra.mxu0 0.0
        %1831 = vmatpush.msra.mxu0 0.0
        %1832 = vmatpush.msra.mxu0 0.0
        %1833 = vmatpush.msra.mxu0 0.0
        %1834 = vmatpush.msra.mxu0 0.0
        %1835 = vmatpush.msra.mxu0 0.0
        %1836 = vmatpush.msra.mxu0 0.0
        %1837 = vmatpush.msra.mxu0 0.0
        %1838 = vmatpush.msra.mxu0 0.0
        %1839 = vmatpush.msra.mxu0 0.0
        %1840 = vmatpush.msra.mxu0 0.0
        %1841 = vmatpush.msra.mxu0 0.0
        %v1842 = vand.u32 %v1695, 4294901760
        %v1843 = vsub.f32 %v1695, %v1842
        %v1844 = vand.u32 %v1843, 4294901760
        %1845 = vmatpush.msra.mxu0 %v1844
        %v1846 = vand.u32 %v1694, 4294901760
        %v1847 = vsub.f32 %v1694, %v1846
        %v1848 = vand.u32 %v1847, 4294901760
        %1849 = vmatpush.msra.mxu0 %v1848
        %v1850 = vand.u32 %v1693, 4294901760
        %v1851 = vsub.f32 %v1693, %v1850
        %v1852 = vand.u32 %v1851, 4294901760
        %1853 = vmatpush.msra.mxu0 %v1852
        %v1854 = vand.u32 %v1692, 4294901760
        %v1855 = vsub.f32 %v1692, %v1854
        %v1856 = vand.u32 %v1855, 4294901760
        %1857 = vmatpush.msra.mxu0 %v1856
        %v1858 = vand.u32 %v1701, 4294901760
        %1859 = vmatmul.f32.gmra.mxu0 %v1858
        %v1860 = vpop.f32.mrf.mxu0
        %v1861 = vadd.f32 %v1828, %v1860
        %1862 = vdwg.mxu0
        %1863 = vmatpush.msra.mxu0 0.0
        %1864 = vmatpush.msra.mxu0 0.0
        %1865 = vmatpush.msra.mxu0 0.0
        %1866 = vmatpush.msra.mxu0 0.0
        %1867 = vmatpush.msra.mxu0 0.0
        %1868 = vmatpush.msra.mxu0 0.0
        %1869 = vmatpush.msra.mxu0 0.0
        %1870 = vmatpush.msra.mxu0 0.0
        %1871 = vmatpush.msra.mxu0 0.0
        %1872 = vmatpush.msra.mxu0 0.0
        %1873 = vmatpush.msra.mxu0 0.0
        %1874 = vmatpush.msra.mxu0 0.0
        %v1875 = vand.u32 %v1695, 4294901760
        %1876 = vmatpush.msra.mxu0 %v1875
        %v1877 = vand.u32 %v1694, 4294901760
        %1878 = vmatpush.msra.mxu0 %v1877
        %v1879 = vand.u32 %v1693, 4294901760
        %1880 = vmatpush.msra.mxu0 %v1879
        %v1881 = vand.u32 %v1692, 4294901760
        %1882 = vmatpush.msra.mxu0 %v1881
        %v1883 = vand.u32 %v1701, 4294901760
        %1884 = vmatmul.f32.gmra.mxu0 %v1883
        %v1885 = vpop.f32.mrf.mxu0
        %v1886 = vadd.f32 %v1861, %v1885
        %1887 = vdwg.mxu0
        %v1888 = vxor.u32 %v1886, 2147483648
        %v1889 = vmul.f32 %v1888, 1.442695
        %v1890 = vpow.pop %v1889
        %v1891 = vadd.f32 %v1890, 1.0
        %v1892 = vrcp.pop %v1891
        %v1893 = vmul.f32 %v1891, %v1892
        %v1894 = vsub.f32 1.0, %v1893
        %v1895 = vmul.f32 %v1892, %v1894
        %v1896 = vadd.f32 %v1892, %v1895
        %vm1897 = vweird.f32 %v1891
        %vm1898 = vweird.f32 %v1892
        %vm1899 = vmor %vm1897, %vm1898
        %v1900 = vsel %vm1899, %v1892, %v1896
        %v1901 = vand.u32 2147483647, %v1891
        %vm1902 = vcmp.eq.f32.partialorder %v1901, 8.507059e+37
        %v1903 = vand.u32 %v1891, 2147483648
        %v1904 = vor.u32 1.1754944e-38, %v1903
        %v1905 = vsel %vm1902, %v1904, %v1900
        %v1906 = vmul.f32 1.0, %v1905
        %1907 = vst.msk [vmem:[%s323] sm:$0xff] %vm341, %v1906
        %s1908 = sand.u32 %s225, 1
        %s1909 = scalar_lea.sflag [#allocation3], %s1908
        %s1910 = sand.u32 %s225, 1
        %s1911 = smul.addr %s1910, 8
        %s1912 = scalar_lea.vmem [#allocation2], %s1911
        // Predicated region
        $region57: #{tpu_custom_call.1} parent=55 // pred_check
          %p1913 = pneg %p235
        $region58: #{tpu_custom_call.1} parent=55 // pred_check_branch
          %1915 = sbr.rel (%p1913) target = $region60
        $region59: #{tpu_custom_call.1} parent=55 // pred_region
          %1917 = vsyncadd %s1909, 0
          %s1918 = smul.addr %s23, 8
          %s1919 = scalar_lea.hbm %s9, %s1918
          %s1921 = sshll.u32 %s1912, 4
          %s1922 = int_to_ptr.vmem [resolvable:$true] %s1921
          %s1923 = sshll.u32 %s1919, 4
          %s1924 = int_to_ptr.hbm [resolvable:$true] %s1923
          %1926 = dma.vmem_to_hbm [thread:$0]  %s1922, 128, %s1924, %s1909
        $region60: #{tpu_custom_call.1} parent=55 // pred_fallthru
          _
      $region56: #{tpu_custom_call.1} parent=5 // pred_fallthru
        _
      %p1927 = scmp.le.s32.totalorder 2, %s18
      // Predicated region
      $region61: #{tpu_custom_call.1} parent=5 // pred_check
        %p1928 = pneg %p1927
      $region62: #{tpu_custom_call.1} parent=5 // pred_check_branch
        %1930 = sbr.rel (%p1928) target = $region64
      $region63: #{tpu_custom_call.1} parent=5 // pred_region
        %s1931 = ssub.s32 %s18, 2
        // Predicated region
        $region65: #{tpu_custom_call.1} parent=63 // pred_check
          %p1932 = pneg %p241
        $region66: #{tpu_custom_call.1} parent=63 // pred_check_branch
          %1934 = sbr.rel (%p1932) target = $region68
        $region67: #{tpu_custom_call.1} parent=63 // pred_region
          %s1935 = sand.u32 %s226, 1
          %s1936 = scalar_lea.sflag [#allocation3], %s1935
          %s1937 = sand.u32 %s226, 1
          %s1938 = smul.addr %s1937, 8
          %s1939 = scalar_lea.vmem [#allocation2], %s1938
          %1941 = dma.done %s1936, 128
        $region68: #{tpu_custom_call.1} parent=63 // pred_fallthru
          _
      $region64: #{tpu_custom_call.1} parent=5 // pred_fallthru
        _
    $region6: #{tpu_custom_call.1} parent=1 // loop_footer
      %s22 = sadd.s32 1, %s18
    $region7: #{tpu_custom_call.1} parent=1 // loop_footer_branch
      %17 = sbr.rel target = $region3
    $region8: #{tpu_custom_call.1} parent=1 // loop_exit
      _
    %1942 = vsyncpa [#allocation3], 1
    %s1943 = scalar_lea.sflag [#allocation3], 1
    %1944 = vsyncpa %s1943, 1

</llo_original>
